<compile_context>
chip_gen: v5e
topology: v5e:2x2
jax: 0.10.0
libtpu: 0.0.40
codegen_flags: <defaults>
</compile_context>

<pallas_src>
import functools
import math

import jax
import jax.numpy as jnp
import numpy as np
from jax.experimental import pallas as pl
from jax.experimental.pallas import tpu as pltpu

LEAKY_SLOPE = 0.01  # nn.LeakyReLU default


def _leaky(x):
    return jnp.where(x >= 0, x, LEAKY_SLOPE * x)


def _mixed_decoder_kernel(num_experts, num_layers, eh, out_repack,
                          zc_ref, sel_ref, rep_ref,
                          g1w_ref, g1b_ref, g2w_ref, g2b_ref, g3w_ref, g3b_ref,
                          *rest):
    """One grid step == TB whole batch elements, flattened to TM = TB*seq_len rows.

    Scratch (xbuf) layout, width eh + E*lzc + E (bf16):
      [0 : eh)           cs_e * layer_out, expert-major   (rewritten every layer, lane offset 0)
      [eh : eh+E*lzc)    cs_e * zc,        expert-major   (written once per grid step)
      [eh+E*lzc : end)   softmax coefficients             (fuses the per-position mixed bias)
    The wrapper stacks each layer's weights in exactly the same K order, so every decoder
    layer is a single MXU matmul: expert sum + bias add happen inside the K-reduction.
    """
    w_refs = rest[:num_layers]
    o_ref = rest[num_layers]
    xbuf = rest[num_layers + 1]

    f32, bf16 = jnp.float32, jnp.bfloat16
    tm, lzc = zc_ref.shape
    E = num_experts
    hid = eh // E

    zc = zc_ref[...]                                                 # (TM, lzc) bf16

    # ---- gating MLP: Linear -> LeakyReLU -> Linear -> LeakyReLU -> Linear -> softmax
    #      (bf16 matmuls, f32 accumulation / elementwise, exact softmax divide).
    h = _leaky(jnp.dot(zc, g1w_ref[...], preferred_element_type=f32) + g1b_ref[...])
    h = _leaky(jnp.dot(h.astype(bf16), g2w_ref[...], preferred_element_type=f32) + g2b_ref[...])
    logits = jnp.dot(h.astype(bf16), g3w_ref[...], preferred_element_type=f32) + g3b_ref[...]
    m = jnp.max(logits, axis=-1, keepdims=True)
    ex = jnp.exp(logits - m)
    coeff = ex / jnp.sum(ex, axis=-1, keepdims=True)                 # (TM, E) f32

    # ---- per-batch coefficients of sequence position 0 (torch's mixed_weight[:, 0]),
    #      broadcast back to every row of their batch element via two tiny MXU matmuls
    #      against host-precomputed 0/1 masks (no in-kernel iotas, no cross-sublane gathers).
    coeff_b = coeff.astype(bf16)
    coeff0 = jnp.dot(sel_ref[...], coeff_b, preferred_element_type=f32)           # (TB, E)
    cs = jnp.dot(rep_ref[...], coeff0.astype(bf16), preferred_element_type=f32)   # (TM, E)

    # ---- loop-invariant operand slab: expert-scaled zc + coefficients (written once).
    zc_f = zc.astype(f32)
    for e in range(E):
        xbuf[:, eh + e * lzc: eh + (e + 1) * lzc] = (cs[:, e:e + 1] * zc_f).astype(bf16)
    xbuf[:, eh + E * lzc:] = coeff_b

    # ---- decoder layer 0: input is cat(z, layer_out=c) == zc, so the operand is just the
    #      invariant slab (K = E*lzc + E).
    base = xbuf[:, eh:]
    acc = jnp.dot(base, w_refs[0][...], preferred_element_type=f32)

    # ---- decoder layers >= 1: operand [cs(x)layer_out | cs(x)zc | coeff] against the
    #      wrapper-stacked [W_h ; W_zc ; b]  ->  one big matmul per layer.
    for li in range(1, num_layers):
        layer_out = _leaky(acc)
        for e in range(E):
            xbuf[:, e * hid:(e + 1) * hid] = (cs[:, e:e + 1] * layer_out).astype(bf16)
        acc = jnp.dot(xbuf[...], w_refs[li][...], preferred_element_type=f32)

    # ---- last layer has no activation; repack to a lane-dense slab before the store.
    if out_repack > 1:
        acc = acc.reshape(tm // out_repack, out_repack * acc.shape[1])
    o_ref[...] = acc.astype(o_ref.dtype)


def _choose_tb(batch, seq_len, block_rows):
    """Largest TB dividing batch with TB*seq_len <= block_rows, keeping the grid >= 2 steps
    when possible (v7x has 2 TensorCores) and preferring sublane-aligned row counts."""
    limit = max(1, min(batch, max(1, block_rows // seq_len)))
    if batch >= 2:
        limit = max(1, min(limit, batch // 2))       # keep at least 2 grid steps
    for align in (16, 8):                            # bf16 sublane packing, then f32
        for tb in range(limit, 0, -1):
            if batch % tb == 0 and (tb * seq_len) % align == 0:
                return tb
    # No sublane-aligned tiling exists: one full-batch block (always a legal block shape).
    return batch


def _choose_repack(out_size, tm, rows):
    """Row-packing factor r so the output block is (tm//r, r*out_size) with r*out_size a
    multiple of 128 lanes (dense vst / dense HBM writeback).  Returns 1 if not applicable."""
    if out_size % 128 == 0:
        return 1
    r = 128 // math.gcd(out_size, 128)
    if tm % r or rows % r:
        return 1
    if (tm // r) % 8 == 0 or tm // r == rows // r:
        return r
    return 1


def mixed_decoder(z, c, params, *, block_rows=1024):
    """z: (B, N, latent), c: (B, N, cond) -> (B, N, output_size)."""
    B, N, lz = z.shape
    _, _, lc = c.shape
    lzc = lz + lc
    (g1w, g1b, g2w, g2b, g3w, g3b), dec = params
    E = dec[0][0].shape[0]
    hidden = dec[0][0].shape[-1]
    out_size = dec[-1][0].shape[-1]
    num_layers = len(dec)

    rows = B * N
    tb = _choose_tb(B, N, block_rows)
    tm = tb * N
    grid = (B // tb,)
    eh = E * hidden
    kbase = E * lzc + E
    out_repack = _choose_repack(out_size, tm, rows)

    bf16 = jnp.bfloat16
    # Pre-concatenate z and c once; flatten rows; bf16 matmul operands (halves the DMA too).
    zc = jnp.concatenate([z, c], axis=-1).reshape(rows, lzc).astype(bf16)

    # Host-precomputed 0/1 masks: sel picks the position-0 row of each batch element in the
    # tile; rep replicates each picked row back over that element's seq_len rows.
    sel_np = np.zeros((tb, tm), np.float32)
    sel_np[np.arange(tb), np.arange(tb) * N] = 1.0
    rep_np = np.zeros((tm, tb), np.float32)
    rep_np[np.arange(tm), np.arange(tm) // N] = 1.0
    sel = jnp.asarray(sel_np, bf16)
    rep = jnp.asarray(rep_np, bf16)

    # Expert-stacked weights, K rows ordered exactly like the kernel operand:
    #   layer 0:      [ W0 (E*lzc rows) ; b0 (E rows) ]
    #   layers >= 1:  [ W_h (E*hidden) ; W_zc (E*lzc) ; b (E) ]
    stacked = []
    for li, (w, bvec) in enumerate(dec):
        _, fi, fo = w.shape
        if li == 0:
            ws = jnp.concatenate([w.reshape(E * fi, fo), bvec], axis=0)
        else:
            w_h = w[:, lzc:, :].reshape(E * (fi - lzc), fo)
            w_zc = w[:, :lzc, :].reshape(E * lzc, fo)
            ws = jnp.concatenate([w_h, w_zc, bvec], axis=0)
        stacked.append(ws.astype(bf16))

    gate_arrays = [g1w.astype(bf16), g1b, g2w.astype(bf16), g2b, g3w.astype(bf16), g3b]
    inputs = [zc, sel, rep] + gate_arrays + stacked

    def call(single_buffer, repack):
        def const_spec(arr):
            # Constant-index blocks are fetched once; single-buffer them so they do not pay
            # the default 2x VMEM footprint (matters at production sizes, esp. v7x's 64 MiB).
            if single_buffer:
                return pl.BlockSpec(arr.shape, lambda i: (0, 0),
                                    pipeline_mode=pl.Buffered(1))
            return pl.BlockSpec(arr.shape, lambda i: (0, 0))

        in_specs = [pl.BlockSpec((tm, lzc), lambda i: (i, 0))]
        in_specs += [const_spec(a) for a in inputs[1:]]

        if repack > 1:
            out_shape = jax.ShapeDtypeStruct((rows // repack, repack * out_size), z.dtype)
            out_spec = pl.BlockSpec((tm // repack, repack * out_size), lambda i: (i, 0))
        else:
            out_shape = jax.ShapeDtypeStruct((rows, out_size), z.dtype)
            out_spec = pl.BlockSpec((tm, out_size), lambda i: (i, 0))

        kernel = functools.partial(_mixed_decoder_kernel, E, num_layers, eh, repack)
        return pl.pallas_call(
            kernel,
            out_shape=out_shape,
            grid=grid,
            in_specs=in_specs,
            out_specs=out_spec,
            scratch_shapes=[pltpu.VMEM((tm, eh + kbase), bf16)],
            compiler_params=pltpu.CompilerParams(
                dimension_semantics=("parallel",),
                # TODO(synk): at production sizes, size this to the resident stacked-weight
                # set and, on v7x (64 MiB VMEM), stream per-layer weights (extra "arbitrary"
                # grid axis or pltpu.emit_pipeline) instead of keeping every layer resident.
                vmem_limit_bytes=32 * 1024 * 1024),
        )(*inputs)

    try:
        out_flat = jax.block_until_ready(call(True, out_repack))
    except Exception:
        # Conservative fallback for toolchains without single-buffer pipeline_mode /
        # repack-reshape support: default double buffering, plain (rows, out_size) store.
        out_flat = call(False, 1)

    return out_flat.reshape(B, N, out_size)


def init_params(key, cond_size, latent_size, hidden_size, output_size, num_experts):
    """Deterministic synthetic init (shapes match the torch module's __init__)."""
    input_size = latent_size + cond_size
    inter_size = latent_size + cond_size + hidden_size
    gate_hsize = 64
    keys = jax.random.split(key, 16)

    def lin_w(k, fan_in, fan_out):
        bound = 1.0 / np.sqrt(fan_in)
        return jax.random.uniform(k, (fan_in, fan_out), jnp.float32, -bound, bound)

    def lin_b(k, fan_in, fan_out):
        bound = 1.0 / np.sqrt(fan_in)
        return jax.random.uniform(k, (1, fan_out), jnp.float32, -bound, bound)

    gate = (
        lin_w(keys[0], input_size, gate_hsize), lin_b(keys[1], input_size, gate_hsize),
        lin_w(keys[2], gate_hsize, gate_hsize), lin_b(keys[3], gate_hsize, gate_hsize),
        lin_w(keys[4], gate_hsize, num_experts), lin_b(keys[5], gate_hsize, num_experts),
    )

    layer_dims = [(input_size, hidden_size), (inter_size, hidden_size),
                  (inter_size, hidden_size), (inter_size, hidden_size),
                  (inter_size, output_size)]
    dec = []
    for j, (fi, fo) in enumerate(layer_dims):
        # kaiming_uniform-style bound (gain=sqrt(2), fan_in = fi*fo for torch's 3D tensor)
        bound = float(np.sqrt(2.0) * np.sqrt(3.0 / (fi * fo)))
        w = jax.random.uniform(keys[6 + j], (num_experts, fi, fo), jnp.float32, -bound, bound)
        b = jnp.full((num_experts, fo), 0.01, jnp.float32)   # bias.data.fill_(0.01)
        dec.append((w, b))
    return gate, dec


def reference(z, c, params):
    """Pure-JAX f32 replica of the torch forward (for correctness checking)."""
    (g1w, g1b, g2w, g2b, g3w, g3b), dec = params
    x = jnp.concatenate([z, c], axis=-1)
    h = jax.nn.leaky_relu(x @ g1w + g1b, LEAKY_SLOPE)
    h = jax.nn.leaky_relu(h @ g2w + g2b, LEAKY_SLOPE)
    coeff = jax.nn.softmax(h @ g3w + g3b, axis=-1)            # (B, N, E)
    layer_out = c * 1
    for i, (w, b) in enumerate(dec):
        E, fi, fo = w.shape
        flat_w = w.reshape(E, fi * fo)
        mixed_w = (coeff @ flat_w).reshape(*coeff.shape[:-1], fi, fo)
        inp = jnp.concatenate([z, layer_out], axis=-1) if i == 0 \
            else jnp.concatenate([z, c, layer_out], axis=-1)
        mixed_b = coeff @ b
        out = jnp.einsum('bni,bio->bno', inp, mixed_w[:, 0]) + mixed_b
        layer_out = jax.nn.leaky_relu(out, LEAKY_SLOPE) if i < len(dec) - 1 else out
    return layer_out


if __name__ == "__main__":
    B, N = 16, 8
    cond_size, latent_size = 8, 8
    hidden_size, output_size, num_experts = 32, 16, 4

    key = jax.random.PRNGKey(0)
    kz, kc, kp = jax.random.split(key, 3)
    z = jax.random.normal(kz, (B, N, latent_size), jnp.float32)
    c = jax.random.normal(kc, (B, N, cond_size), jnp.float32)
    params = init_params(kp, cond_size, latent_size, hidden_size, output_size, num_experts)

    # Default block_rows=1024 -> TB=8 (TM=64 rows), grid=(2,) (exercises multi-step grid and
    # the lane-dense repacked store: out_size=16 packs 8 rows into 128 lanes).
    out = mixed_decoder(z, c, params)
    out = jax.block_until_ready(out)

    ref = reference(z, c, params)
    assert out.shape == (B, N, output_size), out.shape
    # bf16 matmul operands (weights / expert-scaled inputs) => slightly relaxed tolerance.
    np.testing.assert_allclose(np.asarray(out), np.asarray(ref), rtol=3e-2, atol=3e-2)
    print("KERNEL_OK")
</pallas_src>

<mosaic_0001>
module attributes {stable_mosaic.version = 11 : i64} {
  func.func @_mixed_decoder_kernel(%arg0: i32, %arg1: memref<64x16xbf16, #tpu.memory_space<vmem>>, %arg2: memref<8x64xbf16, #tpu.memory_space<vmem>>, %arg3: memref<64x8xbf16, #tpu.memory_space<vmem>>, %arg4: memref<16x64xbf16, #tpu.memory_space<vmem>>, %arg5: memref<1x64xf32, #tpu.memory_space<vmem>>, %arg6: memref<64x64xbf16, #tpu.memory_space<vmem>>, %arg7: memref<1x64xf32, #tpu.memory_space<vmem>>, %arg8: memref<64x4xbf16, #tpu.memory_space<vmem>>, %arg9: memref<1x4xf32, #tpu.memory_space<vmem>>, %arg10: memref<68x32xbf16, #tpu.memory_space<vmem>>, %arg11: memref<196x32xbf16, #tpu.memory_space<vmem>>, %arg12: memref<196x32xbf16, #tpu.memory_space<vmem>>, %arg13: memref<196x32xbf16, #tpu.memory_space<vmem>>, %arg14: memref<196x16xbf16, #tpu.memory_space<vmem>>, %arg15: memref<8x128xf32, #tpu.memory_space<vmem>>, %arg16: memref<64x196xbf16, #tpu.memory_space<vmem>>) attributes {dimension_semantics = [#tpu.dimension_semantics<parallel>], iteration_bounds = array<i64: 2>, scalar_prefetch = 0 : i64, scratch_operands = 1 : i64, tpu.core_type = #tpu.core_type<tc>, window_params = [{transform_indices = @transform_0, window_bounds = array<i64: 64, 16>}, {pipeline_mode = #tpu.pipeline_mode<synchronous>, transform_indices = @transform_1, window_bounds = array<i64: 8, 64>}, {pipeline_mode = #tpu.pipeline_mode<synchronous>, transform_indices = @transform_2, window_bounds = array<i64: 64, 8>}, {pipeline_mode = #tpu.pipeline_mode<synchronous>, transform_indices = @transform_3, window_bounds = array<i64: 16, 64>}, {pipeline_mode = #tpu.pipeline_mode<synchronous>, transform_indices = @transform_4, window_bounds = array<i64: 1, 64>}, {pipeline_mode = #tpu.pipeline_mode<synchronous>, transform_indices = @transform_5, window_bounds = array<i64: 64, 64>}, {pipeline_mode = #tpu.pipeline_mode<synchronous>, transform_indices = @transform_6, window_bounds = array<i64: 1, 64>}, {pipeline_mode = #tpu.pipeline_mode<synchronous>, transform_indices = @transform_7, window_bounds = array<i64: 64, 4>}, {pipeline_mode = #tpu.pipeline_mode<synchronous>, transform_indices = @transform_8, window_bounds = array<i64: 1, 4>}, {pipeline_mode = #tpu.pipeline_mode<synchronous>, transform_indices = @transform_9, window_bounds = array<i64: 68, 32>}, {pipeline_mode = #tpu.pipeline_mode<synchronous>, transform_indices = @transform_10, window_bounds = array<i64: 196, 32>}, {pipeline_mode = #tpu.pipeline_mode<synchronous>, transform_indices = @transform_11, window_bounds = array<i64: 196, 32>}, {pipeline_mode = #tpu.pipeline_mode<synchronous>, transform_indices = @transform_12, window_bounds = array<i64: 196, 32>}, {pipeline_mode = #tpu.pipeline_mode<synchronous>, transform_indices = @transform_13, window_bounds = array<i64: 196, 16>}, {transform_indices = @transform_14, window_bounds = array<i64: 8, 128>}]} {
    %c0 = arith.constant 0 : index
    %c0_0 = arith.constant 0 : index
    %0 = vector.load %arg1[%c0, %c0_0] : memref<64x16xbf16, #tpu.memory_space<vmem>>, vector<64x16xbf16>
    %c0_1 = arith.constant 0 : index
    %c0_2 = arith.constant 0 : index
    %1 = vector.load %arg4[%c0_1, %c0_2] : memref<16x64xbf16, #tpu.memory_space<vmem>>, vector<16x64xbf16>
    %cst = arith.constant dense<0.000000e+00> : vector<64x64xf32>
    %2 = tpu.matmul %0, %1, %cst {dimension_numbers = #tpu.dot_dimension_numbers<[1], [0], [0], [1], [0, 0, 1, 1], [], []>} : vector<64x16xbf16>, vector<16x64xbf16>, vector<64x64xf32> -> vector<64x64xf32>
    %c0_3 = arith.constant 0 : index
    %c0_4 = arith.constant 0 : index
    %3 = vector.load %arg5[%c0_3, %c0_4] : memref<1x64xf32, #tpu.memory_space<vmem>>, vector<1x64xf32>
    %4 = vector.broadcast %3 : vector<1x64xf32> to vector<64x64xf32>
    %5 = arith.addf %2, %4 : vector<64x64xf32>
    %cst_5 = arith.constant 0.000000e+00 : f32
    %6 = vector.broadcast %cst_5 : f32 to vector<64x64xf32>
    %7 = arith.cmpf oge, %5, %6 : vector<64x64xf32>
    %cst_6 = arith.constant 0.00999999977 : f32
    %8 = vector.broadcast %cst_6 : f32 to vector<64x64xf32>
    %9 = arith.mulf %8, %5 : vector<64x64xf32>
    %10 = arith.select %7, %5, %9 : vector<64x64xi1>, vector<64x64xf32>
    %11 = arith.truncf %10 : vector<64x64xf32> to vector<64x64xbf16>
    %c0_7 = arith.constant 0 : index
    %c0_8 = arith.constant 0 : index
    %12 = vector.load %arg6[%c0_7, %c0_8] : memref<64x64xbf16, #tpu.memory_space<vmem>>, vector<64x64xbf16>
    %cst_9 = arith.constant dense<0.000000e+00> : vector<64x64xf32>
    %13 = tpu.matmul %11, %12, %cst_9 {dimension_numbers = #tpu.dot_dimension_numbers<[1], [0], [0], [1], [0, 0, 1, 1], [], []>} : vector<64x64xbf16>, vector<64x64xbf16>, vector<64x64xf32> -> vector<64x64xf32>
    %c0_10 = arith.constant 0 : index
    %c0_11 = arith.constant 0 : index
    %14 = vector.load %arg7[%c0_10, %c0_11] : memref<1x64xf32, #tpu.memory_space<vmem>>, vector<1x64xf32>
    %15 = vector.broadcast %14 : vector<1x64xf32> to vector<64x64xf32>
    %16 = arith.addf %13, %15 : vector<64x64xf32>
    %cst_12 = arith.constant 0.000000e+00 : f32
    %17 = vector.broadcast %cst_12 : f32 to vector<64x64xf32>
    %18 = arith.cmpf oge, %16, %17 : vector<64x64xf32>
    %cst_13 = arith.constant 0.00999999977 : f32
    %19 = vector.broadcast %cst_13 : f32 to vector<64x64xf32>
    %20 = arith.mulf %19, %16 : vector<64x64xf32>
    %21 = arith.select %18, %16, %20 : vector<64x64xi1>, vector<64x64xf32>
    %22 = arith.truncf %21 : vector<64x64xf32> to vector<64x64xbf16>
    %c0_14 = arith.constant 0 : index
    %c0_15 = arith.constant 0 : index
    %23 = vector.load %arg8[%c0_14, %c0_15] : memref<64x4xbf16, #tpu.memory_space<vmem>>, vector<64x4xbf16>
    %cst_16 = arith.constant dense<0.000000e+00> : vector<64x4xf32>
    %24 = tpu.matmul %22, %23, %cst_16 {dimension_numbers = #tpu.dot_dimension_numbers<[1], [0], [0], [1], [0, 0, 1, 1], [], []>} : vector<64x64xbf16>, vector<64x4xbf16>, vector<64x4xf32> -> vector<64x4xf32>
    %c0_17 = arith.constant 0 : index
    %c0_18 = arith.constant 0 : index
    %25 = vector.load %arg9[%c0_17, %c0_18] : memref<1x4xf32, #tpu.memory_space<vmem>>, vector<1x4xf32>
    %26 = vector.broadcast %25 : vector<1x4xf32> to vector<64x4xf32>
    %27 = arith.addf %24, %26 : vector<64x4xf32>
    %cst_19 = arith.constant dense<0xFF800000> : vector<64xf32>
    %28 = vector.multi_reduction <maximumf>, %27, %cst_19 [1] : vector<64x4xf32> to vector<64xf32>
    %29 = vector.shape_cast %28 : vector<64xf32> to vector<64x1xf32>
    %30 = vector.broadcast %29 : vector<64x1xf32> to vector<64x4xf32>
    %31 = arith.subf %27, %30 : vector<64x4xf32>
    %32 = math.exp %31 : vector<64x4xf32>
    %cst_20 = arith.constant dense<0.000000e+00> : vector<64xf32>
    %33 = vector.multi_reduction <add>, %32, %cst_20 [1] : vector<64x4xf32> to vector<64xf32>
    %34 = vector.shape_cast %33 : vector<64xf32> to vector<64x1xf32>
    %35 = vector.broadcast %34 : vector<64x1xf32> to vector<64x4xf32>
    %36 = arith.divf %32, %35 : vector<64x4xf32>
    %37 = arith.truncf %36 : vector<64x4xf32> to vector<64x4xbf16>
    %c0_21 = arith.constant 0 : index
    %c0_22 = arith.constant 0 : index
    %38 = vector.load %arg2[%c0_21, %c0_22] : memref<8x64xbf16, #tpu.memory_space<vmem>>, vector<8x64xbf16>
    %cst_23 = arith.constant dense<0.000000e+00> : vector<8x4xf32>
    %39 = tpu.matmul %38, %37, %cst_23 {dimension_numbers = #tpu.dot_dimension_numbers<[1], [0], [0], [1], [0, 0, 1, 1], [], []>} : vector<8x64xbf16>, vector<64x4xbf16>, vector<8x4xf32> -> vector<8x4xf32>
    %c0_24 = arith.constant 0 : index
    %c0_25 = arith.constant 0 : index
    %40 = vector.load %arg3[%c0_24, %c0_25] : memref<64x8xbf16, #tpu.memory_space<vmem>>, vector<64x8xbf16>
    %41 = arith.truncf %39 : vector<8x4xf32> to vector<8x4xbf16>
    %cst_26 = arith.constant dense<0.000000e+00> : vector<64x4xf32>
    %42 = tpu.matmul %40, %41, %cst_26 {dimension_numbers = #tpu.dot_dimension_numbers<[1], [0], [0], [1], [0, 0, 1, 1], [], []>} : vector<64x8xbf16>, vector<8x4xbf16>, vector<64x4xf32> -> vector<64x4xf32>
    %43 = arith.extf %0 : vector<64x16xbf16> to vector<64x16xf32>
    %44 = vector.extract_strided_slice %42 {offsets = [0, 0], sizes = [64, 1], strides = [1, 1]} : vector<64x4xf32> to vector<64x1xf32>
    %45 = vector.broadcast %44 : vector<64x1xf32> to vector<64x16xf32>
    %46 = arith.mulf %45, %43 : vector<64x16xf32>
    %47 = arith.truncf %46 : vector<64x16xf32> to vector<64x16xbf16>
    %c0_27 = arith.constant 0 : index
    %c128 = arith.constant 128 : index
    %48 = vector.load %arg16[%c0_27, %c128] : memref<64x196xbf16, #tpu.memory_space<vmem>>, vector<64x16xbf16>
    tpu.vector_store %arg16[%c0_27, %c128], %47 {strides = array<i32>} : memref<64x196xbf16, #tpu.memory_space<vmem>>, vector<64x16xbf16>,
    %49 = vector.extract_strided_slice %42 {offsets = [0, 1], sizes = [64, 1], strides = [1, 1]} : vector<64x4xf32> to vector<64x1xf32>
    %50 = vector.broadcast %49 : vector<64x1xf32> to vector<64x16xf32>
    %51 = arith.mulf %50, %43 : vector<64x16xf32>
    %52 = arith.truncf %51 : vector<64x16xf32> to vector<64x16xbf16>
    %c0_28 = arith.constant 0 : index
    %c144 = arith.constant 144 : index
    %53 = vector.load %arg16[%c0_28, %c144] : memref<64x196xbf16, #tpu.memory_space<vmem>>, vector<64x16xbf16>
    tpu.vector_store %arg16[%c0_28, %c144], %52 {strides = array<i32>} : memref<64x196xbf16, #tpu.memory_space<vmem>>, vector<64x16xbf16>,
    %54 = vector.extract_strided_slice %42 {offsets = [0, 2], sizes = [64, 1], strides = [1, 1]} : vector<64x4xf32> to vector<64x1xf32>
    %55 = vector.broadcast %54 : vector<64x1xf32> to vector<64x16xf32>
    %56 = arith.mulf %55, %43 : vector<64x16xf32>
    %57 = arith.truncf %56 : vector<64x16xf32> to vector<64x16xbf16>
    %c0_29 = arith.constant 0 : index
    %c160 = arith.constant 160 : index
    %58 = vector.load %arg16[%c0_29, %c160] : memref<64x196xbf16, #tpu.memory_space<vmem>>, vector<64x16xbf16>
    tpu.vector_store %arg16[%c0_29, %c160], %57 {strides = array<i32>} : memref<64x196xbf16, #tpu.memory_space<vmem>>, vector<64x16xbf16>,
    %59 = vector.extract_strided_slice %42 {offsets = [0, 3], sizes = [64, 1], strides = [1, 1]} : vector<64x4xf32> to vector<64x1xf32>
    %60 = vector.broadcast %59 : vector<64x1xf32> to vector<64x16xf32>
    %61 = arith.mulf %60, %43 : vector<64x16xf32>
    %62 = arith.truncf %61 : vector<64x16xf32> to vector<64x16xbf16>
    %c0_30 = arith.constant 0 : index
    %c176 = arith.constant 176 : index
    %63 = vector.load %arg16[%c0_30, %c176] : memref<64x196xbf16, #tpu.memory_space<vmem>>, vector<64x16xbf16>
    tpu.vector_store %arg16[%c0_30, %c176], %62 {strides = array<i32>} : memref<64x196xbf16, #tpu.memory_space<vmem>>, vector<64x16xbf16>,
    %c0_31 = arith.constant 0 : index
    %c192 = arith.constant 192 : index
    %64 = vector.load %arg16[%c0_31, %c192] : memref<64x196xbf16, #tpu.memory_space<vmem>>, vector<64x4xbf16>
    tpu.vector_store %arg16[%c0_31, %c192], %37 {strides = array<i32>} : memref<64x196xbf16, #tpu.memory_space<vmem>>, vector<64x4xbf16>,
    %c0_32 = arith.constant 0 : index
    %c128_33 = arith.constant 128 : index
    %65 = vector.load %arg16[%c0_32, %c128_33] : memref<64x196xbf16, #tpu.memory_space<vmem>>, vector<64x68xbf16>
    %c0_34 = arith.constant 0 : index
    %c0_35 = arith.constant 0 : index
    %66 = vector.load %arg10[%c0_34, %c0_35] : memref<68x32xbf16, #tpu.memory_space<vmem>>, vector<68x32xbf16>
    %cst_36 = arith.constant dense<0.000000e+00> : vector<64x32xf32>
    %67 = tpu.matmul %65, %66, %cst_36 {dimension_numbers = #tpu.dot_dimension_numbers<[1], [0], [0], [1], [0, 0, 1, 1], [], []>} : vector<64x68xbf16>, vector<68x32xbf16>, vector<64x32xf32> -> vector<64x32xf32>
    %cst_37 = arith.constant 0.000000e+00 : f32
    %68 = vector.broadcast %cst_37 : f32 to vector<64x32xf32>
    %69 = arith.cmpf oge, %67, %68 : vector<64x32xf32>
    %cst_38 = arith.constant 0.00999999977 : f32
    %70 = vector.broadcast %cst_38 : f32 to vector<64x32xf32>
    %71 = arith.mulf %70, %67 : vector<64x32xf32>
    %72 = arith.select %69, %67, %71 : vector<64x32xi1>, vector<64x32xf32>
    %73 = vector.extract_strided_slice %42 {offsets = [0, 0], sizes = [64, 1], strides = [1, 1]} : vector<64x4xf32> to vector<64x1xf32>
    %74 = vector.broadcast %73 : vector<64x1xf32> to vector<64x32xf32>
    %75 = arith.mulf %74, %72 : vector<64x32xf32>
    %76 = arith.truncf %75 : vector<64x32xf32> to vector<64x32xbf16>
    %c0_39 = arith.constant 0 : index
    %c0_40 = arith.constant 0 : index
    %77 = vector.load %arg16[%c0_39, %c0_40] : memref<64x196xbf16, #tpu.memory_space<vmem>>, vector<64x32xbf16>
    tpu.vector_store %arg16[%c0_39, %c0_40], %76 {strides = array<i32>} : memref<64x196xbf16, #tpu.memory_space<vmem>>, vector<64x32xbf16>,
    %78 = vector.extract_strided_slice %42 {offsets = [0, 1], sizes = [64, 1], strides = [1, 1]} : vector<64x4xf32> to vector<64x1xf32>
    %79 = vector.broadcast %78 : vector<64x1xf32> to vector<64x32xf32>
    %80 = arith.mulf %79, %72 : vector<64x32xf32>
    %81 = arith.truncf %80 : vector<64x32xf32> to vector<64x32xbf16>
    %c0_41 = arith.constant 0 : index
    %c32 = arith.constant 32 : index
    %82 = vector.load %arg16[%c0_41, %c32] : memref<64x196xbf16, #tpu.memory_space<vmem>>, vector<64x32xbf16>
    tpu.vector_store %arg16[%c0_41, %c32], %81 {strides = array<i32>} : memref<64x196xbf16, #tpu.memory_space<vmem>>, vector<64x32xbf16>,
    %83 = vector.extract_strided_slice %42 {offsets = [0, 2], sizes = [64, 1], strides = [1, 1]} : vector<64x4xf32> to vector<64x1xf32>
    %84 = vector.broadcast %83 : vector<64x1xf32> to vector<64x32xf32>
    %85 = arith.mulf %84, %72 : vector<64x32xf32>
    %86 = arith.truncf %85 : vector<64x32xf32> to vector<64x32xbf16>
    %c0_42 = arith.constant 0 : index
    %c64 = arith.constant 64 : index
    %87 = vector.load %arg16[%c0_42, %c64] : memref<64x196xbf16, #tpu.memory_space<vmem>>, vector<64x32xbf16>
    tpu.vector_store %arg16[%c0_42, %c64], %86 {strides = array<i32>} : memref<64x196xbf16, #tpu.memory_space<vmem>>, vector<64x32xbf16>,
    %88 = vector.extract_strided_slice %42 {offsets = [0, 3], sizes = [64, 1], strides = [1, 1]} : vector<64x4xf32> to vector<64x1xf32>
    %89 = vector.broadcast %88 : vector<64x1xf32> to vector<64x32xf32>
    %90 = arith.mulf %89, %72 : vector<64x32xf32>
    %91 = arith.truncf %90 : vector<64x32xf32> to vector<64x32xbf16>
    %c0_43 = arith.constant 0 : index
    %c96 = arith.constant 96 : index
    %92 = vector.load %arg16[%c0_43, %c96] : memref<64x196xbf16, #tpu.memory_space<vmem>>, vector<64x32xbf16>
    tpu.vector_store %arg16[%c0_43, %c96], %91 {strides = array<i32>} : memref<64x196xbf16, #tpu.memory_space<vmem>>, vector<64x32xbf16>,
    %c0_44 = arith.constant 0 : index
    %c0_45 = arith.constant 0 : index
    %93 = vector.load %arg16[%c0_44, %c0_45] : memref<64x196xbf16, #tpu.memory_space<vmem>>, vector<64x196xbf16>
    %c0_46 = arith.constant 0 : index
    %c0_47 = arith.constant 0 : index
    %94 = vector.load %arg11[%c0_46, %c0_47] : memref<196x32xbf16, #tpu.memory_space<vmem>>, vector<196x32xbf16>
    %cst_48 = arith.constant dense<0.000000e+00> : vector<64x32xf32>
    %95 = tpu.matmul %93, %94, %cst_48 {dimension_numbers = #tpu.dot_dimension_numbers<[1], [0], [0], [1], [0, 0, 1, 1], [], []>} : vector<64x196xbf16>, vector<196x32xbf16>, vector<64x32xf32> -> vector<64x32xf32>
    %cst_49 = arith.constant 0.000000e+00 : f32
    %96 = vector.broadcast %cst_49 : f32 to vector<64x32xf32>
    %97 = arith.cmpf oge, %95, %96 : vector<64x32xf32>
    %cst_50 = arith.constant 0.00999999977 : f32
    %98 = vector.broadcast %cst_50 : f32 to vector<64x32xf32>
    %99 = arith.mulf %98, %95 : vector<64x32xf32>
    %100 = arith.select %97, %95, %99 : vector<64x32xi1>, vector<64x32xf32>
    %101 = vector.extract_strided_slice %42 {offsets = [0, 0], sizes = [64, 1], strides = [1, 1]} : vector<64x4xf32> to vector<64x1xf32>
    %102 = vector.broadcast %101 : vector<64x1xf32> to vector<64x32xf32>
    %103 = arith.mulf %102, %100 : vector<64x32xf32>
    %104 = arith.truncf %103 : vector<64x32xf32> to vector<64x32xbf16>
    %c0_51 = arith.constant 0 : index
    %c0_52 = arith.constant 0 : index
    %105 = vector.load %arg16[%c0_51, %c0_52] : memref<64x196xbf16, #tpu.memory_space<vmem>>, vector<64x32xbf16>
    tpu.vector_store %arg16[%c0_51, %c0_52], %104 {strides = array<i32>} : memref<64x196xbf16, #tpu.memory_space<vmem>>, vector<64x32xbf16>,
    %106 = vector.extract_strided_slice %42 {offsets = [0, 1], sizes = [64, 1], strides = [1, 1]} : vector<64x4xf32> to vector<64x1xf32>
    %107 = vector.broadcast %106 : vector<64x1xf32> to vector<64x32xf32>
    %108 = arith.mulf %107, %100 : vector<64x32xf32>
    %109 = arith.truncf %108 : vector<64x32xf32> to vector<64x32xbf16>
    %c0_53 = arith.constant 0 : index
    %c32_54 = arith.constant 32 : index
    %110 = vector.load %arg16[%c0_53, %c32_54] : memref<64x196xbf16, #tpu.memory_space<vmem>>, vector<64x32xbf16>
    tpu.vector_store %arg16[%c0_53, %c32_54], %109 {strides = array<i32>} : memref<64x196xbf16, #tpu.memory_space<vmem>>, vector<64x32xbf16>,
    %111 = vector.extract_strided_slice %42 {offsets = [0, 2], sizes = [64, 1], strides = [1, 1]} : vector<64x4xf32> to vector<64x1xf32>
    %112 = vector.broadcast %111 : vector<64x1xf32> to vector<64x32xf32>
    %113 = arith.mulf %112, %100 : vector<64x32xf32>
    %114 = arith.truncf %113 : vector<64x32xf32> to vector<64x32xbf16>
    %c0_55 = arith.constant 0 : index
    %c64_56 = arith.constant 64 : index
    %115 = vector.load %arg16[%c0_55, %c64_56] : memref<64x196xbf16, #tpu.memory_space<vmem>>, vector<64x32xbf16>
    tpu.vector_store %arg16[%c0_55, %c64_56], %114 {strides = array<i32>} : memref<64x196xbf16, #tpu.memory_space<vmem>>, vector<64x32xbf16>,
    %116 = vector.extract_strided_slice %42 {offsets = [0, 3], sizes = [64, 1], strides = [1, 1]} : vector<64x4xf32> to vector<64x1xf32>
    %117 = vector.broadcast %116 : vector<64x1xf32> to vector<64x32xf32>
    %118 = arith.mulf %117, %100 : vector<64x32xf32>
    %119 = arith.truncf %118 : vector<64x32xf32> to vector<64x32xbf16>
    %c0_57 = arith.constant 0 : index
    %c96_58 = arith.constant 96 : index
    %120 = vector.load %arg16[%c0_57, %c96_58] : memref<64x196xbf16, #tpu.memory_space<vmem>>, vector<64x32xbf16>
    tpu.vector_store %arg16[%c0_57, %c96_58], %119 {strides = array<i32>} : memref<64x196xbf16, #tpu.memory_space<vmem>>, vector<64x32xbf16>,
    %c0_59 = arith.constant 0 : index
    %c0_60 = arith.constant 0 : index
    %121 = vector.load %arg16[%c0_59, %c0_60] : memref<64x196xbf16, #tpu.memory_space<vmem>>, vector<64x196xbf16>
    %c0_61 = arith.constant 0 : index
    %c0_62 = arith.constant 0 : index
    %122 = vector.load %arg12[%c0_61, %c0_62] : memref<196x32xbf16, #tpu.memory_space<vmem>>, vector<196x32xbf16>
    %cst_63 = arith.constant dense<0.000000e+00> : vector<64x32xf32>
    %123 = tpu.matmul %121, %122, %cst_63 {dimension_numbers = #tpu.dot_dimension_numbers<[1], [0], [0], [1], [0, 0, 1, 1], [], []>} : vector<64x196xbf16>, vector<196x32xbf16>, vector<64x32xf32> -> vector<64x32xf32>
    %cst_64 = arith.constant 0.000000e+00 : f32
    %124 = vector.broadcast %cst_64 : f32 to vector<64x32xf32>
    %125 = arith.cmpf oge, %123, %124 : vector<64x32xf32>
    %cst_65 = arith.constant 0.00999999977 : f32
    %126 = vector.broadcast %cst_65 : f32 to vector<64x32xf32>
    %127 = arith.mulf %126, %123 : vector<64x32xf32>
    %128 = arith.select %125, %123, %127 : vector<64x32xi1>, vector<64x32xf32>
    %129 = vector.extract_strided_slice %42 {offsets = [0, 0], sizes = [64, 1], strides = [1, 1]} : vector<64x4xf32> to vector<64x1xf32>
    %130 = vector.broadcast %129 : vector<64x1xf32> to vector<64x32xf32>
    %131 = arith.mulf %130, %128 : vector<64x32xf32>
    %132 = arith.truncf %131 : vector<64x32xf32> to vector<64x32xbf16>
    %c0_66 = arith.constant 0 : index
    %c0_67 = arith.constant 0 : index
    %133 = vector.load %arg16[%c0_66, %c0_67] : memref<64x196xbf16, #tpu.memory_space<vmem>>, vector<64x32xbf16>
    tpu.vector_store %arg16[%c0_66, %c0_67], %132 {strides = array<i32>} : memref<64x196xbf16, #tpu.memory_space<vmem>>, vector<64x32xbf16>,
    %134 = vector.extract_strided_slice %42 {offsets = [0, 1], sizes = [64, 1], strides = [1, 1]} : vector<64x4xf32> to vector<64x1xf32>
    %135 = vector.broadcast %134 : vector<64x1xf32> to vector<64x32xf32>
    %136 = arith.mulf %135, %128 : vector<64x32xf32>
    %137 = arith.truncf %136 : vector<64x32xf32> to vector<64x32xbf16>
    %c0_68 = arith.constant 0 : index
    %c32_69 = arith.constant 32 : index
    %138 = vector.load %arg16[%c0_68, %c32_69] : memref<64x196xbf16, #tpu.memory_space<vmem>>, vector<64x32xbf16>
    tpu.vector_store %arg16[%c0_68, %c32_69], %137 {strides = array<i32>} : memref<64x196xbf16, #tpu.memory_space<vmem>>, vector<64x32xbf16>,
    %139 = vector.extract_strided_slice %42 {offsets = [0, 2], sizes = [64, 1], strides = [1, 1]} : vector<64x4xf32> to vector<64x1xf32>
    %140 = vector.broadcast %139 : vector<64x1xf32> to vector<64x32xf32>
    %141 = arith.mulf %140, %128 : vector<64x32xf32>
    %142 = arith.truncf %141 : vector<64x32xf32> to vector<64x32xbf16>
    %c0_70 = arith.constant 0 : index
    %c64_71 = arith.constant 64 : index
    %143 = vector.load %arg16[%c0_70, %c64_71] : memref<64x196xbf16, #tpu.memory_space<vmem>>, vector<64x32xbf16>
    tpu.vector_store %arg16[%c0_70, %c64_71], %142 {strides = array<i32>} : memref<64x196xbf16, #tpu.memory_space<vmem>>, vector<64x32xbf16>,
    %144 = vector.extract_strided_slice %42 {offsets = [0, 3], sizes = [64, 1], strides = [1, 1]} : vector<64x4xf32> to vector<64x1xf32>
    %145 = vector.broadcast %144 : vector<64x1xf32> to vector<64x32xf32>
    %146 = arith.mulf %145, %128 : vector<64x32xf32>
    %147 = arith.truncf %146 : vector<64x32xf32> to vector<64x32xbf16>
    %c0_72 = arith.constant 0 : index
    %c96_73 = arith.constant 96 : index
    %148 = vector.load %arg16[%c0_72, %c96_73] : memref<64x196xbf16, #tpu.memory_space<vmem>>, vector<64x32xbf16>
    tpu.vector_store %arg16[%c0_72, %c96_73], %147 {strides = array<i32>} : memref<64x196xbf16, #tpu.memory_space<vmem>>, vector<64x32xbf16>,
    %c0_74 = arith.constant 0 : index
    %c0_75 = arith.constant 0 : index
    %149 = vector.load %arg16[%c0_74, %c0_75] : memref<64x196xbf16, #tpu.memory_space<vmem>>, vector<64x196xbf16>
    %c0_76 = arith.constant 0 : index
    %c0_77 = arith.constant 0 : index
    %150 = vector.load %arg13[%c0_76, %c0_77] : memref<196x32xbf16, #tpu.memory_space<vmem>>, vector<196x32xbf16>
    %cst_78 = arith.constant dense<0.000000e+00> : vector<64x32xf32>
    %151 = tpu.matmul %149, %150, %cst_78 {dimension_numbers = #tpu.dot_dimension_numbers<[1], [0], [0], [1], [0, 0, 1, 1], [], []>} : vector<64x196xbf16>, vector<196x32xbf16>, vector<64x32xf32> -> vector<64x32xf32>
    %cst_79 = arith.constant 0.000000e+00 : f32
    %152 = vector.broadcast %cst_79 : f32 to vector<64x32xf32>
    %153 = arith.cmpf oge, %151, %152 : vector<64x32xf32>
    %cst_80 = arith.constant 0.00999999977 : f32
    %154 = vector.broadcast %cst_80 : f32 to vector<64x32xf32>
    %155 = arith.mulf %154, %151 : vector<64x32xf32>
    %156 = arith.select %153, %151, %155 : vector<64x32xi1>, vector<64x32xf32>
    %157 = vector.extract_strided_slice %42 {offsets = [0, 0], sizes = [64, 1], strides = [1, 1]} : vector<64x4xf32> to vector<64x1xf32>
    %158 = vector.broadcast %157 : vector<64x1xf32> to vector<64x32xf32>
    %159 = arith.mulf %158, %156 : vector<64x32xf32>
    %160 = arith.truncf %159 : vector<64x32xf32> to vector<64x32xbf16>
    %c0_81 = arith.constant 0 : index
    %c0_82 = arith.constant 0 : index
    %161 = vector.load %arg16[%c0_81, %c0_82] : memref<64x196xbf16, #tpu.memory_space<vmem>>, vector<64x32xbf16>
    tpu.vector_store %arg16[%c0_81, %c0_82], %160 {strides = array<i32>} : memref<64x196xbf16, #tpu.memory_space<vmem>>, vector<64x32xbf16>,
    %162 = vector.extract_strided_slice %42 {offsets = [0, 1], sizes = [64, 1], strides = [1, 1]} : vector<64x4xf32> to vector<64x1xf32>
    %163 = vector.broadcast %162 : vector<64x1xf32> to vector<64x32xf32>
    %164 = arith.mulf %163, %156 : vector<64x32xf32>
    %165 = arith.truncf %164 : vector<64x32xf32> to vector<64x32xbf16>
    %c0_83 = arith.constant 0 : index
    %c32_84 = arith.constant 32 : index
    %166 = vector.load %arg16[%c0_83, %c32_84] : memref<64x196xbf16, #tpu.memory_space<vmem>>, vector<64x32xbf16>
    tpu.vector_store %arg16[%c0_83, %c32_84], %165 {strides = array<i32>} : memref<64x196xbf16, #tpu.memory_space<vmem>>, vector<64x32xbf16>,
    %167 = vector.extract_strided_slice %42 {offsets = [0, 2], sizes = [64, 1], strides = [1, 1]} : vector<64x4xf32> to vector<64x1xf32>
    %168 = vector.broadcast %167 : vector<64x1xf32> to vector<64x32xf32>
    %169 = arith.mulf %168, %156 : vector<64x32xf32>
    %170 = arith.truncf %169 : vector<64x32xf32> to vector<64x32xbf16>
    %c0_85 = arith.constant 0 : index
    %c64_86 = arith.constant 64 : index
    %171 = vector.load %arg16[%c0_85, %c64_86] : memref<64x196xbf16, #tpu.memory_space<vmem>>, vector<64x32xbf16>
    tpu.vector_store %arg16[%c0_85, %c64_86], %170 {strides = array<i32>} : memref<64x196xbf16, #tpu.memory_space<vmem>>, vector<64x32xbf16>,
    %172 = vector.extract_strided_slice %42 {offsets = [0, 3], sizes = [64, 1], strides = [1, 1]} : vector<64x4xf32> to vector<64x1xf32>
    %173 = vector.broadcast %172 : vector<64x1xf32> to vector<64x32xf32>
    %174 = arith.mulf %173, %156 : vector<64x32xf32>
    %175 = arith.truncf %174 : vector<64x32xf32> to vector<64x32xbf16>
    %c0_87 = arith.constant 0 : index
    %c96_88 = arith.constant 96 : index
    %176 = vector.load %arg16[%c0_87, %c96_88] : memref<64x196xbf16, #tpu.memory_space<vmem>>, vector<64x32xbf16>
    tpu.vector_store %arg16[%c0_87, %c96_88], %175 {strides = array<i32>} : memref<64x196xbf16, #tpu.memory_space<vmem>>, vector<64x32xbf16>,
    %c0_89 = arith.constant 0 : index
    %c0_90 = arith.constant 0 : index
    %177 = vector.load %arg16[%c0_89, %c0_90] : memref<64x196xbf16, #tpu.memory_space<vmem>>, vector<64x196xbf16>
    %c0_91 = arith.constant 0 : index
    %c0_92 = arith.constant 0 : index
    %178 = vector.load %arg14[%c0_91, %c0_92] : memref<196x16xbf16, #tpu.memory_space<vmem>>, vector<196x16xbf16>
    %cst_93 = arith.constant dense<0.000000e+00> : vector<64x16xf32>
    %179 = tpu.matmul %177, %178, %cst_93 {dimension_numbers = #tpu.dot_dimension_numbers<[1], [0], [0], [1], [0, 0, 1, 1], [], []>} : vector<64x196xbf16>, vector<196x16xbf16>, vector<64x16xf32> -> vector<64x16xf32>
    %180 = vector.shape_cast %179 : vector<64x16xf32> to vector<8x128xf32>
    %c0_94 = arith.constant 0 : index
    %c0_95 = arith.constant 0 : index
    %181 = vector.load %arg15[%c0_94, %c0_95] : memref<8x128xf32, #tpu.memory_space<vmem>>, vector<8x128xf32>
    tpu.vector_store %arg15[%c0_94, %c0_95], %180 {strides = array<i32>} : memref<8x128xf32, #tpu.memory_space<vmem>>, vector<8x128xf32>,
    return
  }
  func.func @transform_0(%arg0: i32) -> (i32, i32) {
    %c0_i32 = arith.constant 0 : i32
    %c0_i32_0 = arith.constant 0 : i32
    return %arg0, %c0_i32 : i32, i32
  }
  func.func @transform_1(%arg0: i32) -> (i32, i32) {
    %c0_i32 = arith.constant 0 : i32
    %c0_i32_0 = arith.constant 0 : i32
    %c0_i32_1 = arith.constant 0 : i32
    return %c0_i32, %c0_i32_0 : i32, i32
  }
  func.func @transform_2(%arg0: i32) -> (i32, i32) {
    %c0_i32 = arith.constant 0 : i32
    %c0_i32_0 = arith.constant 0 : i32
    %c0_i32_1 = arith.constant 0 : i32
    return %c0_i32, %c0_i32_0 : i32, i32
  }
  func.func @transform_3(%arg0: i32) -> (i32, i32) {
    %c0_i32 = arith.constant 0 : i32
    %c0_i32_0 = arith.constant 0 : i32
    %c0_i32_1 = arith.constant 0 : i32
    return %c0_i32, %c0_i32_0 : i32, i32
  }
  func.func @transform_4(%arg0: i32) -> (i32, i32) {
    %c0_i32 = arith.constant 0 : i32
    %c0_i32_0 = arith.constant 0 : i32
    %c0_i32_1 = arith.constant 0 : i32
    return %c0_i32, %c0_i32_0 : i32, i32
  }
  func.func @transform_5(%arg0: i32) -> (i32, i32) {
    %c0_i32 = arith.constant 0 : i32
    %c0_i32_0 = arith.constant 0 : i32
    %c0_i32_1 = arith.constant 0 : i32
    return %c0_i32, %c0_i32_0 : i32, i32
  }
  func.func @transform_6(%arg0: i32) -> (i32, i32) {
    %c0_i32 = arith.constant 0 : i32
    %c0_i32_0 = arith.constant 0 : i32
    %c0_i32_1 = arith.constant 0 : i32
    return %c0_i32, %c0_i32_0 : i32, i32
  }
  func.func @transform_7(%arg0: i32) -> (i32, i32) {
    %c0_i32 = arith.constant 0 : i32
    %c0_i32_0 = arith.constant 0 : i32
    %c0_i32_1 = arith.constant 0 : i32
    return %c0_i32, %c0_i32_0 : i32, i32
  }
  func.func @transform_8(%arg0: i32) -> (i32, i32) {
    %c0_i32 = arith.constant 0 : i32
    %c0_i32_0 = arith.constant 0 : i32
    %c0_i32_1 = arith.constant 0 : i32
    return %c0_i32, %c0_i32_0 : i32, i32
  }
  func.func @transform_9(%arg0: i32) -> (i32, i32) {
    %c0_i32 = arith.constant 0 : i32
    %c0_i32_0 = arith.constant 0 : i32
    %c0_i32_1 = arith.constant 0 : i32
    return %c0_i32, %c0_i32_0 : i32, i32
  }
  func.func @transform_10(%arg0: i32) -> (i32, i32) {
    %c0_i32 = arith.constant 0 : i32
    %c0_i32_0 = arith.constant 0 : i32
    %c0_i32_1 = arith.constant 0 : i32
    return %c0_i32, %c0_i32_0 : i32, i32
  }
  func.func @transform_11(%arg0: i32) -> (i32, i32) {
    %c0_i32 = arith.constant 0 : i32
    %c0_i32_0 = arith.constant 0 : i32
    %c0_i32_1 = arith.constant 0 : i32
    return %c0_i32, %c0_i32_0 : i32, i32
  }
  func.func @transform_12(%arg0: i32) -> (i32, i32) {
    %c0_i32 = arith.constant 0 : i32
    %c0_i32_0 = arith.constant 0 : i32
    %c0_i32_1 = arith.constant 0 : i32
    return %c0_i32, %c0_i32_0 : i32, i32
  }
  func.func @transform_13(%arg0: i32) -> (i32, i32) {
    %c0_i32 = arith.constant 0 : i32
    %c0_i32_0 = arith.constant 0 : i32
    %c0_i32_1 = arith.constant 0 : i32
    return %c0_i32, %c0_i32_0 : i32, i32
  }
  func.func @transform_14(%arg0: i32) -> (i32, i32) {
    %c0_i32 = arith.constant 0 : i32
    %c0_i32_0 = arith.constant 0 : i32
    return %arg0, %c0_i32 : i32, i32
  }
}

module attributes {stable_mosaic.version = 11 : i64} {
  func.func @_mixed_decoder_kernel(%arg0: i32, %arg1: memref<64x16xbf16, #tpu.memory_space<vmem>>, %arg2: memref<8x64xbf16, #tpu.memory_space<vmem>>, %arg3: memref<64x8xbf16, #tpu.memory_space<vmem>>, %arg4: memref<16x64xbf16, #tpu.memory_space<vmem>>, %arg5: memref<1x64xf32, #tpu.memory_space<vmem>>, %arg6: memref<64x64xbf16, #tpu.memory_space<vmem>>, %arg7: memref<1x64xf32, #tpu.memory_space<vmem>>, %arg8: memref<64x4xbf16, #tpu.memory_space<vmem>>, %arg9: memref<1x4xf32, #tpu.memory_space<vmem>>, %arg10: memref<68x32xbf16, #tpu.memory_space<vmem>>, %arg11: memref<196x32xbf16, #tpu.memory_space<vmem>>, %arg12: memref<196x32xbf16, #tpu.memory_space<vmem>>, %arg13: memref<196x32xbf16, #tpu.memory_space<vmem>>, %arg14: memref<196x16xbf16, #tpu.memory_space<vmem>>, %arg15: memref<64x16xf32, #tpu.memory_space<vmem>>, %arg16: memref<64x196xbf16, #tpu.memory_space<vmem>>) attributes {dimension_semantics = [#tpu.dimension_semantics<parallel>], iteration_bounds = array<i64: 2>, scalar_prefetch = 0 : i64, scratch_operands = 1 : i64, tpu.core_type = #tpu.core_type<tc>, window_params = [{transform_indices = @transform_0, window_bounds = array<i64: 64, 16>}, {pipeline_mode = #tpu.pipeline_mode<synchronous>, transform_indices = @transform_1, window_bounds = array<i64: 8, 64>}, {pipeline_mode = #tpu.pipeline_mode<synchronous>, transform_indices = @transform_2, window_bounds = array<i64: 64, 8>}, {pipeline_mode = #tpu.pipeline_mode<synchronous>, transform_indices = @transform_3, window_bounds = array<i64: 16, 64>}, {pipeline_mode = #tpu.pipeline_mode<synchronous>, transform_indices = @transform_4, window_bounds = array<i64: 1, 64>}, {pipeline_mode = #tpu.pipeline_mode<synchronous>, transform_indices = @transform_5, window_bounds = array<i64: 64, 64>}, {pipeline_mode = #tpu.pipeline_mode<synchronous>, transform_indices = @transform_6, window_bounds = array<i64: 1, 64>}, {pipeline_mode = #tpu.pipeline_mode<synchronous>, transform_indices = @transform_7, window_bounds = array<i64: 64, 4>}, {pipeline_mode = #tpu.pipeline_mode<synchronous>, transform_indices = @transform_8, window_bounds = array<i64: 1, 4>}, {pipeline_mode = #tpu.pipeline_mode<synchronous>, transform_indices = @transform_9, window_bounds = array<i64: 68, 32>}, {pipeline_mode = #tpu.pipeline_mode<synchronous>, transform_indices = @transform_10, window_bounds = array<i64: 196, 32>}, {pipeline_mode = #tpu.pipeline_mode<synchronous>, transform_indices = @transform_11, window_bounds = array<i64: 196, 32>}, {pipeline_mode = #tpu.pipeline_mode<synchronous>, transform_indices = @transform_12, window_bounds = array<i64: 196, 32>}, {pipeline_mode = #tpu.pipeline_mode<synchronous>, transform_indices = @transform_13, window_bounds = array<i64: 196, 16>}, {transform_indices = @transform_14, window_bounds = array<i64: 64, 16>}]} {
    %c0 = arith.constant 0 : index
    %c0_0 = arith.constant 0 : index
    %0 = vector.load %arg1[%c0, %c0_0] : memref<64x16xbf16, #tpu.memory_space<vmem>>, vector<64x16xbf16>
    %c0_1 = arith.constant 0 : index
    %c0_2 = arith.constant 0 : index
    %1 = vector.load %arg4[%c0_1, %c0_2] : memref<16x64xbf16, #tpu.memory_space<vmem>>, vector<16x64xbf16>
    %cst = arith.constant dense<0.000000e+00> : vector<64x64xf32>
    %2 = tpu.matmul %0, %1, %cst {dimension_numbers = #tpu.dot_dimension_numbers<[1], [0], [0], [1], [0, 0, 1, 1], [], []>} : vector<64x16xbf16>, vector<16x64xbf16>, vector<64x64xf32> -> vector<64x64xf32>
    %c0_3 = arith.constant 0 : index
    %c0_4 = arith.constant 0 : index
    %3 = vector.load %arg5[%c0_3, %c0_4] : memref<1x64xf32, #tpu.memory_space<vmem>>, vector<1x64xf32>
    %4 = vector.broadcast %3 : vector<1x64xf32> to vector<64x64xf32>
    %5 = arith.addf %2, %4 : vector<64x64xf32>
    %cst_5 = arith.constant 0.000000e+00 : f32
    %6 = vector.broadcast %cst_5 : f32 to vector<64x64xf32>
    %7 = arith.cmpf oge, %5, %6 : vector<64x64xf32>
    %cst_6 = arith.constant 0.00999999977 : f32
    %8 = vector.broadcast %cst_6 : f32 to vector<64x64xf32>
    %9 = arith.mulf %8, %5 : vector<64x64xf32>
    %10 = arith.select %7, %5, %9 : vector<64x64xi1>, vector<64x64xf32>
    %11 = arith.truncf %10 : vector<64x64xf32> to vector<64x64xbf16>
    %c0_7 = arith.constant 0 : index
    %c0_8 = arith.constant 0 : index
    %12 = vector.load %arg6[%c0_7, %c0_8] : memref<64x64xbf16, #tpu.memory_space<vmem>>, vector<64x64xbf16>
    %cst_9 = arith.constant dense<0.000000e+00> : vector<64x64xf32>
    %13 = tpu.matmul %11, %12, %cst_9 {dimension_numbers = #tpu.dot_dimension_numbers<[1], [0], [0], [1], [0, 0, 1, 1], [], []>} : vector<64x64xbf16>, vector<64x64xbf16>, vector<64x64xf32> -> vector<64x64xf32>
    %c0_10 = arith.constant 0 : index
    %c0_11 = arith.constant 0 : index
    %14 = vector.load %arg7[%c0_10, %c0_11] : memref<1x64xf32, #tpu.memory_space<vmem>>, vector<1x64xf32>
    %15 = vector.broadcast %14 : vector<1x64xf32> to vector<64x64xf32>
    %16 = arith.addf %13, %15 : vector<64x64xf32>
    %cst_12 = arith.constant 0.000000e+00 : f32
    %17 = vector.broadcast %cst_12 : f32 to vector<64x64xf32>
    %18 = arith.cmpf oge, %16, %17 : vector<64x64xf32>
    %cst_13 = arith.constant 0.00999999977 : f32
    %19 = vector.broadcast %cst_13 : f32 to vector<64x64xf32>
    %20 = arith.mulf %19, %16 : vector<64x64xf32>
    %21 = arith.select %18, %16, %20 : vector<64x64xi1>, vector<64x64xf32>
    %22 = arith.truncf %21 : vector<64x64xf32> to vector<64x64xbf16>
    %c0_14 = arith.constant 0 : index
    %c0_15 = arith.constant 0 : index
    %23 = vector.load %arg8[%c0_14, %c0_15] : memref<64x4xbf16, #tpu.memory_space<vmem>>, vector<64x4xbf16>
    %cst_16 = arith.constant dense<0.000000e+00> : vector<64x4xf32>
    %24 = tpu.matmul %22, %23, %cst_16 {dimension_numbers = #tpu.dot_dimension_numbers<[1], [0], [0], [1], [0, 0, 1, 1], [], []>} : vector<64x64xbf16>, vector<64x4xbf16>, vector<64x4xf32> -> vector<64x4xf32>
    %c0_17 = arith.constant 0 : index
    %c0_18 = arith.constant 0 : index
    %25 = vector.load %arg9[%c0_17, %c0_18] : memref<1x4xf32, #tpu.memory_space<vmem>>, vector<1x4xf32>
    %26 = vector.broadcast %25 : vector<1x4xf32> to vector<64x4xf32>
    %27 = arith.addf %24, %26 : vector<64x4xf32>
    %cst_19 = arith.constant dense<0xFF800000> : vector<64xf32>
    %28 = vector.multi_reduction <maximumf>, %27, %cst_19 [1] : vector<64x4xf32> to vector<64xf32>
    %29 = vector.shape_cast %28 : vector<64xf32> to vector<64x1xf32>
    %30 = vector.broadcast %29 : vector<64x1xf32> to vector<64x4xf32>
    %31 = arith.subf %27, %30 : vector<64x4xf32>
    %32 = math.exp %31 : vector<64x4xf32>
    %cst_20 = arith.constant dense<0.000000e+00> : vector<64xf32>
    %33 = vector.multi_reduction <add>, %32, %cst_20 [1] : vector<64x4xf32> to vector<64xf32>
    %34 = vector.shape_cast %33 : vector<64xf32> to vector<64x1xf32>
    %35 = vector.broadcast %34 : vector<64x1xf32> to vector<64x4xf32>
    %36 = arith.divf %32, %35 : vector<64x4xf32>
    %37 = arith.truncf %36 : vector<64x4xf32> to vector<64x4xbf16>
    %c0_21 = arith.constant 0 : index
    %c0_22 = arith.constant 0 : index
    %38 = vector.load %arg2[%c0_21, %c0_22] : memref<8x64xbf16, #tpu.memory_space<vmem>>, vector<8x64xbf16>
    %cst_23 = arith.constant dense<0.000000e+00> : vector<8x4xf32>
    %39 = tpu.matmul %38, %37, %cst_23 {dimension_numbers = #tpu.dot_dimension_numbers<[1], [0], [0], [1], [0, 0, 1, 1], [], []>} : vector<8x64xbf16>, vector<64x4xbf16>, vector<8x4xf32> -> vector<8x4xf32>
    %c0_24 = arith.constant 0 : index
    %c0_25 = arith.constant 0 : index
    %40 = vector.load %arg3[%c0_24, %c0_25] : memref<64x8xbf16, #tpu.memory_space<vmem>>, vector<64x8xbf16>
    %41 = arith.truncf %39 : vector<8x4xf32> to vector<8x4xbf16>
    %cst_26 = arith.constant dense<0.000000e+00> : vector<64x4xf32>
    %42 = tpu.matmul %40, %41, %cst_26 {dimension_numbers = #tpu.dot_dimension_numbers<[1], [0], [0], [1], [0, 0, 1, 1], [], []>} : vector<64x8xbf16>, vector<8x4xbf16>, vector<64x4xf32> -> vector<64x4xf32>
    %43 = arith.extf %0 : vector<64x16xbf16> to vector<64x16xf32>
    %44 = vector.extract_strided_slice %42 {offsets = [0, 0], sizes = [64, 1], strides = [1, 1]} : vector<64x4xf32> to vector<64x1xf32>
    %45 = vector.broadcast %44 : vector<64x1xf32> to vector<64x16xf32>
    %46 = arith.mulf %45, %43 : vector<64x16xf32>
    %47 = arith.truncf %46 : vector<64x16xf32> to vector<64x16xbf16>
    %c0_27 = arith.constant 0 : index
    %c128 = arith.constant 128 : index
    %48 = vector.load %arg16[%c0_27, %c128] : memref<64x196xbf16, #tpu.memory_space<vmem>>, vector<64x16xbf16>
    tpu.vector_store %arg16[%c0_27, %c128], %47 {strides = array<i32>} : memref<64x196xbf16, #tpu.memory_space<vmem>>, vector<64x16xbf16>,
    %49 = vector.extract_strided_slice %42 {offsets = [0, 1], sizes = [64, 1], strides = [1, 1]} : vector<64x4xf32> to vector<64x1xf32>
    %50 = vector.broadcast %49 : vector<64x1xf32> to vector<64x16xf32>
    %51 = arith.mulf %50, %43 : vector<64x16xf32>
    %52 = arith.truncf %51 : vector<64x16xf32> to vector<64x16xbf16>
    %c0_28 = arith.constant 0 : index
    %c144 = arith.constant 144 : index
    %53 = vector.load %arg16[%c0_28, %c144] : memref<64x196xbf16, #tpu.memory_space<vmem>>, vector<64x16xbf16>
    tpu.vector_store %arg16[%c0_28, %c144], %52 {strides = array<i32>} : memref<64x196xbf16, #tpu.memory_space<vmem>>, vector<64x16xbf16>,
    %54 = vector.extract_strided_slice %42 {offsets = [0, 2], sizes = [64, 1], strides = [1, 1]} : vector<64x4xf32> to vector<64x1xf32>
    %55 = vector.broadcast %54 : vector<64x1xf32> to vector<64x16xf32>
    %56 = arith.mulf %55, %43 : vector<64x16xf32>
    %57 = arith.truncf %56 : vector<64x16xf32> to vector<64x16xbf16>
    %c0_29 = arith.constant 0 : index
    %c160 = arith.constant 160 : index
    %58 = vector.load %arg16[%c0_29, %c160] : memref<64x196xbf16, #tpu.memory_space<vmem>>, vector<64x16xbf16>
    tpu.vector_store %arg16[%c0_29, %c160], %57 {strides = array<i32>} : memref<64x196xbf16, #tpu.memory_space<vmem>>, vector<64x16xbf16>,
    %59 = vector.extract_strided_slice %42 {offsets = [0, 3], sizes = [64, 1], strides = [1, 1]} : vector<64x4xf32> to vector<64x1xf32>
    %60 = vector.broadcast %59 : vector<64x1xf32> to vector<64x16xf32>
    %61 = arith.mulf %60, %43 : vector<64x16xf32>
    %62 = arith.truncf %61 : vector<64x16xf32> to vector<64x16xbf16>
    %c0_30 = arith.constant 0 : index
    %c176 = arith.constant 176 : index
    %63 = vector.load %arg16[%c0_30, %c176] : memref<64x196xbf16, #tpu.memory_space<vmem>>, vector<64x16xbf16>
    tpu.vector_store %arg16[%c0_30, %c176], %62 {strides = array<i32>} : memref<64x196xbf16, #tpu.memory_space<vmem>>, vector<64x16xbf16>,
    %c0_31 = arith.constant 0 : index
    %c192 = arith.constant 192 : index
    %64 = vector.load %arg16[%c0_31, %c192] : memref<64x196xbf16, #tpu.memory_space<vmem>>, vector<64x4xbf16>
    tpu.vector_store %arg16[%c0_31, %c192], %37 {strides = array<i32>} : memref<64x196xbf16, #tpu.memory_space<vmem>>, vector<64x4xbf16>,
    %c0_32 = arith.constant 0 : index
    %c128_33 = arith.constant 128 : index
    %65 = vector.load %arg16[%c0_32, %c128_33] : memref<64x196xbf16, #tpu.memory_space<vmem>>, vector<64x68xbf16>
    %c0_34 = arith.constant 0 : index
    %c0_35 = arith.constant 0 : index
    %66 = vector.load %arg10[%c0_34, %c0_35] : memref<68x32xbf16, #tpu.memory_space<vmem>>, vector<68x32xbf16>
    %cst_36 = arith.constant dense<0.000000e+00> : vector<64x32xf32>
    %67 = tpu.matmul %65, %66, %cst_36 {dimension_numbers = #tpu.dot_dimension_numbers<[1], [0], [0], [1], [0, 0, 1, 1], [], []>} : vector<64x68xbf16>, vector<68x32xbf16>, vector<64x32xf32> -> vector<64x32xf32>
    %cst_37 = arith.constant 0.000000e+00 : f32
    %68 = vector.broadcast %cst_37 : f32 to vector<64x32xf32>
    %69 = arith.cmpf oge, %67, %68 : vector<64x32xf32>
    %cst_38 = arith.constant 0.00999999977 : f32
    %70 = vector.broadcast %cst_38 : f32 to vector<64x32xf32>
    %71 = arith.mulf %70, %67 : vector<64x32xf32>
    %72 = arith.select %69, %67, %71 : vector<64x32xi1>, vector<64x32xf32>
    %73 = vector.extract_strided_slice %42 {offsets = [0, 0], sizes = [64, 1], strides = [1, 1]} : vector<64x4xf32> to vector<64x1xf32>
    %74 = vector.broadcast %73 : vector<64x1xf32> to vector<64x32xf32>
    %75 = arith.mulf %74, %72 : vector<64x32xf32>
    %76 = arith.truncf %75 : vector<64x32xf32> to vector<64x32xbf16>
    %c0_39 = arith.constant 0 : index
    %c0_40 = arith.constant 0 : index
    %77 = vector.load %arg16[%c0_39, %c0_40] : memref<64x196xbf16, #tpu.memory_space<vmem>>, vector<64x32xbf16>
    tpu.vector_store %arg16[%c0_39, %c0_40], %76 {strides = array<i32>} : memref<64x196xbf16, #tpu.memory_space<vmem>>, vector<64x32xbf16>,
    %78 = vector.extract_strided_slice %42 {offsets = [0, 1], sizes = [64, 1], strides = [1, 1]} : vector<64x4xf32> to vector<64x1xf32>
    %79 = vector.broadcast %78 : vector<64x1xf32> to vector<64x32xf32>
    %80 = arith.mulf %79, %72 : vector<64x32xf32>
    %81 = arith.truncf %80 : vector<64x32xf32> to vector<64x32xbf16>
    %c0_41 = arith.constant 0 : index
    %c32 = arith.constant 32 : index
    %82 = vector.load %arg16[%c0_41, %c32] : memref<64x196xbf16, #tpu.memory_space<vmem>>, vector<64x32xbf16>
    tpu.vector_store %arg16[%c0_41, %c32], %81 {strides = array<i32>} : memref<64x196xbf16, #tpu.memory_space<vmem>>, vector<64x32xbf16>,
    %83 = vector.extract_strided_slice %42 {offsets = [0, 2], sizes = [64, 1], strides = [1, 1]} : vector<64x4xf32> to vector<64x1xf32>
    %84 = vector.broadcast %83 : vector<64x1xf32> to vector<64x32xf32>
    %85 = arith.mulf %84, %72 : vector<64x32xf32>
    %86 = arith.truncf %85 : vector<64x32xf32> to vector<64x32xbf16>
    %c0_42 = arith.constant 0 : index
    %c64 = arith.constant 64 : index
    %87 = vector.load %arg16[%c0_42, %c64] : memref<64x196xbf16, #tpu.memory_space<vmem>>, vector<64x32xbf16>
    tpu.vector_store %arg16[%c0_42, %c64], %86 {strides = array<i32>} : memref<64x196xbf16, #tpu.memory_space<vmem>>, vector<64x32xbf16>,
    %88 = vector.extract_strided_slice %42 {offsets = [0, 3], sizes = [64, 1], strides = [1, 1]} : vector<64x4xf32> to vector<64x1xf32>
    %89 = vector.broadcast %88 : vector<64x1xf32> to vector<64x32xf32>
    %90 = arith.mulf %89, %72 : vector<64x32xf32>
    %91 = arith.truncf %90 : vector<64x32xf32> to vector<64x32xbf16>
    %c0_43 = arith.constant 0 : index
    %c96 = arith.constant 96 : index
    %92 = vector.load %arg16[%c0_43, %c96] : memref<64x196xbf16, #tpu.memory_space<vmem>>, vector<64x32xbf16>
    tpu.vector_store %arg16[%c0_43, %c96], %91 {strides = array<i32>} : memref<64x196xbf16, #tpu.memory_space<vmem>>, vector<64x32xbf16>,
    %c0_44 = arith.constant 0 : index
    %c0_45 = arith.constant 0 : index
    %93 = vector.load %arg16[%c0_44, %c0_45] : memref<64x196xbf16, #tpu.memory_space<vmem>>, vector<64x196xbf16>
    %c0_46 = arith.constant 0 : index
    %c0_47 = arith.constant 0 : index
    %94 = vector.load %arg11[%c0_46, %c0_47] : memref<196x32xbf16, #tpu.memory_space<vmem>>, vector<196x32xbf16>
    %cst_48 = arith.constant dense<0.000000e+00> : vector<64x32xf32>
    %95 = tpu.matmul %93, %94, %cst_48 {dimension_numbers = #tpu.dot_dimension_numbers<[1], [0], [0], [1], [0, 0, 1, 1], [], []>} : vector<64x196xbf16>, vector<196x32xbf16>, vector<64x32xf32> -> vector<64x32xf32>
    %cst_49 = arith.constant 0.000000e+00 : f32
    %96 = vector.broadcast %cst_49 : f32 to vector<64x32xf32>
    %97 = arith.cmpf oge, %95, %96 : vector<64x32xf32>
    %cst_50 = arith.constant 0.00999999977 : f32
    %98 = vector.broadcast %cst_50 : f32 to vector<64x32xf32>
    %99 = arith.mulf %98, %95 : vector<64x32xf32>
    %100 = arith.select %97, %95, %99 : vector<64x32xi1>, vector<64x32xf32>
    %101 = vector.extract_strided_slice %42 {offsets = [0, 0], sizes = [64, 1], strides = [1, 1]} : vector<64x4xf32> to vector<64x1xf32>
    %102 = vector.broadcast %101 : vector<64x1xf32> to vector<64x32xf32>
    %103 = arith.mulf %102, %100 : vector<64x32xf32>
    %104 = arith.truncf %103 : vector<64x32xf32> to vector<64x32xbf16>
    %c0_51 = arith.constant 0 : index
    %c0_52 = arith.constant 0 : index
    %105 = vector.load %arg16[%c0_51, %c0_52] : memref<64x196xbf16, #tpu.memory_space<vmem>>, vector<64x32xbf16>
    tpu.vector_store %arg16[%c0_51, %c0_52], %104 {strides = array<i32>} : memref<64x196xbf16, #tpu.memory_space<vmem>>, vector<64x32xbf16>,
    %106 = vector.extract_strided_slice %42 {offsets = [0, 1], sizes = [64, 1], strides = [1, 1]} : vector<64x4xf32> to vector<64x1xf32>
    %107 = vector.broadcast %106 : vector<64x1xf32> to vector<64x32xf32>
    %108 = arith.mulf %107, %100 : vector<64x32xf32>
    %109 = arith.truncf %108 : vector<64x32xf32> to vector<64x32xbf16>
    %c0_53 = arith.constant 0 : index
    %c32_54 = arith.constant 32 : index
    %110 = vector.load %arg16[%c0_53, %c32_54] : memref<64x196xbf16, #tpu.memory_space<vmem>>, vector<64x32xbf16>
    tpu.vector_store %arg16[%c0_53, %c32_54], %109 {strides = array<i32>} : memref<64x196xbf16, #tpu.memory_space<vmem>>, vector<64x32xbf16>,
    %111 = vector.extract_strided_slice %42 {offsets = [0, 2], sizes = [64, 1], strides = [1, 1]} : vector<64x4xf32> to vector<64x1xf32>
    %112 = vector.broadcast %111 : vector<64x1xf32> to vector<64x32xf32>
    %113 = arith.mulf %112, %100 : vector<64x32xf32>
    %114 = arith.truncf %113 : vector<64x32xf32> to vector<64x32xbf16>
    %c0_55 = arith.constant 0 : index
    %c64_56 = arith.constant 64 : index
    %115 = vector.load %arg16[%c0_55, %c64_56] : memref<64x196xbf16, #tpu.memory_space<vmem>>, vector<64x32xbf16>
    tpu.vector_store %arg16[%c0_55, %c64_56], %114 {strides = array<i32>} : memref<64x196xbf16, #tpu.memory_space<vmem>>, vector<64x32xbf16>,
    %116 = vector.extract_strided_slice %42 {offsets = [0, 3], sizes = [64, 1], strides = [1, 1]} : vector<64x4xf32> to vector<64x1xf32>
    %117 = vector.broadcast %116 : vector<64x1xf32> to vector<64x32xf32>
    %118 = arith.mulf %117, %100 : vector<64x32xf32>
    %119 = arith.truncf %118 : vector<64x32xf32> to vector<64x32xbf16>
    %c0_57 = arith.constant 0 : index
    %c96_58 = arith.constant 96 : index
    %120 = vector.load %arg16[%c0_57, %c96_58] : memref<64x196xbf16, #tpu.memory_space<vmem>>, vector<64x32xbf16>
    tpu.vector_store %arg16[%c0_57, %c96_58], %119 {strides = array<i32>} : memref<64x196xbf16, #tpu.memory_space<vmem>>, vector<64x32xbf16>,
    %c0_59 = arith.constant 0 : index
    %c0_60 = arith.constant 0 : index
    %121 = vector.load %arg16[%c0_59, %c0_60] : memref<64x196xbf16, #tpu.memory_space<vmem>>, vector<64x196xbf16>
    %c0_61 = arith.constant 0 : index
    %c0_62 = arith.constant 0 : index
    %122 = vector.load %arg12[%c0_61, %c0_62] : memref<196x32xbf16, #tpu.memory_space<vmem>>, vector<196x32xbf16>
    %cst_63 = arith.constant dense<0.000000e+00> : vector<64x32xf32>
    %123 = tpu.matmul %121, %122, %cst_63 {dimension_numbers = #tpu.dot_dimension_numbers<[1], [0], [0], [1], [0, 0, 1, 1], [], []>} : vector<64x196xbf16>, vector<196x32xbf16>, vector<64x32xf32> -> vector<64x32xf32>
    %cst_64 = arith.constant 0.000000e+00 : f32
    %124 = vector.broadcast %cst_64 : f32 to vector<64x32xf32>
    %125 = arith.cmpf oge, %123, %124 : vector<64x32xf32>
    %cst_65 = arith.constant 0.00999999977 : f32
    %126 = vector.broadcast %cst_65 : f32 to vector<64x32xf32>
    %127 = arith.mulf %126, %123 : vector<64x32xf32>
    %128 = arith.select %125, %123, %127 : vector<64x32xi1>, vector<64x32xf32>
    %129 = vector.extract_strided_slice %42 {offsets = [0, 0], sizes = [64, 1], strides = [1, 1]} : vector<64x4xf32> to vector<64x1xf32>
    %130 = vector.broadcast %129 : vector<64x1xf32> to vector<64x32xf32>
    %131 = arith.mulf %130, %128 : vector<64x32xf32>
    %132 = arith.truncf %131 : vector<64x32xf32> to vector<64x32xbf16>
    %c0_66 = arith.constant 0 : index
    %c0_67 = arith.constant 0 : index
    %133 = vector.load %arg16[%c0_66, %c0_67] : memref<64x196xbf16, #tpu.memory_space<vmem>>, vector<64x32xbf16>
    tpu.vector_store %arg16[%c0_66, %c0_67], %132 {strides = array<i32>} : memref<64x196xbf16, #tpu.memory_space<vmem>>, vector<64x32xbf16>,
    %134 = vector.extract_strided_slice %42 {offsets = [0, 1], sizes = [64, 1], strides = [1, 1]} : vector<64x4xf32> to vector<64x1xf32>
    %135 = vector.broadcast %134 : vector<64x1xf32> to vector<64x32xf32>
    %136 = arith.mulf %135, %128 : vector<64x32xf32>
    %137 = arith.truncf %136 : vector<64x32xf32> to vector<64x32xbf16>
    %c0_68 = arith.constant 0 : index
    %c32_69 = arith.constant 32 : index
    %138 = vector.load %arg16[%c0_68, %c32_69] : memref<64x196xbf16, #tpu.memory_space<vmem>>, vector<64x32xbf16>
    tpu.vector_store %arg16[%c0_68, %c32_69], %137 {strides = array<i32>} : memref<64x196xbf16, #tpu.memory_space<vmem>>, vector<64x32xbf16>,
    %139 = vector.extract_strided_slice %42 {offsets = [0, 2], sizes = [64, 1], strides = [1, 1]} : vector<64x4xf32> to vector<64x1xf32>
    %140 = vector.broadcast %139 : vector<64x1xf32> to vector<64x32xf32>
    %141 = arith.mulf %140, %128 : vector<64x32xf32>
    %142 = arith.truncf %141 : vector<64x32xf32> to vector<64x32xbf16>
    %c0_70 = arith.constant 0 : index
    %c64_71 = arith.constant 64 : index
    %143 = vector.load %arg16[%c0_70, %c64_71] : memref<64x196xbf16, #tpu.memory_space<vmem>>, vector<64x32xbf16>
    tpu.vector_store %arg16[%c0_70, %c64_71], %142 {strides = array<i32>} : memref<64x196xbf16, #tpu.memory_space<vmem>>, vector<64x32xbf16>,
    %144 = vector.extract_strided_slice %42 {offsets = [0, 3], sizes = [64, 1], strides = [1, 1]} : vector<64x4xf32> to vector<64x1xf32>
    %145 = vector.broadcast %144 : vector<64x1xf32> to vector<64x32xf32>
    %146 = arith.mulf %145, %128 : vector<64x32xf32>
    %147 = arith.truncf %146 : vector<64x32xf32> to vector<64x32xbf16>
    %c0_72 = arith.constant 0 : index
    %c96_73 = arith.constant 96 : index
    %148 = vector.load %arg16[%c0_72, %c96_73] : memref<64x196xbf16, #tpu.memory_space<vmem>>, vector<64x32xbf16>
    tpu.vector_store %arg16[%c0_72, %c96_73], %147 {strides = array<i32>} : memref<64x196xbf16, #tpu.memory_space<vmem>>, vector<64x32xbf16>,
    %c0_74 = arith.constant 0 : index
    %c0_75 = arith.constant 0 : index
    %149 = vector.load %arg16[%c0_74, %c0_75] : memref<64x196xbf16, #tpu.memory_space<vmem>>, vector<64x196xbf16>
    %c0_76 = arith.constant 0 : index
    %c0_77 = arith.constant 0 : index
    %150 = vector.load %arg13[%c0_76, %c0_77] : memref<196x32xbf16, #tpu.memory_space<vmem>>, vector<196x32xbf16>
    %cst_78 = arith.constant dense<0.000000e+00> : vector<64x32xf32>
    %151 = tpu.matmul %149, %150, %cst_78 {dimension_numbers = #tpu.dot_dimension_numbers<[1], [0], [0], [1], [0, 0, 1, 1], [], []>} : vector<64x196xbf16>, vector<196x32xbf16>, vector<64x32xf32> -> vector<64x32xf32>
    %cst_79 = arith.constant 0.000000e+00 : f32
    %152 = vector.broadcast %cst_79 : f32 to vector<64x32xf32>
    %153 = arith.cmpf oge, %151, %152 : vector<64x32xf32>
    %cst_80 = arith.constant 0.00999999977 : f32
    %154 = vector.broadcast %cst_80 : f32 to vector<64x32xf32>
    %155 = arith.mulf %154, %151 : vector<64x32xf32>
    %156 = arith.select %153, %151, %155 : vector<64x32xi1>, vector<64x32xf32>
    %157 = vector.extract_strided_slice %42 {offsets = [0, 0], sizes = [64, 1], strides = [1, 1]} : vector<64x4xf32> to vector<64x1xf32>
    %158 = vector.broadcast %157 : vector<64x1xf32> to vector<64x32xf32>
    %159 = arith.mulf %158, %156 : vector<64x32xf32>
    %160 = arith.truncf %159 : vector<64x32xf32> to vector<64x32xbf16>
    %c0_81 = arith.constant 0 : index
    %c0_82 = arith.constant 0 : index
    %161 = vector.load %arg16[%c0_81, %c0_82] : memref<64x196xbf16, #tpu.memory_space<vmem>>, vector<64x32xbf16>
    tpu.vector_store %arg16[%c0_81, %c0_82], %160 {strides = array<i32>} : memref<64x196xbf16, #tpu.memory_space<vmem>>, vector<64x32xbf16>,
    %162 = vector.extract_strided_slice %42 {offsets = [0, 1], sizes = [64, 1], strides = [1, 1]} : vector<64x4xf32> to vector<64x1xf32>
    %163 = vector.broadcast %162 : vector<64x1xf32> to vector<64x32xf32>
    %164 = arith.mulf %163, %156 : vector<64x32xf32>
    %165 = arith.truncf %164 : vector<64x32xf32> to vector<64x32xbf16>
    %c0_83 = arith.constant 0 : index
    %c32_84 = arith.constant 32 : index
    %166 = vector.load %arg16[%c0_83, %c32_84] : memref<64x196xbf16, #tpu.memory_space<vmem>>, vector<64x32xbf16>
    tpu.vector_store %arg16[%c0_83, %c32_84], %165 {strides = array<i32>} : memref<64x196xbf16, #tpu.memory_space<vmem>>, vector<64x32xbf16>,
    %167 = vector.extract_strided_slice %42 {offsets = [0, 2], sizes = [64, 1], strides = [1, 1]} : vector<64x4xf32> to vector<64x1xf32>
    %168 = vector.broadcast %167 : vector<64x1xf32> to vector<64x32xf32>
    %169 = arith.mulf %168, %156 : vector<64x32xf32>
    %170 = arith.truncf %169 : vector<64x32xf32> to vector<64x32xbf16>
    %c0_85 = arith.constant 0 : index
    %c64_86 = arith.constant 64 : index
    %171 = vector.load %arg16[%c0_85, %c64_86] : memref<64x196xbf16, #tpu.memory_space<vmem>>, vector<64x32xbf16>
    tpu.vector_store %arg16[%c0_85, %c64_86], %170 {strides = array<i32>} : memref<64x196xbf16, #tpu.memory_space<vmem>>, vector<64x32xbf16>,
    %172 = vector.extract_strided_slice %42 {offsets = [0, 3], sizes = [64, 1], strides = [1, 1]} : vector<64x4xf32> to vector<64x1xf32>
    %173 = vector.broadcast %172 : vector<64x1xf32> to vector<64x32xf32>
    %174 = arith.mulf %173, %156 : vector<64x32xf32>
    %175 = arith.truncf %174 : vector<64x32xf32> to vector<64x32xbf16>
    %c0_87 = arith.constant 0 : index
    %c96_88 = arith.constant 96 : index
    %176 = vector.load %arg16[%c0_87, %c96_88] : memref<64x196xbf16, #tpu.memory_space<vmem>>, vector<64x32xbf16>
    tpu.vector_store %arg16[%c0_87, %c96_88], %175 {strides = array<i32>} : memref<64x196xbf16, #tpu.memory_space<vmem>>, vector<64x32xbf16>,
    %c0_89 = arith.constant 0 : index
    %c0_90 = arith.constant 0 : index
    %177 = vector.load %arg16[%c0_89, %c0_90] : memref<64x196xbf16, #tpu.memory_space<vmem>>, vector<64x196xbf16>
    %c0_91 = arith.constant 0 : index
    %c0_92 = arith.constant 0 : index
    %178 = vector.load %arg14[%c0_91, %c0_92] : memref<196x16xbf16, #tpu.memory_space<vmem>>, vector<196x16xbf16>
    %cst_93 = arith.constant dense<0.000000e+00> : vector<64x16xf32>
    %179 = tpu.matmul %177, %178, %cst_93 {dimension_numbers = #tpu.dot_dimension_numbers<[1], [0], [0], [1], [0, 0, 1, 1], [], []>} : vector<64x196xbf16>, vector<196x16xbf16>, vector<64x16xf32> -> vector<64x16xf32>
    %c0_94 = arith.constant 0 : index
    %c0_95 = arith.constant 0 : index
    %180 = vector.load %arg15[%c0_94, %c0_95] : memref<64x16xf32, #tpu.memory_space<vmem>>, vector<64x16xf32>
    tpu.vector_store %arg15[%c0_94, %c0_95], %179 {strides = array<i32>} : memref<64x16xf32, #tpu.memory_space<vmem>>, vector<64x16xf32>,
    return
  }
  func.func @transform_0(%arg0: i32) -> (i32, i32) {
    %c0_i32 = arith.constant 0 : i32
    %c0_i32_0 = arith.constant 0 : i32
    return %arg0, %c0_i32 : i32, i32
  }
  func.func @transform_1(%arg0: i32) -> (i32, i32) {
    %c0_i32 = arith.constant 0 : i32
    %c0_i32_0 = arith.constant 0 : i32
    %c0_i32_1 = arith.constant 0 : i32
    return %c0_i32, %c0_i32_0 : i32, i32
  }
  func.func @transform_2(%arg0: i32) -> (i32, i32) {
    %c0_i32 = arith.constant 0 : i32
    %c0_i32_0 = arith.constant 0 : i32
    %c0_i32_1 = arith.constant 0 : i32
    return %c0_i32, %c0_i32_0 : i32, i32
  }
  func.func @transform_3(%arg0: i32) -> (i32, i32) {
    %c0_i32 = arith.constant 0 : i32
    %c0_i32_0 = arith.constant 0 : i32
    %c0_i32_1 = arith.constant 0 : i32
    return %c0_i32, %c0_i32_0 : i32, i32
  }
  func.func @transform_4(%arg0: i32) -> (i32, i32) {
    %c0_i32 = arith.constant 0 : i32
    %c0_i32_0 = arith.constant 0 : i32
    %c0_i32_1 = arith.constant 0 : i32
    return %c0_i32, %c0_i32_0 : i32, i32
  }
  func.func @transform_5(%arg0: i32) -> (i32, i32) {
    %c0_i32 = arith.constant 0 : i32
    %c0_i32_0 = arith.constant 0 : i32
    %c0_i32_1 = arith.constant 0 : i32
    return %c0_i32, %c0_i32_0 : i32, i32
  }
  func.func @transform_6(%arg0: i32) -> (i32, i32) {
    %c0_i32 = arith.constant 0 : i32
    %c0_i32_0 = arith.constant 0 : i32
    %c0_i32_1 = arith.constant 0 : i32
    return %c0_i32, %c0_i32_0 : i32, i32
  }
  func.func @transform_7(%arg0: i32) -> (i32, i32) {
    %c0_i32 = arith.constant 0 : i32
    %c0_i32_0 = arith.constant 0 : i32
    %c0_i32_1 = arith.constant 0 : i32
    return %c0_i32, %c0_i32_0 : i32, i32
  }
  func.func @transform_8(%arg0: i32) -> (i32, i32) {
    %c0_i32 = arith.constant 0 : i32
    %c0_i32_0 = arith.constant 0 : i32
    %c0_i32_1 = arith.constant 0 : i32
    return %c0_i32, %c0_i32_0 : i32, i32
  }
  func.func @transform_9(%arg0: i32) -> (i32, i32) {
    %c0_i32 = arith.constant 0 : i32
    %c0_i32_0 = arith.constant 0 : i32
    %c0_i32_1 = arith.constant 0 : i32
    return %c0_i32, %c0_i32_0 : i32, i32
  }
  func.func @transform_10(%arg0: i32) -> (i32, i32) {
    %c0_i32 = arith.constant 0 : i32
    %c0_i32_0 = arith.constant 0 : i32
    %c0_i32_1 = arith.constant 0 : i32
    return %c0_i32, %c0_i32_0 : i32, i32
  }
  func.func @transform_11(%arg0: i32) -> (i32, i32) {
    %c0_i32 = arith.constant 0 : i32
    %c0_i32_0 = arith.constant 0 : i32
    %c0_i32_1 = arith.constant 0 : i32
    return %c0_i32, %c0_i32_0 : i32, i32
  }
  func.func @transform_12(%arg0: i32) -> (i32, i32) {
    %c0_i32 = arith.constant 0 : i32
    %c0_i32_0 = arith.constant 0 : i32
    %c0_i32_1 = arith.constant 0 : i32
    return %c0_i32, %c0_i32_0 : i32, i32
  }
  func.func @transform_13(%arg0: i32) -> (i32, i32) {
    %c0_i32 = arith.constant 0 : i32
    %c0_i32_0 = arith.constant 0 : i32
    %c0_i32_1 = arith.constant 0 : i32
    return %c0_i32, %c0_i32_0 : i32, i32
  }
  func.func @transform_14(%arg0: i32) -> (i32, i32) {
    %c0_i32 = arith.constant 0 : i32
    %c0_i32_0 = arith.constant 0 : i32
    return %arg0, %c0_i32 : i32, i32
  }
}

</mosaic_0001>

<llo_original>
// kernel: tpu_custom_call.1
$region0: #{tpu_custom_call.1}
  #allocation0 [shape = 'u32[]', space=smem, size = 0x4, offset = 0x4, fixed_abs, tag = 'smem constant byte address 0x4 - core index']
  #allocation1 [shape = 'u32[72,128]{1,0:T(1,128)}', space=vmem, size = 0x9000, scoped, tag = 'internal scratch']
  #allocation2 [shape = 'bf16[64,196]{1,0:T(8,128)(2,1)}', space=vmem, size = 0x8000, scoped, tag = 'scratch operand']
  %s0 = inlined_call_operand.vmem [shape: bf16[128,16], index: 0, kind: input, shape index: {}]
  %s1 = inlined_call_operand.vmem [shape: bf16[8,64], index: 1, kind: input, shape index: {}]
  %s2 = inlined_call_operand.vmem [shape: bf16[64,8], index: 2, kind: input, shape index: {}]
  %s3 = inlined_call_operand.vmem [shape: bf16[16,64], index: 3, kind: input, shape index: {}]
  %s4 = inlined_call_operand.vmem [shape: f32[1,64], index: 4, kind: input, shape index: {}]
  %s5 = inlined_call_operand.vmem [shape: bf16[64,64], index: 5, kind: input, shape index: {}]
  %s6 = inlined_call_operand.vmem [shape: f32[1,64], index: 6, kind: input, shape index: {}]
  %s7 = inlined_call_operand.vmem [shape: bf16[64,4], index: 7, kind: input, shape index: {}]
  %s8 = inlined_call_operand.vmem [shape: f32[1,4], index: 8, kind: input, shape index: {}]
  %s9 = inlined_call_operand.vmem [shape: bf16[68,32], index: 9, kind: input, shape index: {}]
  %s10 = inlined_call_operand.vmem [shape: bf16[196,32], index: 10, kind: input, shape index: {}]
  %s11 = inlined_call_operand.vmem [shape: bf16[196,32], index: 11, kind: input, shape index: {}]
  %s12 = inlined_call_operand.vmem [shape: bf16[196,32], index: 12, kind: input, shape index: {}]
  %s13 = inlined_call_operand.vmem [shape: bf16[196,16], index: 13, kind: input, shape index: {}]
  %s14 = inlined_call_operand.vmem [shape: f32[128,16], index: 14, kind: output, shape index: {}]
  %s15 = sld [smem:[#allocation0]]
  $region89: #{tpu_custom_call.1} parent=0
    _
  %s17 = ssub.s32 1, %s15
  %s18 = scalar_select 0, %s17, %s15
  loop: start=0, step=1, limit=4
  $region2: #{tpu_custom_call.1} parent=0 // loop_pre_header
    _
  $region3: #{tpu_custom_call.1} parent=0 // loop_header
    %s20 = sphi 0, %s24
    %p21 = scmp.ge.s32.totalorder %s20, 4
    %s30 = sphi 0, %s32
    %s33 = sphi 0, %s30
    %s34 = sphi 0, %s33
    %s50 = sphi 0, %s34
    %s54 = sphi 0, %s54
    %s56 = sphi 0, %s54
    %s57 = sphi 0, %s56
    %s71 = sphi 0, %s57
    %s75 = sphi 0, %s75
    %s77 = sphi 0, %s75
    %s78 = sphi 0, %s77
    %s92 = sphi 0, %s78
    %s96 = sphi 0, %s96
    %s98 = sphi 0, %s96
    %s99 = sphi 0, %s98
    %s113 = sphi 0, %s99
    %s117 = sphi 0, %s117
    %s119 = sphi 0, %s117
    %s120 = sphi 0, %s119
    %s134 = sphi 0, %s120
    %s138 = sphi 0, %s138
    %s140 = sphi 0, %s138
    %s141 = sphi 0, %s140
    %s155 = sphi 0, %s141
    %s159 = sphi 0, %s159
    %s161 = sphi 0, %s159
    %s162 = sphi 0, %s161
    %s176 = sphi 0, %s162
    %s180 = sphi 0, %s180
    %s182 = sphi 0, %s180
    %s183 = sphi 0, %s182
    %s197 = sphi 0, %s183
    %s201 = sphi 0, %s201
    %s203 = sphi 0, %s201
    %s204 = sphi 0, %s203
    %s218 = sphi 0, %s204
    %s222 = sphi 0, %s222
    %s224 = sphi 0, %s222
    %s225 = sphi 0, %s224
    %s239 = sphi 0, %s225
    %s243 = sphi 0, %s243
    %s245 = sphi 0, %s243
    %s246 = sphi 0, %s245
    %s260 = sphi 0, %s246
    %s264 = sphi 0, %s264
    %s266 = sphi 0, %s264
    %s267 = sphi 0, %s266
    %s281 = sphi 0, %s267
    %s285 = sphi 0, %s285
    %s287 = sphi 0, %s285
    %s288 = sphi 0, %s287
    %s302 = sphi 0, %s288
    %s306 = sphi 0, %s306
    %s308 = sphi 0, %s306
    %s309 = sphi 0, %s308
    %s323 = sphi 0, %s309
    %s329 = sphi 0, %s331
    %s332 = sphi 0, %s329
    %s333 = sphi 0, %s332
    %s349 = sphi 0, %s333
  $region4: #{tpu_custom_call.1} parent=0 // loop_header_branch
    %23 = sbr.rel (%p21) target = $region8
  $region5: #{tpu_custom_call.1} parent=0 // loop_body
    %s25 = ssub.s32 %s20, 1
    %s26 = ssub.s32 %s20, 2
    %s27 = sadd.s32 %s20, 1
    %s28 = ssub.s32 %s20, %s27
    %p29 = scmp.eq.s32.totalorder %s28, 0
    %s31 = sadd.s32 %s30, 1
    %s32 = scalar_select %p29, %s30, %s31
    %p35 = pneg %p29
    %p36 = scmp.eq.s32.totalorder %s20, 1
    %p37 = por %p35, %p36
    %p38 = scmp.ne.s32.totalorder %s30, %s33
    %p39 = scmp.eq.s32.totalorder %s20, 0
    %p40 = por %p38, %p39
    %p41 = scmp.ne.s32.totalorder %s30, %s33
    %p42 = scmp.eq.s32.totalorder %s25, 1
    %p43 = por %p41, %p42
    %p44 = scmp.ne.s32.totalorder %s33, %s34
    %p45 = scmp.eq.s32.totalorder %s25, 0
    %p46 = por %p44, %p45
    %p47 = scmp.ne.s32.totalorder %s33, %s34
    %p48 = scmp.eq.s32.totalorder %s26, 1
    %p49 = por %p47, %p48
    %p51 = scmp.ne.s32.totalorder %s34, %s50
    %p52 = scmp.eq.s32.totalorder %s26, 0
    %p53 = por %p51, %p52
    %s55 = sadd.s32 %s54, 1
    %p58 = scmp.eq.s32.totalorder %s20, 1
    %p59 = scmp.ne.s32.totalorder %s54, %s56
    %p60 = scmp.eq.s32.totalorder %s20, 0
    %p61 = por %p59, %p60
    %p62 = scmp.ne.s32.totalorder %s54, %s56
    %p63 = scmp.eq.s32.totalorder %s25, 1
    %p64 = por %p62, %p63
    %p65 = scmp.ne.s32.totalorder %s56, %s57
    %p66 = scmp.eq.s32.totalorder %s25, 0
    %p67 = por %p65, %p66
    %p68 = scmp.ne.s32.totalorder %s56, %s57
    %p69 = scmp.eq.s32.totalorder %s26, 1
    %p70 = por %p68, %p69
    %p72 = scmp.ne.s32.totalorder %s57, %s71
    %p73 = scmp.eq.s32.totalorder %s26, 0
    %p74 = por %p72, %p73
    %s76 = sadd.s32 %s75, 1
    %p79 = scmp.eq.s32.totalorder %s20, 1
    %p80 = scmp.ne.s32.totalorder %s75, %s77
    %p81 = scmp.eq.s32.totalorder %s20, 0
    %p82 = por %p80, %p81
    %p83 = scmp.ne.s32.totalorder %s75, %s77
    %p84 = scmp.eq.s32.totalorder %s25, 1
    %p85 = por %p83, %p84
    %p86 = scmp.ne.s32.totalorder %s77, %s78
    %p87 = scmp.eq.s32.totalorder %s25, 0
    %p88 = por %p86, %p87
    %p89 = scmp.ne.s32.totalorder %s77, %s78
    %p90 = scmp.eq.s32.totalorder %s26, 1
    %p91 = por %p89, %p90
    %p93 = scmp.ne.s32.totalorder %s78, %s92
    %p94 = scmp.eq.s32.totalorder %s26, 0
    %p95 = por %p93, %p94
    %s97 = sadd.s32 %s96, 1
    %p100 = scmp.eq.s32.totalorder %s20, 1
    %p101 = scmp.ne.s32.totalorder %s96, %s98
    %p102 = scmp.eq.s32.totalorder %s20, 0
    %p103 = por %p101, %p102
    %p104 = scmp.ne.s32.totalorder %s96, %s98
    %p105 = scmp.eq.s32.totalorder %s25, 1
    %p106 = por %p104, %p105
    %p107 = scmp.ne.s32.totalorder %s98, %s99
    %p108 = scmp.eq.s32.totalorder %s25, 0
    %p109 = por %p107, %p108
    %p110 = scmp.ne.s32.totalorder %s98, %s99
    %p111 = scmp.eq.s32.totalorder %s26, 1
    %p112 = por %p110, %p111
    %p114 = scmp.ne.s32.totalorder %s99, %s113
    %p115 = scmp.eq.s32.totalorder %s26, 0
    %p116 = por %p114, %p115
    %s118 = sadd.s32 %s117, 1
    %p121 = scmp.eq.s32.totalorder %s20, 1
    %p122 = scmp.ne.s32.totalorder %s117, %s119
    %p123 = scmp.eq.s32.totalorder %s20, 0
    %p124 = por %p122, %p123
    %p125 = scmp.ne.s32.totalorder %s117, %s119
    %p126 = scmp.eq.s32.totalorder %s25, 1
    %p127 = por %p125, %p126
    %p128 = scmp.ne.s32.totalorder %s119, %s120
    %p129 = scmp.eq.s32.totalorder %s25, 0
    %p130 = por %p128, %p129
    %p131 = scmp.ne.s32.totalorder %s119, %s120
    %p132 = scmp.eq.s32.totalorder %s26, 1
    %p133 = por %p131, %p132
    %p135 = scmp.ne.s32.totalorder %s120, %s134
    %p136 = scmp.eq.s32.totalorder %s26, 0
    %p137 = por %p135, %p136
    %s139 = sadd.s32 %s138, 1
    %p142 = scmp.eq.s32.totalorder %s20, 1
    %p143 = scmp.ne.s32.totalorder %s138, %s140
    %p144 = scmp.eq.s32.totalorder %s20, 0
    %p145 = por %p143, %p144
    %p146 = scmp.ne.s32.totalorder %s138, %s140
    %p147 = scmp.eq.s32.totalorder %s25, 1
    %p148 = por %p146, %p147
    %p149 = scmp.ne.s32.totalorder %s140, %s141
    %p150 = scmp.eq.s32.totalorder %s25, 0
    %p151 = por %p149, %p150
    %p152 = scmp.ne.s32.totalorder %s140, %s141
    %p153 = scmp.eq.s32.totalorder %s26, 1
    %p154 = por %p152, %p153
    %p156 = scmp.ne.s32.totalorder %s141, %s155
    %p157 = scmp.eq.s32.totalorder %s26, 0
    %p158 = por %p156, %p157
    %s160 = sadd.s32 %s159, 1
    %p163 = scmp.eq.s32.totalorder %s20, 1
    %p164 = scmp.ne.s32.totalorder %s159, %s161
    %p165 = scmp.eq.s32.totalorder %s20, 0
    %p166 = por %p164, %p165
    %p167 = scmp.ne.s32.totalorder %s159, %s161
    %p168 = scmp.eq.s32.totalorder %s25, 1
    %p169 = por %p167, %p168
    %p170 = scmp.ne.s32.totalorder %s161, %s162
    %p171 = scmp.eq.s32.totalorder %s25, 0
    %p172 = por %p170, %p171
    %p173 = scmp.ne.s32.totalorder %s161, %s162
    %p174 = scmp.eq.s32.totalorder %s26, 1
    %p175 = por %p173, %p174
    %p177 = scmp.ne.s32.totalorder %s162, %s176
    %p178 = scmp.eq.s32.totalorder %s26, 0
    %p179 = por %p177, %p178
    %s181 = sadd.s32 %s180, 1
    %p184 = scmp.eq.s32.totalorder %s20, 1
    %p185 = scmp.ne.s32.totalorder %s180, %s182
    %p186 = scmp.eq.s32.totalorder %s20, 0
    %p187 = por %p185, %p186
    %p188 = scmp.ne.s32.totalorder %s180, %s182
    %p189 = scmp.eq.s32.totalorder %s25, 1
    %p190 = por %p188, %p189
    %p191 = scmp.ne.s32.totalorder %s182, %s183
    %p192 = scmp.eq.s32.totalorder %s25, 0
    %p193 = por %p191, %p192
    %p194 = scmp.ne.s32.totalorder %s182, %s183
    %p195 = scmp.eq.s32.totalorder %s26, 1
    %p196 = por %p194, %p195
    %p198 = scmp.ne.s32.totalorder %s183, %s197
    %p199 = scmp.eq.s32.totalorder %s26, 0
    %p200 = por %p198, %p199
    %s202 = sadd.s32 %s201, 1
    %p205 = scmp.eq.s32.totalorder %s20, 1
    %p206 = scmp.ne.s32.totalorder %s201, %s203
    %p207 = scmp.eq.s32.totalorder %s20, 0
    %p208 = por %p206, %p207
    %p209 = scmp.ne.s32.totalorder %s201, %s203
    %p210 = scmp.eq.s32.totalorder %s25, 1
    %p211 = por %p209, %p210
    %p212 = scmp.ne.s32.totalorder %s203, %s204
    %p213 = scmp.eq.s32.totalorder %s25, 0
    %p214 = por %p212, %p213
    %p215 = scmp.ne.s32.totalorder %s203, %s204
    %p216 = scmp.eq.s32.totalorder %s26, 1
    %p217 = por %p215, %p216
    %p219 = scmp.ne.s32.totalorder %s204, %s218
    %p220 = scmp.eq.s32.totalorder %s26, 0
    %p221 = por %p219, %p220
    %s223 = sadd.s32 %s222, 1
    %p226 = scmp.eq.s32.totalorder %s20, 1
    %p227 = scmp.ne.s32.totalorder %s222, %s224
    %p228 = scmp.eq.s32.totalorder %s20, 0
    %p229 = por %p227, %p228
    %p230 = scmp.ne.s32.totalorder %s222, %s224
    %p231 = scmp.eq.s32.totalorder %s25, 1
    %p232 = por %p230, %p231
    %p233 = scmp.ne.s32.totalorder %s224, %s225
    %p234 = scmp.eq.s32.totalorder %s25, 0
    %p235 = por %p233, %p234
    %p236 = scmp.ne.s32.totalorder %s224, %s225
    %p237 = scmp.eq.s32.totalorder %s26, 1
    %p238 = por %p236, %p237
    %p240 = scmp.ne.s32.totalorder %s225, %s239
    %p241 = scmp.eq.s32.totalorder %s26, 0
    %p242 = por %p240, %p241
    %s244 = sadd.s32 %s243, 1
    %p247 = scmp.eq.s32.totalorder %s20, 1
    %p248 = scmp.ne.s32.totalorder %s243, %s245
    %p249 = scmp.eq.s32.totalorder %s20, 0
    %p250 = por %p248, %p249
    %p251 = scmp.ne.s32.totalorder %s243, %s245
    %p252 = scmp.eq.s32.totalorder %s25, 1
    %p253 = por %p251, %p252
    %p254 = scmp.ne.s32.totalorder %s245, %s246
    %p255 = scmp.eq.s32.totalorder %s25, 0
    %p256 = por %p254, %p255
    %p257 = scmp.ne.s32.totalorder %s245, %s246
    %p258 = scmp.eq.s32.totalorder %s26, 1
    %p259 = por %p257, %p258
    %p261 = scmp.ne.s32.totalorder %s246, %s260
    %p262 = scmp.eq.s32.totalorder %s26, 0
    %p263 = por %p261, %p262
    %s265 = sadd.s32 %s264, 1
    %p268 = scmp.eq.s32.totalorder %s20, 1
    %p269 = scmp.ne.s32.totalorder %s264, %s266
    %p270 = scmp.eq.s32.totalorder %s20, 0
    %p271 = por %p269, %p270
    %p272 = scmp.ne.s32.totalorder %s264, %s266
    %p273 = scmp.eq.s32.totalorder %s25, 1
    %p274 = por %p272, %p273
    %p275 = scmp.ne.s32.totalorder %s266, %s267
    %p276 = scmp.eq.s32.totalorder %s25, 0
    %p277 = por %p275, %p276
    %p278 = scmp.ne.s32.totalorder %s266, %s267
    %p279 = scmp.eq.s32.totalorder %s26, 1
    %p280 = por %p278, %p279
    %p282 = scmp.ne.s32.totalorder %s267, %s281
    %p283 = scmp.eq.s32.totalorder %s26, 0
    %p284 = por %p282, %p283
    %s286 = sadd.s32 %s285, 1
    %p289 = scmp.eq.s32.totalorder %s20, 1
    %p290 = scmp.ne.s32.totalorder %s285, %s287
    %p291 = scmp.eq.s32.totalorder %s20, 0
    %p292 = por %p290, %p291
    %p293 = scmp.ne.s32.totalorder %s285, %s287
    %p294 = scmp.eq.s32.totalorder %s25, 1
    %p295 = por %p293, %p294
    %p296 = scmp.ne.s32.totalorder %s287, %s288
    %p297 = scmp.eq.s32.totalorder %s25, 0
    %p298 = por %p296, %p297
    %p299 = scmp.ne.s32.totalorder %s287, %s288
    %p300 = scmp.eq.s32.totalorder %s26, 1
    %p301 = por %p299, %p300
    %p303 = scmp.ne.s32.totalorder %s288, %s302
    %p304 = scmp.eq.s32.totalorder %s26, 0
    %p305 = por %p303, %p304
    %s307 = sadd.s32 %s306, 1
    %p310 = scmp.eq.s32.totalorder %s20, 1
    %p311 = scmp.ne.s32.totalorder %s306, %s308
    %p312 = scmp.eq.s32.totalorder %s20, 0
    %p313 = por %p311, %p312
    %p314 = scmp.ne.s32.totalorder %s306, %s308
    %p315 = scmp.eq.s32.totalorder %s25, 1
    %p316 = por %p314, %p315
    %p317 = scmp.ne.s32.totalorder %s308, %s309
    %p318 = scmp.eq.s32.totalorder %s25, 0
    %p319 = por %p317, %p318
    %p320 = scmp.ne.s32.totalorder %s308, %s309
    %p321 = scmp.eq.s32.totalorder %s26, 1
    %p322 = por %p320, %p321
    %p324 = scmp.ne.s32.totalorder %s309, %s323
    %p325 = scmp.eq.s32.totalorder %s26, 0
    %p326 = por %p324, %p325
    %s327 = ssub.s32 %s20, %s27
    %p328 = scmp.eq.s32.totalorder %s327, 0
    %s330 = sadd.s32 %s329, 1
    %s331 = scalar_select %p328, %s329, %s330
    %p334 = pneg %p328
    %p335 = scmp.eq.s32.totalorder %s20, 1
    %p336 = por %p334, %p335
    %p337 = scmp.ne.s32.totalorder %s329, %s332
    %p338 = scmp.eq.s32.totalorder %s20, 0
    %p339 = por %p337, %p338
    %p340 = scmp.ne.s32.totalorder %s329, %s332
    %p341 = scmp.eq.s32.totalorder %s25, 1
    %p342 = por %p340, %p341
    %p343 = scmp.ne.s32.totalorder %s332, %s333
    %p344 = scmp.eq.s32.totalorder %s25, 0
    %p345 = por %p343, %p344
    %p346 = scmp.ne.s32.totalorder %s332, %s333
    %p347 = scmp.eq.s32.totalorder %s26, 1
    %p348 = por %p346, %p347
    %p350 = scmp.ne.s32.totalorder %s333, %s349
    %p351 = scmp.eq.s32.totalorder %s26, 0
    %p352 = por %p350, %p351
    %p353 = scmp.le.s32.totalorder 1, %s20
    %p354 = scmp.lt.s32.totalorder %s20, 3
    %p355 = pnand %p353, %p354
    %p356 = pneg %p355
    // Predicated region
    $region9: #{tpu_custom_call.1} parent=5 // pred_check
      _
    $region10: #{tpu_custom_call.1} parent=5 // pred_check_branch
      %358 = sbr.rel (%p355) target = $region12
    $region11: #{tpu_custom_call.1} parent=5 // pred_region
      %s359 = ssub.s32 %s20, 1
      // Predicated region
      $region13: #{tpu_custom_call.1} parent=11 // pred_check
        %p360 = pneg %p67
      $region14: #{tpu_custom_call.1} parent=11 // pred_check_branch
        %362 = sbr.rel (%p360) target = $region16
      $region15: #{tpu_custom_call.1} parent=11 // pred_region
        _
      $region16: #{tpu_custom_call.1} parent=11 // pred_fallthru
        _
      // Predicated region
      $region17: #{tpu_custom_call.1} parent=11 // pred_check
        %p363 = pneg %p88
      $region18: #{tpu_custom_call.1} parent=11 // pred_check_branch
        %365 = sbr.rel (%p363) target = $region20
      $region19: #{tpu_custom_call.1} parent=11 // pred_region
        _
      $region20: #{tpu_custom_call.1} parent=11 // pred_fallthru
        _
      // Predicated region
      $region21: #{tpu_custom_call.1} parent=11 // pred_check
        %p366 = pneg %p109
      $region22: #{tpu_custom_call.1} parent=11 // pred_check_branch
        %368 = sbr.rel (%p366) target = $region24
      $region23: #{tpu_custom_call.1} parent=11 // pred_region
        _
      $region24: #{tpu_custom_call.1} parent=11 // pred_fallthru
        _
      // Predicated region
      $region25: #{tpu_custom_call.1} parent=11 // pred_check
        %p369 = pneg %p130
      $region26: #{tpu_custom_call.1} parent=11 // pred_check_branch
        %371 = sbr.rel (%p369) target = $region28
      $region27: #{tpu_custom_call.1} parent=11 // pred_region
        _
      $region28: #{tpu_custom_call.1} parent=11 // pred_fallthru
        _
      // Predicated region
      $region29: #{tpu_custom_call.1} parent=11 // pred_check
        %p372 = pneg %p151
      $region30: #{tpu_custom_call.1} parent=11 // pred_check_branch
        %374 = sbr.rel (%p372) target = $region32
      $region31: #{tpu_custom_call.1} parent=11 // pred_region
        _
      $region32: #{tpu_custom_call.1} parent=11 // pred_fallthru
        _
      // Predicated region
      $region33: #{tpu_custom_call.1} parent=11 // pred_check
        %p375 = pneg %p172
      $region34: #{tpu_custom_call.1} parent=11 // pred_check_branch
        %377 = sbr.rel (%p375) target = $region36
      $region35: #{tpu_custom_call.1} parent=11 // pred_region
        _
      $region36: #{tpu_custom_call.1} parent=11 // pred_fallthru
        _
      // Predicated region
      $region37: #{tpu_custom_call.1} parent=11 // pred_check
        %p378 = pneg %p193
      $region38: #{tpu_custom_call.1} parent=11 // pred_check_branch
        %380 = sbr.rel (%p378) target = $region40
      $region39: #{tpu_custom_call.1} parent=11 // pred_region
        _
      $region40: #{tpu_custom_call.1} parent=11 // pred_fallthru
        _
      // Predicated region
      $region41: #{tpu_custom_call.1} parent=11 // pred_check
        %p381 = pneg %p214
      $region42: #{tpu_custom_call.1} parent=11 // pred_check_branch
        %383 = sbr.rel (%p381) target = $region44
      $region43: #{tpu_custom_call.1} parent=11 // pred_region
        _
      $region44: #{tpu_custom_call.1} parent=11 // pred_fallthru
        _
      // Predicated region
      $region45: #{tpu_custom_call.1} parent=11 // pred_check
        %p384 = pneg %p235
      $region46: #{tpu_custom_call.1} parent=11 // pred_check_branch
        %386 = sbr.rel (%p384) target = $region48
      $region47: #{tpu_custom_call.1} parent=11 // pred_region
        _
      $region48: #{tpu_custom_call.1} parent=11 // pred_fallthru
        _
      // Predicated region
      $region49: #{tpu_custom_call.1} parent=11 // pred_check
        %p387 = pneg %p256
      $region50: #{tpu_custom_call.1} parent=11 // pred_check_branch
        %389 = sbr.rel (%p387) target = $region52
      $region51: #{tpu_custom_call.1} parent=11 // pred_region
        _
      $region52: #{tpu_custom_call.1} parent=11 // pred_fallthru
        _
      // Predicated region
      $region53: #{tpu_custom_call.1} parent=11 // pred_check
        %p390 = pneg %p277
      $region54: #{tpu_custom_call.1} parent=11 // pred_check_branch
        %392 = sbr.rel (%p390) target = $region56
      $region55: #{tpu_custom_call.1} parent=11 // pred_region
        _
      $region56: #{tpu_custom_call.1} parent=11 // pred_fallthru
        _
      // Predicated region
      $region57: #{tpu_custom_call.1} parent=11 // pred_check
        %p393 = pneg %p298
      $region58: #{tpu_custom_call.1} parent=11 // pred_check_branch
        %395 = sbr.rel (%p393) target = $region60
      $region59: #{tpu_custom_call.1} parent=11 // pred_region
        _
      $region60: #{tpu_custom_call.1} parent=11 // pred_fallthru
        _
      // Predicated region
      $region61: #{tpu_custom_call.1} parent=11 // pred_check
        %p396 = pneg %p319
      $region62: #{tpu_custom_call.1} parent=11 // pred_check_branch
        %398 = sbr.rel (%p396) target = $region64
      $region63: #{tpu_custom_call.1} parent=11 // pred_region
        _
      $region64: #{tpu_custom_call.1} parent=11 // pred_fallthru
        _
    $region12: #{tpu_custom_call.1} parent=5 // pred_fallthru
      _
    %p399 = scmp.lt.s32.totalorder %s20, 2
    // Predicated region
    $region65: #{tpu_custom_call.1} parent=5 // pred_check
      %p400 = pneg %p399
    $region66: #{tpu_custom_call.1} parent=5 // pred_check_branch
      %402 = sbr.rel (%p400) target = $region68
    $region67: #{tpu_custom_call.1} parent=5 // pred_region
      // Predicated region
      $region69: #{tpu_custom_call.1} parent=67 // pred_check
        %p403 = pneg %p40
      $region70: #{tpu_custom_call.1} parent=67 // pred_check_branch
        %405 = sbr.rel (%p403) target = $region72
      $region71: #{tpu_custom_call.1} parent=67 // pred_region
        %s406 = smul.u32 8, %s20
        %p407 = scmp.lt.s32.totalorder %s406, 15
        %s408 = scalar_select %p407, %s406, 15
        %s409 = smul.addr %s408, 4
        %s410 = scalar_lea.vmem %s0, %s409
        %s411 = smul.u32 8, %s20
      $region72: #{tpu_custom_call.1} parent=67 // pred_fallthru
        _
    $region68: #{tpu_custom_call.1} parent=5 // pred_fallthru
      _
    %p412 = scmp.le.s32.totalorder 1, %s20
    %p413 = scmp.lt.s32.totalorder %s20, 3
    %p414 = pnand %p412, %p413
    %p415 = pneg %p414
    // Predicated region
    $region73: #{tpu_custom_call.1} parent=5 // pred_check
      _
    $region74: #{tpu_custom_call.1} parent=5 // pred_check_branch
      %417 = sbr.rel (%p414) target = $region76
    $region75: #{tpu_custom_call.1} parent=5 // pred_region
      %s418 = ssub.s32 %s20, 1
      %s419 = smul.u32 8, %s25
      %p420 = scmp.lt.s32.totalorder %s419, 15
      %s421 = scalar_select %p420, %s419, 15
      %s422 = smul.addr %s421, 4
      %s423 = scalar_lea.vmem %s0, %s422
      %p424 = pneg %p46
      %p425 = pneg %p43
      %p426 = pneg %p67
      %p427 = pneg %p64
      %p428 = pneg %p88
      %p429 = pneg %p85
      %p430 = pneg %p109
      %p431 = pneg %p106
      %p432 = pneg %p130
      %p433 = pneg %p127
      %p434 = pneg %p151
      %p435 = pneg %p148
      %p436 = pneg %p172
      %p437 = pneg %p169
      %p438 = pneg %p193
      %p439 = pneg %p190
      %p440 = pneg %p214
      %p441 = pneg %p211
      %p442 = pneg %p235
      %p443 = pneg %p232
      %p444 = pneg %p256
      %p445 = pneg %p253
      %p446 = pneg %p277
      %p447 = pneg %p274
      %p448 = pneg %p298
      %p449 = pneg %p295
      %p450 = pneg %p319
      %p451 = pneg %p316
      %p452 = pneg %p345
      %p453 = pneg %p342
      %s454 = smul.u32 8, %s25
      %p455 = scmp.lt.s32.totalorder %s454, 15
      %s456 = scalar_select %p455, %s454, 15
      %s457 = smul.addr %s456, 8
      %s458 = scalar_lea.vmem %s14, %s457
      %s459 = smul.u32 8, %s25
      %p460 = scmp.lt.s32.totalorder %s459, 15
      %s461 = scalar_select %p460, %s459, 15
      %s462 = smul.addr %s461, 4
      %s463 = scalar_lea.vmem %s0, %s462
      %s464 = smul.u32 8, %s25
      %s465 = smul.u32 8, %s25
      %p466 = scmp.lt.s32.totalorder %s465, 15
      %s467 = scalar_select %p466, %s465, 15
      %s468 = smul.addr %s467, 8
      %s469 = scalar_lea.vmem %s14, %s468
      %s470 = smul.u32 8, %s25
      %v472 = vld [vmem:[%s463] sm:$0xf]
      %v473 = vld [vmem:[%s463 + $0x4] sm:$0xf]
      %v474 = vld [vmem:[%s463 + $0x8] sm:$0xf]
      %v475 = vld [vmem:[%s463 + $0xc] sm:$0xf]
      %v476 = vld [vmem:[%s463 + $0x10] sm:$0xf]
      %v477 = vld [vmem:[%s463 + $0x14] sm:$0xf]
      %v478 = vld [vmem:[%s463 + $0x18] sm:$0xf]
      %v479 = vld [vmem:[%s463 + $0x1c] sm:$0xf]
      %v480 = vld [vmem:[%s3] sm:$0xf]
      %v481 = vld [vmem:[%s3 + $0x4] sm:$0xf]
      %v482 = vld [vmem:[%s4] sm:$0x1]
      %v484 = vperm.slane %v482, 0
      %v494 = vunpack.c.l.b16 %v472
      %v495 = vunpack.c.l.b16 %v473
      %v496 = vunpack.c.l.b16 %v474
      %v497 = vunpack.c.l.b16 %v475
      %v498 = vunpack.c.l.b16 %v476
      %v499 = vunpack.c.l.b16 %v477
      %v500 = vunpack.c.l.b16 %v478
      %v501 = vunpack.c.l.b16 %v479
      %v502 = vpack.c.b16 %v495, %v494
      %v503 = vpack.c.b16 %v497, %v496
      %v504 = vpack.c.b16 %v499, %v498
      %v505 = vpack.c.b16 %v501, %v500
      %v508 = vunpack.c.l.b16 %v480
      %v509 = vunpack.c.l.b16 %v481
      %v510 = vpack.c.b16 %v509, %v508
      %vm512 = vcmask 130048
      %v514 = vsel %vm512, %v502, 0
      %v517 = vsel %vm512, %v503, 0
      %v520 = vsel %vm512, %v504, 0
      %v523 = vsel %vm512, %v505, 0
      %525 = vmatpush.bf16.msra.mxu0 0
      %526 = vmatpush.bf16.msra.mxu0 0
      %527 = vmatpush.bf16.msra.mxu0 0
      %528 = vmatpush.bf16.msra.mxu0 0
      %529 = vmatpush.bf16.msra.mxu0 0
      %530 = vmatpush.bf16.msra.mxu0 0
      %531 = vmatpush.bf16.msra.mxu0 0
      %532 = vmatpush.bf16.msra.mxu0 %v510
      %533 = vmatmul.bf16.gmra.mxu0 %v514
      %v534 = vpop.f32.mrf.mxu0
      %v535 = vadd.f32 %v484, %v534
      %v536 = vpop.f32.mrf.mxu0
      %v537 = vadd.f32 %v484, %v536
      %538 = vmatmul.bf16.gmra.mxu0 %v517
      %v539 = vpop.f32.mrf.mxu0
      %v540 = vadd.f32 %v484, %v539
      %v541 = vpop.f32.mrf.mxu0
      %v542 = vadd.f32 %v484, %v541
      %543 = vmatmul.bf16.gmra.mxu0 %v520
      %v544 = vpop.f32.mrf.mxu0
      %v545 = vadd.f32 %v484, %v544
      %v546 = vpop.f32.mrf.mxu0
      %v547 = vadd.f32 %v484, %v546
      %548 = vmatmul.bf16.gmra.mxu0 %v523
      %v549 = vpop.f32.mrf.mxu0
      %v550 = vadd.f32 %v484, %v549
      %v551 = vpop.f32.mrf.mxu0
      %v552 = vadd.f32 %v484, %v551
      %553 = vdwg.mxu0
      %vm554 = vcmp.ge.f32.partialorder %v535, 0.0
      %vm555 = vcmp.ge.f32.partialorder %v537, 0.0
      %vm556 = vcmp.ge.f32.partialorder %v540, 0.0
      %vm557 = vcmp.ge.f32.partialorder %v542, 0.0
      %vm558 = vcmp.ge.f32.partialorder %v545, 0.0
      %vm559 = vcmp.ge.f32.partialorder %v547, 0.0
      %vm560 = vcmp.ge.f32.partialorder %v550, 0.0
      %vm561 = vcmp.ge.f32.partialorder %v552, 0.0
      %v562 = vmul.f32 %v535, 0.01
      %v563 = vmul.f32 %v537, 0.01
      %v564 = vmul.f32 %v540, 0.01
      %v565 = vmul.f32 %v542, 0.01
      %v566 = vmul.f32 %v545, 0.01
      %v567 = vmul.f32 %v547, 0.01
      %v568 = vmul.f32 %v550, 0.01
      %v569 = vmul.f32 %v552, 0.01
      %v570 = vsel %vm554, %v535, %v562
      %v571 = vsel %vm555, %v537, %v563
      %v572 = vsel %vm556, %v540, %v564
      %v573 = vsel %vm557, %v542, %v565
      %v574 = vsel %vm558, %v545, %v566
      %v575 = vsel %vm559, %v547, %v567
      %v576 = vsel %vm560, %v550, %v568
      %v577 = vsel %vm561, %v552, %v569
      %v578 = vpack.c.bf16 %v571, %v570
      %v579 = vpack.c.bf16 %v573, %v572
      %v580 = vpack.c.bf16 %v575, %v574
      %v581 = vpack.c.bf16 %v577, %v576
      %v582 = vld [vmem:[%s5] sm:$0xf]
      %v583 = vld [vmem:[%s5 + $0x4] sm:$0xf]
      %v584 = vld [vmem:[%s5 + $0x8] sm:$0xf]
      %v585 = vld [vmem:[%s5 + $0xc] sm:$0xf]
      %v586 = vld [vmem:[%s5 + $0x10] sm:$0xf]
      %v587 = vld [vmem:[%s5 + $0x14] sm:$0xf]
      %v588 = vld [vmem:[%s5 + $0x18] sm:$0xf]
      %v589 = vld [vmem:[%s5 + $0x1c] sm:$0xf]
      %v590 = vld [vmem:[%s6] sm:$0x1]
      %v592 = vperm.slane %v590, 0
      %v602 = vunpack.c.l.b16 %v582
      %v603 = vunpack.c.l.b16 %v583
      %v604 = vunpack.c.l.b16 %v584
      %v605 = vunpack.c.l.b16 %v585
      %v606 = vunpack.c.l.b16 %v586
      %v607 = vunpack.c.l.b16 %v587
      %v608 = vunpack.c.l.b16 %v588
      %v609 = vunpack.c.l.b16 %v589
      %v610 = vpack.c.b16 %v603, %v602
      %v611 = vpack.c.b16 %v605, %v604
      %v612 = vpack.c.b16 %v607, %v606
      %v613 = vpack.c.b16 %v609, %v608
      %vm618 = vcmask 523264
      %v620 = vsel %vm618, %v578, 0
      %v623 = vsel %vm618, %v579, 0
      %v626 = vsel %vm618, %v580, 0
      %v629 = vsel %vm618, %v581, 0
      %631 = vmatpush.bf16.msra.mxu0 0
      %632 = vmatpush.bf16.msra.mxu0 0
      %633 = vmatpush.bf16.msra.mxu0 0
      %634 = vmatpush.bf16.msra.mxu0 0
      %635 = vmatpush.bf16.msra.mxu0 %v613
      %636 = vmatpush.bf16.msra.mxu0 %v612
      %637 = vmatpush.bf16.msra.mxu0 %v611
      %638 = vmatpush.bf16.msra.mxu0 %v610
      %639 = vmatmul.bf16.gmra.mxu0 %v620
      %v640 = vpop.f32.mrf.mxu0
      %v641 = vadd.f32 %v592, %v640
      %v642 = vpop.f32.mrf.mxu0
      %v643 = vadd.f32 %v592, %v642
      %644 = vmatmul.bf16.gmra.mxu0 %v623
      %v645 = vpop.f32.mrf.mxu0
      %v646 = vadd.f32 %v592, %v645
      %v647 = vpop.f32.mrf.mxu0
      %v648 = vadd.f32 %v592, %v647
      %649 = vmatmul.bf16.gmra.mxu0 %v626
      %v650 = vpop.f32.mrf.mxu0
      %v651 = vadd.f32 %v592, %v650
      %v652 = vpop.f32.mrf.mxu0
      %v653 = vadd.f32 %v592, %v652
      %654 = vmatmul.bf16.gmra.mxu0 %v629
      %v655 = vpop.f32.mrf.mxu0
      %v656 = vadd.f32 %v592, %v655
      %v657 = vpop.f32.mrf.mxu0
      %v658 = vadd.f32 %v592, %v657
      %659 = vdwg.mxu0
      %vm660 = vcmp.ge.f32.partialorder %v641, 0.0
      %vm661 = vcmp.ge.f32.partialorder %v643, 0.0
      %vm662 = vcmp.ge.f32.partialorder %v646, 0.0
      %vm663 = vcmp.ge.f32.partialorder %v648, 0.0
      %vm664 = vcmp.ge.f32.partialorder %v651, 0.0
      %vm665 = vcmp.ge.f32.partialorder %v653, 0.0
      %vm666 = vcmp.ge.f32.partialorder %v656, 0.0
      %vm667 = vcmp.ge.f32.partialorder %v658, 0.0
      %v668 = vmul.f32 %v641, 0.01
      %v669 = vmul.f32 %v643, 0.01
      %v670 = vmul.f32 %v646, 0.01
      %v671 = vmul.f32 %v648, 0.01
      %v672 = vmul.f32 %v651, 0.01
      %v673 = vmul.f32 %v653, 0.01
      %v674 = vmul.f32 %v656, 0.01
      %v675 = vmul.f32 %v658, 0.01
      %v676 = vsel %vm660, %v641, %v668
      %v677 = vsel %vm661, %v643, %v669
      %v678 = vsel %vm662, %v646, %v670
      %v679 = vsel %vm663, %v648, %v671
      %v680 = vsel %vm664, %v651, %v672
      %v681 = vsel %vm665, %v653, %v673
      %v682 = vsel %vm666, %v656, %v674
      %v683 = vsel %vm667, %v658, %v675
      %v684 = vpack.c.bf16 %v677, %v676
      %v685 = vpack.c.bf16 %v679, %v678
      %v686 = vpack.c.bf16 %v681, %v680
      %v687 = vpack.c.bf16 %v683, %v682
      %v688 = vld [vmem:[%s7] sm:$0xf]
      %v689 = vld [vmem:[%s7 + $0x4] sm:$0xf]
      %v690 = vld [vmem:[%s7 + $0x8] sm:$0xf]
      %v691 = vld [vmem:[%s7 + $0xc] sm:$0xf]
      %v692 = vld [vmem:[%s7 + $0x10] sm:$0xf]
      %v693 = vld [vmem:[%s7 + $0x14] sm:$0xf]
      %v694 = vld [vmem:[%s7 + $0x18] sm:$0xf]
      %v695 = vld [vmem:[%s7 + $0x1c] sm:$0xf]
      %v696 = vld [vmem:[%s8] sm:$0x1]
      %v698 = vperm.slane %v696, 0
      %v708 = vunpack.c.l.b16 %v688
      %v709 = vunpack.c.l.b16 %v689
      %v710 = vunpack.c.l.b16 %v690
      %v711 = vunpack.c.l.b16 %v691
      %v712 = vunpack.c.l.b16 %v692
      %v713 = vunpack.c.l.b16 %v693
      %v714 = vunpack.c.l.b16 %v694
      %v715 = vunpack.c.l.b16 %v695
      %v716 = vpack.c.b16 %v709, %v708
      %v717 = vpack.c.b16 %v711, %v710
      %v718 = vpack.c.b16 %v713, %v712
      %v719 = vpack.c.b16 %v715, %v714
      %v725 = vsel %vm618, %v684, 0
      %v728 = vsel %vm618, %v685, 0
      %v731 = vsel %vm618, %v686, 0
      %v734 = vsel %vm618, %v687, 0
      %736 = vmatpush.bf16.msra.mxu0 0
      %737 = vmatpush.bf16.msra.mxu0 0
      %738 = vmatpush.bf16.msra.mxu0 0
      %739 = vmatpush.bf16.msra.mxu0 0
      %740 = vmatpush.bf16.msra.mxu0 %v719
      %741 = vmatpush.bf16.msra.mxu0 %v718
      %742 = vmatpush.bf16.msra.mxu0 %v717
      %743 = vmatpush.bf16.msra.mxu0 %v716
      %744 = vmatmul.bf16.gmra.mxu0 %v725
      %v745 = vpop.f32.mrf.mxu0
      %v746 = vadd.f32 %v698, %v745
      %v747 = vpop.f32.mrf.mxu0
      %v748 = vadd.f32 %v698, %v747
      %749 = vmatmul.bf16.gmra.mxu0 %v728
      %v750 = vpop.f32.mrf.mxu0
      %v751 = vadd.f32 %v698, %v750
      %v752 = vpop.f32.mrf.mxu0
      %v753 = vadd.f32 %v698, %v752
      %754 = vmatmul.bf16.gmra.mxu0 %v731
      %v755 = vpop.f32.mrf.mxu0
      %v756 = vadd.f32 %v698, %v755
      %v757 = vpop.f32.mrf.mxu0
      %v758 = vadd.f32 %v698, %v757
      %759 = vmatmul.bf16.gmra.mxu0 %v734
      %v760 = vpop.f32.mrf.mxu0
      %v761 = vadd.f32 %v698, %v760
      %v762 = vpop.f32.mrf.mxu0
      %v763 = vadd.f32 %v698, %v762
      %764 = vdwg.mxu0
      %vm765 = vcmask 31744
      %v766 = vsel %vm765, %v746, -inf
      %767 = vmax.xlane.f32.xlu0 %v766
      %v768 = vpop.xlane.xlu0 %767
      %v769 = vsel %vm765, %v748, -inf
      %770 = vmax.xlane.f32.xlu0 %v769
      %v771 = vpop.xlane.xlu0 %770
      %v772 = vsel %vm765, %v751, -inf
      %773 = vmax.xlane.f32.xlu0 %v772
      %v774 = vpop.xlane.xlu0 %773
      %v775 = vsel %vm765, %v753, -inf
      %776 = vmax.xlane.f32.xlu0 %v775
      %v777 = vpop.xlane.xlu0 %776
      %v778 = vsel %vm765, %v756, -inf
      %779 = vmax.xlane.f32.xlu0 %v778
      %v780 = vpop.xlane.xlu0 %779
      %v781 = vsel %vm765, %v758, -inf
      %782 = vmax.xlane.f32.xlu0 %v781
      %v783 = vpop.xlane.xlu0 %782
      %v784 = vsel %vm765, %v761, -inf
      %785 = vmax.xlane.f32.xlu0 %v784
      %v786 = vpop.xlane.xlu0 %785
      %v787 = vsel %vm765, %v763, -inf
      %788 = vmax.xlane.f32.xlu0 %v787
      %v789 = vpop.xlane.xlu0 %788
      %v790 = vsub.f32 %v746, %v768
      %v791 = vsub.f32 %v748, %v771
      %v792 = vsub.f32 %v751, %v774
      %v793 = vsub.f32 %v753, %v777
      %v794 = vsub.f32 %v756, %v780
      %v795 = vsub.f32 %v758, %v783
      %v796 = vsub.f32 %v761, %v786
      %v797 = vsub.f32 %v763, %v789
      %v798 = vmul.f32 %v790, 1.442695
      %v799 = vpow.pop %v798
      %v800 = vmul.f32 %v791, 1.442695
      %v801 = vpow.pop %v800
      %v802 = vmul.f32 %v792, 1.442695
      %v803 = vpow.pop %v802
      %v804 = vmul.f32 %v793, 1.442695
      %v805 = vpow.pop %v804
      %v806 = vmul.f32 %v794, 1.442695
      %v807 = vpow.pop %v806
      %v808 = vmul.f32 %v795, 1.442695
      %v809 = vpow.pop %v808
      %v810 = vmul.f32 %v796, 1.442695
      %v811 = vpow.pop %v810
      %v812 = vmul.f32 %v797, 1.442695
      %v813 = vpow.pop %v812
      %v814 = vsel %vm765, %v799, 0.0
      %815 = vadd.xlane.f32.xlu0 %v814
      %v816 = vpop.xlane.xlu0 %815
      %v817 = vsel %vm765, %v801, 0.0
      %818 = vadd.xlane.f32.xlu0 %v817
      %v819 = vpop.xlane.xlu0 %818
      %v820 = vsel %vm765, %v803, 0.0
      %821 = vadd.xlane.f32.xlu0 %v820
      %v822 = vpop.xlane.xlu0 %821
      %v823 = vsel %vm765, %v805, 0.0
      %824 = vadd.xlane.f32.xlu0 %v823
      %v825 = vpop.xlane.xlu0 %824
      %v826 = vsel %vm765, %v807, 0.0
      %827 = vadd.xlane.f32.xlu0 %v826
      %v828 = vpop.xlane.xlu0 %827
      %v829 = vsel %vm765, %v809, 0.0
      %830 = vadd.xlane.f32.xlu0 %v829
      %v831 = vpop.xlane.xlu0 %830
      %v832 = vsel %vm765, %v811, 0.0
      %833 = vadd.xlane.f32.xlu0 %v832
      %v834 = vpop.xlane.xlu0 %833
      %v835 = vsel %vm765, %v813, 0.0
      %836 = vadd.xlane.f32.xlu0 %v835
      %v837 = vpop.xlane.xlu0 %836
      %v838 = vrcp.pop %v816
      %v839 = vmul.f32 %v816, %v838
      %v840 = vsub.f32 1.0, %v839
      %v841 = vmul.f32 %v838, %v840
      %v842 = vadd.f32 %v838, %v841
      %vm843 = vweird.f32 %v816
      %vm844 = vweird.f32 %v838
      %vm845 = vmor %vm843, %vm844
      %v846 = vsel %vm845, %v838, %v842
      %v847 = vand.u32 2147483647, %v816
      %vm848 = vcmp.eq.f32.partialorder %v847, 8.507059e+37
      %v849 = vand.u32 %v816, 2147483648
      %v850 = vor.u32 1.1754944e-38, %v849
      %v851 = vsel %vm848, %v850, %v846
      %v852 = vmul.f32 %v799, %v851
      %v853 = vrcp.pop %v819
      %v854 = vmul.f32 %v819, %v853
      %v855 = vsub.f32 1.0, %v854
      %v856 = vmul.f32 %v853, %v855
      %v857 = vadd.f32 %v853, %v856
      %vm858 = vweird.f32 %v819
      %vm859 = vweird.f32 %v853
      %vm860 = vmor %vm858, %vm859
      %v861 = vsel %vm860, %v853, %v857
      %v862 = vand.u32 2147483647, %v819
      %vm863 = vcmp.eq.f32.partialorder %v862, 8.507059e+37
      %v864 = vand.u32 %v819, 2147483648
      %v865 = vor.u32 1.1754944e-38, %v864
      %v866 = vsel %vm863, %v865, %v861
      %v867 = vmul.f32 %v801, %v866
      %v868 = vrcp.pop %v822
      %v869 = vmul.f32 %v822, %v868
      %v870 = vsub.f32 1.0, %v869
      %v871 = vmul.f32 %v868, %v870
      %v872 = vadd.f32 %v868, %v871
      %vm873 = vweird.f32 %v822
      %vm874 = vweird.f32 %v868
      %vm875 = vmor %vm873, %vm874
      %v876 = vsel %vm875, %v868, %v872
      %v877 = vand.u32 2147483647, %v822
      %vm878 = vcmp.eq.f32.partialorder %v877, 8.507059e+37
      %v879 = vand.u32 %v822, 2147483648
      %v880 = vor.u32 1.1754944e-38, %v879
      %v881 = vsel %vm878, %v880, %v876
      %v882 = vmul.f32 %v803, %v881
      %v883 = vrcp.pop %v825
      %v884 = vmul.f32 %v825, %v883
      %v885 = vsub.f32 1.0, %v884
      %v886 = vmul.f32 %v883, %v885
      %v887 = vadd.f32 %v883, %v886
      %vm888 = vweird.f32 %v825
      %vm889 = vweird.f32 %v883
      %vm890 = vmor %vm888, %vm889
      %v891 = vsel %vm890, %v883, %v887
      %v892 = vand.u32 2147483647, %v825
      %vm893 = vcmp.eq.f32.partialorder %v892, 8.507059e+37
      %v894 = vand.u32 %v825, 2147483648
      %v895 = vor.u32 1.1754944e-38, %v894
      %v896 = vsel %vm893, %v895, %v891
      %v897 = vmul.f32 %v805, %v896
      %v898 = vrcp.pop %v828
      %v899 = vmul.f32 %v828, %v898
      %v900 = vsub.f32 1.0, %v899
      %v901 = vmul.f32 %v898, %v900
      %v902 = vadd.f32 %v898, %v901
      %vm903 = vweird.f32 %v828
      %vm904 = vweird.f32 %v898
      %vm905 = vmor %vm903, %vm904
      %v906 = vsel %vm905, %v898, %v902
      %v907 = vand.u32 2147483647, %v828
      %vm908 = vcmp.eq.f32.partialorder %v907, 8.507059e+37
      %v909 = vand.u32 %v828, 2147483648
      %v910 = vor.u32 1.1754944e-38, %v909
      %v911 = vsel %vm908, %v910, %v906
      %v912 = vmul.f32 %v807, %v911
      %v913 = vrcp.pop %v831
      %v914 = vmul.f32 %v831, %v913
      %v915 = vsub.f32 1.0, %v914
      %v916 = vmul.f32 %v913, %v915
      %v917 = vadd.f32 %v913, %v916
      %vm918 = vweird.f32 %v831
      %vm919 = vweird.f32 %v913
      %vm920 = vmor %vm918, %vm919
      %v921 = vsel %vm920, %v913, %v917
      %v922 = vand.u32 2147483647, %v831
      %vm923 = vcmp.eq.f32.partialorder %v922, 8.507059e+37
      %v924 = vand.u32 %v831, 2147483648
      %v925 = vor.u32 1.1754944e-38, %v924
      %v926 = vsel %vm923, %v925, %v921
      %v927 = vmul.f32 %v809, %v926
      %v928 = vrcp.pop %v834
      %v929 = vmul.f32 %v834, %v928
      %v930 = vsub.f32 1.0, %v929
      %v931 = vmul.f32 %v928, %v930
      %v932 = vadd.f32 %v928, %v931
      %vm933 = vweird.f32 %v834
      %vm934 = vweird.f32 %v928
      %vm935 = vmor %vm933, %vm934
      %v936 = vsel %vm935, %v928, %v932
      %v937 = vand.u32 2147483647, %v834
      %vm938 = vcmp.eq.f32.partialorder %v937, 8.507059e+37
      %v939 = vand.u32 %v834, 2147483648
      %v940 = vor.u32 1.1754944e-38, %v939
      %v941 = vsel %vm938, %v940, %v936
      %v942 = vmul.f32 %v811, %v941
      %v943 = vrcp.pop %v837
      %v944 = vmul.f32 %v837, %v943
      %v945 = vsub.f32 1.0, %v944
      %v946 = vmul.f32 %v943, %v945
      %v947 = vadd.f32 %v943, %v946
      %vm948 = vweird.f32 %v837
      %vm949 = vweird.f32 %v943
      %vm950 = vmor %vm948, %vm949
      %v951 = vsel %vm950, %v943, %v947
      %v952 = vand.u32 2147483647, %v837
      %vm953 = vcmp.eq.f32.partialorder %v952, 8.507059e+37
      %v954 = vand.u32 %v837, 2147483648
      %v955 = vor.u32 1.1754944e-38, %v954
      %v956 = vsel %vm953, %v955, %v951
      %v957 = vmul.f32 %v813, %v956
      %v958 = vpack.c.bf16 %v852, %v852
      %v959 = vpack.c.bf16 %v867, %v867
      %v960 = vpack.c.bf16 %v882, %v882
      %v961 = vpack.c.bf16 %v897, %v897
      %v962 = vpack.c.bf16 %v912, %v912
      %v963 = vpack.c.bf16 %v927, %v927
      %v964 = vpack.c.bf16 %v942, %v942
      %v965 = vpack.c.bf16 %v957, %v957
      %v966 = vld [vmem:[%s1] sm:$0xf]
      %v975 = vunpack.c.l.b16 %v958
      %v976 = vunpack.c.l.b16 %v959
      %v977 = vunpack.c.l.b16 %v960
      %v978 = vunpack.c.l.b16 %v961
      %v979 = vunpack.c.l.b16 %v962
      %v980 = vunpack.c.l.b16 %v963
      %v981 = vunpack.c.l.b16 %v964
      %v982 = vunpack.c.l.b16 %v965
      %v983 = vpack.c.b16 %v976, %v975
      %v984 = vpack.c.b16 %v978, %v977
      %v985 = vpack.c.b16 %v980, %v979
      %v986 = vpack.c.b16 %v982, %v981
      %v992 = vsel %vm618, %v966, 0
      %994 = vmatpush.bf16.msra.mxu0 0
      %995 = vmatpush.bf16.msra.mxu0 0
      %996 = vmatpush.bf16.msra.mxu0 0
      %997 = vmatpush.bf16.msra.mxu0 0
      %998 = vmatpush.bf16.msra.mxu0 %v986
      %999 = vmatpush.bf16.msra.mxu0 %v985
      %1000 = vmatpush.bf16.msra.mxu0 %v984
      %1001 = vmatpush.bf16.msra.mxu0 %v983
      %1002 = vmatmul.bf16.gmra.mxu0 %v992
      %v1003 = vpop.f32.mrf.mxu0
      %v1004 = vadd.f32 0.0, %v1003
      %v1005 = vpop.f32.mrf.mxu0
      %1006 = vdwg.mxu0
      %v1007 = vld [vmem:[%s2] sm:$0xf]
      %v1008 = vld [vmem:[%s2 + $0x4] sm:$0xf]
      %v1009 = vld [vmem:[%s2 + $0x8] sm:$0xf]
      %v1010 = vld [vmem:[%s2 + $0xc] sm:$0xf]
      %v1011 = vld [vmem:[%s2 + $0x10] sm:$0xf]
      %v1012 = vld [vmem:[%s2 + $0x14] sm:$0xf]
      %v1013 = vld [vmem:[%s2 + $0x18] sm:$0xf]
      %v1014 = vld [vmem:[%s2 + $0x1c] sm:$0xf]
      %v1015 = vpack.c.bf16 %v1004, %v1004
      %v1024 = vunpack.c.l.b16 %v1007
      %v1025 = vunpack.c.l.b16 %v1008
      %v1026 = vunpack.c.l.b16 %v1009
      %v1027 = vunpack.c.l.b16 %v1010
      %v1028 = vunpack.c.l.b16 %v1011
      %v1029 = vunpack.c.l.b16 %v1012
      %v1030 = vunpack.c.l.b16 %v1013
      %v1031 = vunpack.c.l.b16 %v1014
      %v1032 = vpack.c.b16 %v1025, %v1024
      %v1033 = vpack.c.b16 %v1027, %v1026
      %v1034 = vpack.c.b16 %v1029, %v1028
      %v1035 = vpack.c.b16 %v1031, %v1030
      %vm1036 = vcmask 64512
      %v1038 = vsel %vm1036, %v1032, 0
      %v1041 = vsel %vm1036, %v1033, 0
      %v1044 = vsel %vm1036, %v1034, 0
      %v1047 = vsel %vm1036, %v1035, 0
      %vm1049 = vcmask 1043456
      %v1051 = vsel %vm1049, %v1015, 0
      %1053 = vmatpush.bf16.msra.mxu0 0
      %1054 = vmatpush.bf16.msra.mxu0 0
      %1055 = vmatpush.bf16.msra.mxu0 0
      %1056 = vmatpush.bf16.msra.mxu0 0
      %1057 = vmatpush.bf16.msra.mxu0 0
      %1058 = vmatpush.bf16.msra.mxu0 0
      %1059 = vmatpush.bf16.msra.mxu0 0
      %1060 = vmatpush.bf16.msra.mxu0 %v1051
      %1061 = vmatmul.bf16.gmra.mxu0 %v1038
      %v1062 = vpop.f32.mrf.mxu0
      %v1063 = vadd.f32 0.0, %v1062
      %v1064 = vpop.f32.mrf.mxu0
      %v1065 = vadd.f32 0.0, %v1064
      %1066 = vmatmul.bf16.gmra.mxu0 %v1041
      %v1067 = vpop.f32.mrf.mxu0
      %v1068 = vadd.f32 0.0, %v1067
      %v1069 = vpop.f32.mrf.mxu0
      %v1070 = vadd.f32 0.0, %v1069
      %1071 = vmatmul.bf16.gmra.mxu0 %v1044
      %v1072 = vpop.f32.mrf.mxu0
      %v1073 = vadd.f32 0.0, %v1072
      %v1074 = vpop.f32.mrf.mxu0
      %v1075 = vadd.f32 0.0, %v1074
      %1076 = vmatmul.bf16.gmra.mxu0 %v1047
      %v1077 = vpop.f32.mrf.mxu0
      %v1078 = vadd.f32 0.0, %v1077
      %v1079 = vpop.f32.mrf.mxu0
      %v1080 = vadd.f32 0.0, %v1079
      %1081 = vdwg.mxu0
      %v1082 = vunpack.c.l.bf16 %v472
      %v1083 = vunpack.c.l.bf16 %v473
      %v1084 = vunpack.c.l.bf16 %v474
      %v1085 = vunpack.c.l.bf16 %v475
      %v1086 = vunpack.c.l.bf16 %v476
      %v1087 = vunpack.c.l.bf16 %v477
      %v1088 = vunpack.c.l.bf16 %v478
      %v1089 = vunpack.c.l.bf16 %v479
      %1091 = vset.pattern.permute.xlu0 0
      %1092 = vperm.xlu0 %1091, %v1063
      %v1093 = vpop.permute.xlu0 %1092
      %1096 = vset.pattern.permute.xlu0 0
      %1097 = vperm.xlu0 %1096, %v1065
      %v1098 = vpop.permute.xlu0 %1097
      %1101 = vset.pattern.permute.xlu0 0
      %1102 = vperm.xlu0 %1101, %v1068
      %v1103 = vpop.permute.xlu0 %1102
      %1106 = vset.pattern.permute.xlu0 0
      %1107 = vperm.xlu0 %1106, %v1070
      %v1108 = vpop.permute.xlu0 %1107
      %1111 = vset.pattern.permute.xlu0 0
      %1112 = vperm.xlu0 %1111, %v1073
      %v1113 = vpop.permute.xlu0 %1112
      %1116 = vset.pattern.permute.xlu0 0
      %1117 = vperm.xlu0 %1116, %v1075
      %v1118 = vpop.permute.xlu0 %1117
      %1121 = vset.pattern.permute.xlu0 0
      %1122 = vperm.xlu0 %1121, %v1078
      %v1123 = vpop.permute.xlu0 %1122
      %1126 = vset.pattern.permute.xlu0 0
      %1127 = vperm.xlu0 %1126, %v1080
      %v1128 = vpop.permute.xlu0 %1127
      %v1130 = vmul.f32 %v1093, %v1082
      %v1131 = vmul.f32 %v1098, %v1083
      %v1132 = vmul.f32 %v1103, %v1084
      %v1133 = vmul.f32 %v1108, %v1085
      %v1134 = vmul.f32 %v1113, %v1086
      %v1135 = vmul.f32 %v1118, %v1087
      %v1136 = vmul.f32 %v1123, %v1088
      %v1137 = vmul.f32 %v1128, %v1089
      %v1138 = vpack.c.bf16 %v1130, %v1130
      %v1139 = vpack.c.bf16 %v1131, %v1131
      %v1140 = vpack.c.bf16 %v1132, %v1132
      %v1141 = vpack.c.bf16 %v1133, %v1133
      %v1142 = vpack.c.bf16 %v1134, %v1134
      %v1143 = vpack.c.bf16 %v1135, %v1135
      %v1144 = vpack.c.bf16 %v1136, %v1136
      %v1145 = vpack.c.bf16 %v1137, %v1137
      %vm1146 = vcmask 125952
      %1147 = vst.msk [vmem:[#allocation2 + $0x4] sm:$0xf] %vm1146, %v1138
      %1148 = vst.msk [vmem:[#allocation2 + $0xc] sm:$0xf] %vm1146, %v1139
      %1149 = vst.msk [vmem:[#allocation2 + $0x14] sm:$0xf] %vm1146, %v1140
      %1150 = vst.msk [vmem:[#allocation2 + $0x1c] sm:$0xf] %vm1146, %v1141
      %1151 = vst.msk [vmem:[#allocation2 + $0x24] sm:$0xf] %vm1146, %v1142
      %1152 = vst.msk [vmem:[#allocation2 + $0x2c] sm:$0xf] %vm1146, %v1143
      %1153 = vst.msk [vmem:[#allocation2 + $0x34] sm:$0xf] %vm1146, %v1144
      %1154 = vst.msk [vmem:[#allocation2 + $0x3c] sm:$0xf] %vm1146, %v1145
      %1155 = vset.pattern.permute.xlu0 1
      %1156 = vperm.xlu0 %1155, %v1063
      %v1157 = vpop.permute.xlu0 %1156
      %1159 = vset.pattern.permute.xlu0 1
      %1160 = vperm.xlu0 %1159, %v1065
      %v1161 = vpop.permute.xlu0 %1160
      %1163 = vset.pattern.permute.xlu0 1
      %1164 = vperm.xlu0 %1163, %v1068
      %v1165 = vpop.permute.xlu0 %1164
      %1167 = vset.pattern.permute.xlu0 1
      %1168 = vperm.xlu0 %1167, %v1070
      %v1169 = vpop.permute.xlu0 %1168
      %1171 = vset.pattern.permute.xlu0 1
      %1172 = vperm.xlu0 %1171, %v1073
      %v1173 = vpop.permute.xlu0 %1172
      %1175 = vset.pattern.permute.xlu0 1
      %1176 = vperm.xlu0 %1175, %v1075
      %v1177 = vpop.permute.xlu0 %1176
      %1179 = vset.pattern.permute.xlu0 1
      %1180 = vperm.xlu0 %1179, %v1078
      %v1181 = vpop.permute.xlu0 %1180
      %1183 = vset.pattern.permute.xlu0 1
      %1184 = vperm.xlu0 %1183, %v1080
      %v1185 = vpop.permute.xlu0 %1184
      %v1187 = vmul.f32 %v1157, %v1082
      %v1188 = vmul.f32 %v1161, %v1083
      %v1189 = vmul.f32 %v1165, %v1084
      %v1190 = vmul.f32 %v1169, %v1085
      %v1191 = vmul.f32 %v1173, %v1086
      %v1192 = vmul.f32 %v1177, %v1087
      %v1193 = vmul.f32 %v1181, %v1088
      %v1194 = vmul.f32 %v1185, %v1089
      %v1195 = vpack.c.bf16 %v1187, %v1187
      %v1196 = vpack.c.bf16 %v1188, %v1188
      %v1197 = vpack.c.bf16 %v1189, %v1189
      %v1198 = vpack.c.bf16 %v1190, %v1190
      %v1199 = vpack.c.bf16 %v1191, %v1191
      %v1200 = vpack.c.bf16 %v1192, %v1192
      %v1201 = vpack.c.bf16 %v1193, %v1193
      %v1202 = vpack.c.bf16 %v1194, %v1194
      %1211 = vrot.lane.b32.xlu0 %v1195, 16
      %v1212 = vpop.permute.xlu0 %1211
      %1213 = vrot.lane.b32.xlu0 %v1196, 16
      %v1214 = vpop.permute.xlu0 %1213
      %1215 = vrot.lane.b32.xlu0 %v1197, 16
      %v1216 = vpop.permute.xlu0 %1215
      %1217 = vrot.lane.b32.xlu0 %v1198, 16
      %v1218 = vpop.permute.xlu0 %1217
      %1219 = vrot.lane.b32.xlu0 %v1199, 16
      %v1220 = vpop.permute.xlu0 %1219
      %1221 = vrot.lane.b32.xlu0 %v1200, 16
      %v1222 = vpop.permute.xlu0 %1221
      %1223 = vrot.lane.b32.xlu0 %v1201, 16
      %v1224 = vpop.permute.xlu0 %1223
      %1225 = vrot.lane.b32.xlu0 %v1202, 16
      %v1226 = vpop.permute.xlu0 %1225
      %vm1235 = vcmask 257152
      %1236 = vst.msk [vmem:[#allocation2 + $0x4] sm:$0xf] %vm1235, %v1212
      %1237 = vst.msk [vmem:[#allocation2 + $0xc] sm:$0xf] %vm1235, %v1214
      %1238 = vst.msk [vmem:[#allocation2 + $0x14] sm:$0xf] %vm1235, %v1216
      %1239 = vst.msk [vmem:[#allocation2 + $0x1c] sm:$0xf] %vm1235, %v1218
      %1240 = vst.msk [vmem:[#allocation2 + $0x24] sm:$0xf] %vm1235, %v1220
      %1241 = vst.msk [vmem:[#allocation2 + $0x2c] sm:$0xf] %vm1235, %v1222
      %1242 = vst.msk [vmem:[#allocation2 + $0x34] sm:$0xf] %vm1235, %v1224
      %1243 = vst.msk [vmem:[#allocation2 + $0x3c] sm:$0xf] %vm1235, %v1226
      %1244 = vset.pattern.permute.xlu0 2
      %1245 = vperm.xlu0 %1244, %v1063
      %v1246 = vpop.permute.xlu0 %1245
      %1248 = vset.pattern.permute.xlu0 2
      %1249 = vperm.xlu0 %1248, %v1065
      %v1250 = vpop.permute.xlu0 %1249
      %1252 = vset.pattern.permute.xlu0 2
      %1253 = vperm.xlu0 %1252, %v1068
      %v1254 = vpop.permute.xlu0 %1253
      %1256 = vset.pattern.permute.xlu0 2
      %1257 = vperm.xlu0 %1256, %v1070
      %v1258 = vpop.permute.xlu0 %1257
      %1260 = vset.pattern.permute.xlu0 2
      %1261 = vperm.xlu0 %1260, %v1073
      %v1262 = vpop.permute.xlu0 %1261
      %1264 = vset.pattern.permute.xlu0 2
      %1265 = vperm.xlu0 %1264, %v1075
      %v1266 = vpop.permute.xlu0 %1265
      %1268 = vset.pattern.permute.xlu0 2
      %1269 = vperm.xlu0 %1268, %v1078
      %v1270 = vpop.permute.xlu0 %1269
      %1272 = vset.pattern.permute.xlu0 2
      %1273 = vperm.xlu0 %1272, %v1080
      %v1274 = vpop.permute.xlu0 %1273
      %v1276 = vmul.f32 %v1246, %v1082
      %v1277 = vmul.f32 %v1250, %v1083
      %v1278 = vmul.f32 %v1254, %v1084
      %v1279 = vmul.f32 %v1258, %v1085
      %v1280 = vmul.f32 %v1262, %v1086
      %v1281 = vmul.f32 %v1266, %v1087
      %v1282 = vmul.f32 %v1270, %v1088
      %v1283 = vmul.f32 %v1274, %v1089
      %v1284 = vpack.c.bf16 %v1276, %v1276
      %v1285 = vpack.c.bf16 %v1277, %v1277
      %v1286 = vpack.c.bf16 %v1278, %v1278
      %v1287 = vpack.c.bf16 %v1279, %v1279
      %v1288 = vpack.c.bf16 %v1280, %v1280
      %v1289 = vpack.c.bf16 %v1281, %v1281
      %v1290 = vpack.c.bf16 %v1282, %v1282
      %v1291 = vpack.c.bf16 %v1283, %v1283
      %1300 = vrot.lane.b32.xlu0 %v1284, 32
      %v1301 = vpop.permute.xlu0 %1300
      %1302 = vrot.lane.b32.xlu0 %v1285, 32
      %v1303 = vpop.permute.xlu0 %1302
      %1304 = vrot.lane.b32.xlu0 %v1286, 32
      %v1305 = vpop.permute.xlu0 %1304
      %1306 = vrot.lane.b32.xlu0 %v1287, 32
      %v1307 = vpop.permute.xlu0 %1306
      %1308 = vrot.lane.b32.xlu0 %v1288, 32
      %v1309 = vpop.permute.xlu0 %1308
      %1310 = vrot.lane.b32.xlu0 %v1289, 32
      %v1311 = vpop.permute.xlu0 %1310
      %1312 = vrot.lane.b32.xlu0 %v1290, 32
      %v1313 = vpop.permute.xlu0 %1312
      %1314 = vrot.lane.b32.xlu0 %v1291, 32
      %v1315 = vpop.permute.xlu0 %1314
      %vm1324 = vcmask 388352
      %1325 = vst.msk [vmem:[#allocation2 + $0x4] sm:$0xf] %vm1324, %v1301
      %1326 = vst.msk [vmem:[#allocation2 + $0xc] sm:$0xf] %vm1324, %v1303
      %1327 = vst.msk [vmem:[#allocation2 + $0x14] sm:$0xf] %vm1324, %v1305
      %1328 = vst.msk [vmem:[#allocation2 + $0x1c] sm:$0xf] %vm1324, %v1307
      %1329 = vst.msk [vmem:[#allocation2 + $0x24] sm:$0xf] %vm1324, %v1309
      %1330 = vst.msk [vmem:[#allocation2 + $0x2c] sm:$0xf] %vm1324, %v1311
      %1331 = vst.msk [vmem:[#allocation2 + $0x34] sm:$0xf] %vm1324, %v1313
      %1332 = vst.msk [vmem:[#allocation2 + $0x3c] sm:$0xf] %vm1324, %v1315
      %1333 = vset.pattern.permute.xlu0 3
      %1334 = vperm.xlu0 %1333, %v1063
      %v1335 = vpop.permute.xlu0 %1334
      %1337 = vset.pattern.permute.xlu0 3
      %1338 = vperm.xlu0 %1337, %v1065
      %v1339 = vpop.permute.xlu0 %1338
      %1341 = vset.pattern.permute.xlu0 3
      %1342 = vperm.xlu0 %1341, %v1068
      %v1343 = vpop.permute.xlu0 %1342
      %1345 = vset.pattern.permute.xlu0 3
      %1346 = vperm.xlu0 %1345, %v1070
      %v1347 = vpop.permute.xlu0 %1346
      %1349 = vset.pattern.permute.xlu0 3
      %1350 = vperm.xlu0 %1349, %v1073
      %v1351 = vpop.permute.xlu0 %1350
      %1353 = vset.pattern.permute.xlu0 3
      %1354 = vperm.xlu0 %1353, %v1075
      %v1355 = vpop.permute.xlu0 %1354
      %1357 = vset.pattern.permute.xlu0 3
      %1358 = vperm.xlu0 %1357, %v1078
      %v1359 = vpop.permute.xlu0 %1358
      %1361 = vset.pattern.permute.xlu0 3
      %1362 = vperm.xlu0 %1361, %v1080
      %v1363 = vpop.permute.xlu0 %1362
      %v1365 = vmul.f32 %v1335, %v1082
      %v1366 = vmul.f32 %v1339, %v1083
      %v1367 = vmul.f32 %v1343, %v1084
      %v1368 = vmul.f32 %v1347, %v1085
      %v1369 = vmul.f32 %v1351, %v1086
      %v1370 = vmul.f32 %v1355, %v1087
      %v1371 = vmul.f32 %v1359, %v1088
      %v1372 = vmul.f32 %v1363, %v1089
      %v1373 = vpack.c.bf16 %v1365, %v1365
      %v1374 = vpack.c.bf16 %v1366, %v1366
      %v1375 = vpack.c.bf16 %v1367, %v1367
      %v1376 = vpack.c.bf16 %v1368, %v1368
      %v1377 = vpack.c.bf16 %v1369, %v1369
      %v1378 = vpack.c.bf16 %v1370, %v1370
      %v1379 = vpack.c.bf16 %v1371, %v1371
      %v1380 = vpack.c.bf16 %v1372, %v1372
      %1389 = vrot.lane.b32.xlu0 %v1373, 48
      %v1390 = vpop.permute.xlu0 %1389
      %1391 = vrot.lane.b32.xlu0 %v1374, 48
      %v1392 = vpop.permute.xlu0 %1391
      %1393 = vrot.lane.b32.xlu0 %v1375, 48
      %v1394 = vpop.permute.xlu0 %1393
      %1395 = vrot.lane.b32.xlu0 %v1376, 48
      %v1396 = vpop.permute.xlu0 %1395
      %1397 = vrot.lane.b32.xlu0 %v1377, 48
      %v1398 = vpop.permute.xlu0 %1397
      %1399 = vrot.lane.b32.xlu0 %v1378, 48
      %v1400 = vpop.permute.xlu0 %1399
      %1401 = vrot.lane.b32.xlu0 %v1379, 48
      %v1402 = vpop.permute.xlu0 %1401
      %1403 = vrot.lane.b32.xlu0 %v1380, 48
      %v1404 = vpop.permute.xlu0 %1403
      %vm1413 = vcmask 519552
      %1414 = vst.msk [vmem:[#allocation2 + $0x4] sm:$0xf] %vm1413, %v1390
      %1415 = vst.msk [vmem:[#allocation2 + $0xc] sm:$0xf] %vm1413, %v1392
      %1416 = vst.msk [vmem:[#allocation2 + $0x14] sm:$0xf] %vm1413, %v1394
      %1417 = vst.msk [vmem:[#allocation2 + $0x1c] sm:$0xf] %vm1413, %v1396
      %1418 = vst.msk [vmem:[#allocation2 + $0x24] sm:$0xf] %vm1413, %v1398
      %1419 = vst.msk [vmem:[#allocation2 + $0x2c] sm:$0xf] %vm1413, %v1400
      %1420 = vst.msk [vmem:[#allocation2 + $0x34] sm:$0xf] %vm1413, %v1402
      %1421 = vst.msk [vmem:[#allocation2 + $0x3c] sm:$0xf] %vm1413, %v1404
      %1422 = vrot.lane.b32.xlu0 %v958, 64
      %v1423 = vpop.permute.xlu0 %1422
      %1424 = vrot.lane.b32.xlu0 %v959, 64
      %v1425 = vpop.permute.xlu0 %1424
      %1426 = vrot.lane.b32.xlu0 %v960, 64
      %v1427 = vpop.permute.xlu0 %1426
      %1428 = vrot.lane.b32.xlu0 %v961, 64
      %v1429 = vpop.permute.xlu0 %1428
      %1430 = vrot.lane.b32.xlu0 %v962, 64
      %v1431 = vpop.permute.xlu0 %1430
      %1432 = vrot.lane.b32.xlu0 %v963, 64
      %v1433 = vpop.permute.xlu0 %1432
      %1434 = vrot.lane.b32.xlu0 %v964, 64
      %v1435 = vpop.permute.xlu0 %1434
      %1436 = vrot.lane.b32.xlu0 %v965, 64
      %v1437 = vpop.permute.xlu0 %1436
      %vm1446 = vcmask 552448
      %1447 = vst.msk [vmem:[#allocation2 + $0x4] sm:$0xf] %vm1446, %v1423
      %1448 = vst.msk [vmem:[#allocation2 + $0xc] sm:$0xf] %vm1446, %v1425
      %1449 = vst.msk [vmem:[#allocation2 + $0x14] sm:$0xf] %vm1446, %v1427
      %1450 = vst.msk [vmem:[#allocation2 + $0x1c] sm:$0xf] %vm1446, %v1429
      %1451 = vst.msk [vmem:[#allocation2 + $0x24] sm:$0xf] %vm1446, %v1431
      %1452 = vst.msk [vmem:[#allocation2 + $0x2c] sm:$0xf] %vm1446, %v1433
      %1453 = vst.msk [vmem:[#allocation2 + $0x34] sm:$0xf] %vm1446, %v1435
      %1454 = vst.msk [vmem:[#allocation2 + $0x3c] sm:$0xf] %vm1446, %v1437
      %v1455 = vld [vmem:[#allocation2 + $0x4] sm:$0xf]
      %v1456 = vld [vmem:[#allocation2 + $0xc] sm:$0xf]
      %v1457 = vld [vmem:[#allocation2 + $0x14] sm:$0xf]
      %v1458 = vld [vmem:[#allocation2 + $0x1c] sm:$0xf]
      %v1459 = vld [vmem:[#allocation2 + $0x24] sm:$0xf]
      %v1460 = vld [vmem:[#allocation2 + $0x2c] sm:$0xf]
      %v1461 = vld [vmem:[#allocation2 + $0x34] sm:$0xf]
      %v1462 = vld [vmem:[#allocation2 + $0x3c] sm:$0xf]
      %v1463 = vld [vmem:[%s9] sm:$0xf]
      %v1464 = vld [vmem:[%s9 + $0x4] sm:$0xf]
      %v1465 = vld [vmem:[%s9 + $0x8] sm:$0xf]
      %v1466 = vld [vmem:[%s9 + $0xc] sm:$0xf]
      %v1467 = vld [vmem:[%s9 + $0x10] sm:$0xf]
      %v1468 = vld [vmem:[%s9 + $0x14] sm:$0xf]
      %v1469 = vld [vmem:[%s9 + $0x18] sm:$0xf]
      %v1470 = vld [vmem:[%s9 + $0x1c] sm:$0xf]
      %v1471 = vld [vmem:[%s9 + $0x20] sm:$0x3]
      %v1480 = vunpack.c.l.b16 %v1455
      %v1481 = vunpack.c.l.b16 %v1456
      %v1482 = vunpack.c.l.b16 %v1457
      %v1483 = vunpack.c.l.b16 %v1458
      %v1484 = vunpack.c.l.b16 %v1459
      %v1485 = vunpack.c.l.b16 %v1460
      %v1486 = vunpack.c.l.b16 %v1461
      %v1487 = vunpack.c.l.b16 %v1462
      %v1488 = vpack.c.b16 %v1481, %v1480
      %v1489 = vpack.c.b16 %v1483, %v1482
      %v1490 = vpack.c.b16 %v1485, %v1484
      %v1491 = vpack.c.b16 %v1487, %v1486
      %v1501 = vunpack.c.l.b16 %v1463
      %v1502 = vunpack.c.l.b16 %v1464
      %v1503 = vunpack.c.l.b16 %v1465
      %v1504 = vunpack.c.l.b16 %v1466
      %v1505 = vunpack.c.l.b16 %v1467
      %v1506 = vunpack.c.l.b16 %v1468
      %v1507 = vunpack.c.l.b16 %v1469
      %v1508 = vunpack.c.l.b16 %v1470
      %v1509 = vunpack.c.l.b16 %v1471
      %v1510 = vpack.c.b16 %v1502, %v1501
      %v1511 = vpack.c.b16 %v1504, %v1503
      %v1512 = vpack.c.b16 %v1506, %v1505
      %v1513 = vpack.c.b16 %v1508, %v1507
      %v1514 = vpack.c.b16 %v1509, %v1509
      %vm1519 = vcmask 556032
      %v1521 = vsel %vm1519, %v1488, 0
      %v1524 = vsel %vm1519, %v1489, 0
      %v1527 = vsel %vm1519, %v1490, 0
      %v1530 = vsel %vm1519, %v1491, 0
      %vm1532 = vcmask 1041408
      %v1534 = vsel %vm1532, %v1514, 0
      %1536 = vmatpush.bf16.msra.mxu0 0
      %1537 = vmatpush.bf16.msra.mxu0 0
      %1538 = vmatpush.bf16.msra.mxu0 0
      %1539 = vmatpush.bf16.msra.mxu0 %v1534
      %1540 = vmatpush.bf16.msra.mxu0 %v1513
      %1541 = vmatpush.bf16.msra.mxu0 %v1512
      %1542 = vmatpush.bf16.msra.mxu0 %v1511
      %1543 = vmatpush.bf16.msra.mxu0 %v1510
      %1544 = vmatmul.bf16.gmra.mxu0 %v1521
      %v1545 = vpop.f32.mrf.mxu0
      %v1546 = vadd.f32 0.0, %v1545
      %v1547 = vpop.f32.mrf.mxu0
      %v1548 = vadd.f32 0.0, %v1547
      %1549 = vmatmul.bf16.gmra.mxu0 %v1524
      %v1550 = vpop.f32.mrf.mxu0
      %v1551 = vadd.f32 0.0, %v1550
      %v1552 = vpop.f32.mrf.mxu0
      %v1553 = vadd.f32 0.0, %v1552
      %1554 = vmatmul.bf16.gmra.mxu0 %v1527
      %v1555 = vpop.f32.mrf.mxu0
      %v1556 = vadd.f32 0.0, %v1555
      %v1557 = vpop.f32.mrf.mxu0
      %v1558 = vadd.f32 0.0, %v1557
      %1559 = vmatmul.bf16.gmra.mxu0 %v1530
      %v1560 = vpop.f32.mrf.mxu0
      %v1561 = vadd.f32 0.0, %v1560
      %v1562 = vpop.f32.mrf.mxu0
      %v1563 = vadd.f32 0.0, %v1562
      %1564 = vdwg.mxu0
      %vm1565 = vcmp.ge.f32.partialorder %v1546, 0.0
      %vm1566 = vcmp.ge.f32.partialorder %v1548, 0.0
      %vm1567 = vcmp.ge.f32.partialorder %v1551, 0.0
      %vm1568 = vcmp.ge.f32.partialorder %v1553, 0.0
      %vm1569 = vcmp.ge.f32.partialorder %v1556, 0.0
      %vm1570 = vcmp.ge.f32.partialorder %v1558, 0.0
      %vm1571 = vcmp.ge.f32.partialorder %v1561, 0.0
      %vm1572 = vcmp.ge.f32.partialorder %v1563, 0.0
      %v1573 = vmul.f32 %v1546, 0.01
      %v1574 = vmul.f32 %v1548, 0.01
      %v1575 = vmul.f32 %v1551, 0.01
      %v1576 = vmul.f32 %v1553, 0.01
      %v1577 = vmul.f32 %v1556, 0.01
      %v1578 = vmul.f32 %v1558, 0.01
      %v1579 = vmul.f32 %v1561, 0.01
      %v1580 = vmul.f32 %v1563, 0.01
      %v1581 = vsel %vm1565, %v1546, %v1573
      %v1582 = vsel %vm1566, %v1548, %v1574
      %v1583 = vsel %vm1567, %v1551, %v1575
      %v1584 = vsel %vm1568, %v1553, %v1576
      %v1585 = vsel %vm1569, %v1556, %v1577
      %v1586 = vsel %vm1570, %v1558, %v1578
      %v1587 = vsel %vm1571, %v1561, %v1579
      %v1588 = vsel %vm1572, %v1563, %v1580
      %v1589 = vmul.f32 %v1093, %v1581
      %v1590 = vmul.f32 %v1098, %v1582
      %v1591 = vmul.f32 %v1103, %v1583
      %v1592 = vmul.f32 %v1108, %v1584
      %v1593 = vmul.f32 %v1113, %v1585
      %v1594 = vmul.f32 %v1118, %v1586
      %v1595 = vmul.f32 %v1123, %v1587
      %v1596 = vmul.f32 %v1128, %v1588
      %v1597 = vpack.c.bf16 %v1589, %v1589
      %v1598 = vpack.c.bf16 %v1590, %v1590
      %v1599 = vpack.c.bf16 %v1591, %v1591
      %v1600 = vpack.c.bf16 %v1592, %v1592
      %v1601 = vpack.c.bf16 %v1593, %v1593
      %v1602 = vpack.c.bf16 %v1594, %v1594
      %v1603 = vpack.c.bf16 %v1595, %v1595
      %v1604 = vpack.c.bf16 %v1596, %v1596
      %vm1605 = vcmask 257024
      %1606 = vst.msk [vmem:[#allocation2] sm:$0xf] %vm1605, %v1597
      %1607 = vst.msk [vmem:[#allocation2 + $0x8] sm:$0xf] %vm1605, %v1598
      %1608 = vst.msk [vmem:[#allocation2 + $0x10] sm:$0xf] %vm1605, %v1599
      %1609 = vst.msk [vmem:[#allocation2 + $0x18] sm:$0xf] %vm1605, %v1600
      %1610 = vst.msk [vmem:[#allocation2 + $0x20] sm:$0xf] %vm1605, %v1601
      %1611 = vst.msk [vmem:[#allocation2 + $0x28] sm:$0xf] %vm1605, %v1602
      %1612 = vst.msk [vmem:[#allocation2 + $0x30] sm:$0xf] %vm1605, %v1603
      %1613 = vst.msk [vmem:[#allocation2 + $0x38] sm:$0xf] %vm1605, %v1604
      %v1614 = vmul.f32 %v1157, %v1581
      %v1615 = vmul.f32 %v1161, %v1582
      %v1616 = vmul.f32 %v1165, %v1583
      %v1617 = vmul.f32 %v1169, %v1584
      %v1618 = vmul.f32 %v1173, %v1585
      %v1619 = vmul.f32 %v1177, %v1586
      %v1620 = vmul.f32 %v1181, %v1587
      %v1621 = vmul.f32 %v1185, %v1588
      %v1622 = vpack.c.bf16 %v1614, %v1614
      %v1623 = vpack.c.bf16 %v1615, %v1615
      %v1624 = vpack.c.bf16 %v1616, %v1616
      %v1625 = vpack.c.bf16 %v1617, %v1617
      %v1626 = vpack.c.bf16 %v1618, %v1618
      %v1627 = vpack.c.bf16 %v1619, %v1619
      %v1628 = vpack.c.bf16 %v1620, %v1620
      %v1629 = vpack.c.bf16 %v1621, %v1621
      %1638 = vrot.lane.b32.xlu0 %v1622, 32
      %v1639 = vpop.permute.xlu0 %1638
      %1640 = vrot.lane.b32.xlu0 %v1623, 32
      %v1641 = vpop.permute.xlu0 %1640
      %1642 = vrot.lane.b32.xlu0 %v1624, 32
      %v1643 = vpop.permute.xlu0 %1642
      %1644 = vrot.lane.b32.xlu0 %v1625, 32
      %v1645 = vpop.permute.xlu0 %1644
      %1646 = vrot.lane.b32.xlu0 %v1626, 32
      %v1647 = vpop.permute.xlu0 %1646
      %1648 = vrot.lane.b32.xlu0 %v1627, 32
      %v1649 = vpop.permute.xlu0 %1648
      %1650 = vrot.lane.b32.xlu0 %v1628, 32
      %v1651 = vpop.permute.xlu0 %1650
      %1652 = vrot.lane.b32.xlu0 %v1629, 32
      %v1653 = vpop.permute.xlu0 %1652
      %vm1662 = vcmask 519424
      %1663 = vst.msk [vmem:[#allocation2] sm:$0xf] %vm1662, %v1639
      %1664 = vst.msk [vmem:[#allocation2 + $0x8] sm:$0xf] %vm1662, %v1641
      %1665 = vst.msk [vmem:[#allocation2 + $0x10] sm:$0xf] %vm1662, %v1643
      %1666 = vst.msk [vmem:[#allocation2 + $0x18] sm:$0xf] %vm1662, %v1645
      %1667 = vst.msk [vmem:[#allocation2 + $0x20] sm:$0xf] %vm1662, %v1647
      %1668 = vst.msk [vmem:[#allocation2 + $0x28] sm:$0xf] %vm1662, %v1649
      %1669 = vst.msk [vmem:[#allocation2 + $0x30] sm:$0xf] %vm1662, %v1651
      %1670 = vst.msk [vmem:[#allocation2 + $0x38] sm:$0xf] %vm1662, %v1653
      %v1671 = vmul.f32 %v1246, %v1581
      %v1672 = vmul.f32 %v1250, %v1582
      %v1673 = vmul.f32 %v1254, %v1583
      %v1674 = vmul.f32 %v1258, %v1584
      %v1675 = vmul.f32 %v1262, %v1585
      %v1676 = vmul.f32 %v1266, %v1586
      %v1677 = vmul.f32 %v1270, %v1587
      %v1678 = vmul.f32 %v1274, %v1588
      %v1679 = vpack.c.bf16 %v1671, %v1671
      %v1680 = vpack.c.bf16 %v1672, %v1672
      %v1681 = vpack.c.bf16 %v1673, %v1673
      %v1682 = vpack.c.bf16 %v1674, %v1674
      %v1683 = vpack.c.bf16 %v1675, %v1675
      %v1684 = vpack.c.bf16 %v1676, %v1676
      %v1685 = vpack.c.bf16 %v1677, %v1677
      %v1686 = vpack.c.bf16 %v1678, %v1678
      %1695 = vrot.lane.b32.xlu0 %v1679, 64
      %v1696 = vpop.permute.xlu0 %1695
      %1697 = vrot.lane.b32.xlu0 %v1680, 64
      %v1698 = vpop.permute.xlu0 %1697
      %1699 = vrot.lane.b32.xlu0 %v1681, 64
      %v1700 = vpop.permute.xlu0 %1699
      %1701 = vrot.lane.b32.xlu0 %v1682, 64
      %v1702 = vpop.permute.xlu0 %1701
      %1703 = vrot.lane.b32.xlu0 %v1683, 64
      %v1704 = vpop.permute.xlu0 %1703
      %1705 = vrot.lane.b32.xlu0 %v1684, 64
      %v1706 = vpop.permute.xlu0 %1705
      %1707 = vrot.lane.b32.xlu0 %v1685, 64
      %v1708 = vpop.permute.xlu0 %1707
      %1709 = vrot.lane.b32.xlu0 %v1686, 64
      %v1710 = vpop.permute.xlu0 %1709
      %vm1719 = vcmask 781824
      %1720 = vst.msk [vmem:[#allocation2] sm:$0xf] %vm1719, %v1696
      %1721 = vst.msk [vmem:[#allocation2 + $0x8] sm:$0xf] %vm1719, %v1698
      %1722 = vst.msk [vmem:[#allocation2 + $0x10] sm:$0xf] %vm1719, %v1700
      %1723 = vst.msk [vmem:[#allocation2 + $0x18] sm:$0xf] %vm1719, %v1702
      %1724 = vst.msk [vmem:[#allocation2 + $0x20] sm:$0xf] %vm1719, %v1704
      %1725 = vst.msk [vmem:[#allocation2 + $0x28] sm:$0xf] %vm1719, %v1706
      %1726 = vst.msk [vmem:[#allocation2 + $0x30] sm:$0xf] %vm1719, %v1708
      %1727 = vst.msk [vmem:[#allocation2 + $0x38] sm:$0xf] %vm1719, %v1710
      %v1728 = vmul.f32 %v1335, %v1581
      %v1729 = vmul.f32 %v1339, %v1582
      %v1730 = vmul.f32 %v1343, %v1583
      %v1731 = vmul.f32 %v1347, %v1584
      %v1732 = vmul.f32 %v1351, %v1585
      %v1733 = vmul.f32 %v1355, %v1586
      %v1734 = vmul.f32 %v1359, %v1587
      %v1735 = vmul.f32 %v1363, %v1588
      %v1736 = vpack.c.bf16 %v1728, %v1728
      %v1737 = vpack.c.bf16 %v1729, %v1729
      %v1738 = vpack.c.bf16 %v1730, %v1730
      %v1739 = vpack.c.bf16 %v1731, %v1731
      %v1740 = vpack.c.bf16 %v1732, %v1732
      %v1741 = vpack.c.bf16 %v1733, %v1733
      %v1742 = vpack.c.bf16 %v1734, %v1734
      %v1743 = vpack.c.bf16 %v1735, %v1735
      %1752 = vrot.lane.b32.xlu0 %v1736, 96
      %v1753 = vpop.permute.xlu0 %1752
      %1754 = vrot.lane.b32.xlu0 %v1737, 96
      %v1755 = vpop.permute.xlu0 %1754
      %1756 = vrot.lane.b32.xlu0 %v1738, 96
      %v1757 = vpop.permute.xlu0 %1756
      %1758 = vrot.lane.b32.xlu0 %v1739, 96
      %v1759 = vpop.permute.xlu0 %1758
      %1760 = vrot.lane.b32.xlu0 %v1740, 96
      %v1761 = vpop.permute.xlu0 %1760
      %1762 = vrot.lane.b32.xlu0 %v1741, 96
      %v1763 = vpop.permute.xlu0 %1762
      %1764 = vrot.lane.b32.xlu0 %v1742, 96
      %v1765 = vpop.permute.xlu0 %1764
      %1766 = vrot.lane.b32.xlu0 %v1743, 96
      %v1767 = vpop.permute.xlu0 %1766
      %vm1776 = vcmask 1044224
      %1777 = vst.msk [vmem:[#allocation2] sm:$0xf] %vm1776, %v1753
      %1778 = vst.msk [vmem:[#allocation2 + $0x8] sm:$0xf] %vm1776, %v1755
      %1779 = vst.msk [vmem:[#allocation2 + $0x10] sm:$0xf] %vm1776, %v1757
      %1780 = vst.msk [vmem:[#allocation2 + $0x18] sm:$0xf] %vm1776, %v1759
      %1781 = vst.msk [vmem:[#allocation2 + $0x20] sm:$0xf] %vm1776, %v1761
      %1782 = vst.msk [vmem:[#allocation2 + $0x28] sm:$0xf] %vm1776, %v1763
      %1783 = vst.msk [vmem:[#allocation2 + $0x30] sm:$0xf] %vm1776, %v1765
      %1784 = vst.msk [vmem:[#allocation2 + $0x38] sm:$0xf] %vm1776, %v1767
      %v1785 = vld [vmem:[#allocation2] sm:$0xff]
      %v1786 = vld [vmem:[#allocation2 + $0x8] sm:$0xff]
      %v1787 = vld [vmem:[#allocation2 + $0x10] sm:$0xff]
      %v1788 = vld [vmem:[#allocation2 + $0x18] sm:$0xff]
      %v1789 = vld [vmem:[#allocation2 + $0x20] sm:$0xff]
      %v1790 = vld [vmem:[#allocation2 + $0x28] sm:$0xff]
      %v1791 = vld [vmem:[#allocation2 + $0x30] sm:$0xff]
      %v1792 = vld [vmem:[#allocation2 + $0x38] sm:$0xff]
      %v1793 = vld [vmem:[%s10] sm:$0xf]
      %v1794 = vld [vmem:[%s10 + $0x4] sm:$0xf]
      %v1795 = vld [vmem:[%s10 + $0x8] sm:$0xf]
      %v1796 = vld [vmem:[%s10 + $0xc] sm:$0xf]
      %v1797 = vld [vmem:[%s10 + $0x10] sm:$0xf]
      %v1798 = vld [vmem:[%s10 + $0x14] sm:$0xf]
      %v1799 = vld [vmem:[%s10 + $0x18] sm:$0xf]
      %v1800 = vld [vmem:[%s10 + $0x1c] sm:$0xf]
      %v1801 = vld [vmem:[%s10 + $0x20] sm:$0xf]
      %v1802 = vld [vmem:[%s10 + $0x24] sm:$0xf]
      %v1803 = vld [vmem:[%s10 + $0x28] sm:$0xf]
      %v1804 = vld [vmem:[%s10 + $0x2c] sm:$0xf]
      %v1805 = vld [vmem:[%s10 + $0x30] sm:$0xf]
      %v1806 = vld [vmem:[%s10 + $0x34] sm:$0xf]
      %v1807 = vld [vmem:[%s10 + $0x38] sm:$0xf]
      %v1808 = vld [vmem:[%s10 + $0x3c] sm:$0xf]
      %v1809 = vld [vmem:[%s10 + $0x40] sm:$0xf]
      %v1810 = vld [vmem:[%s10 + $0x44] sm:$0xf]
      %v1811 = vld [vmem:[%s10 + $0x48] sm:$0xf]
      %v1812 = vld [vmem:[%s10 + $0x4c] sm:$0xf]
      %v1813 = vld [vmem:[%s10 + $0x50] sm:$0xf]
      %v1814 = vld [vmem:[%s10 + $0x54] sm:$0xf]
      %v1815 = vld [vmem:[%s10 + $0x58] sm:$0xf]
      %v1816 = vld [vmem:[%s10 + $0x5c] sm:$0xf]
      %v1817 = vld [vmem:[%s10 + $0x60] sm:$0x3]
      %v1826 = vunpack.c.l.b16 %v1785
      %v1827 = vunpack.c.h.b16 %v1785
      %v1828 = vunpack.c.l.b16 %v1786
      %v1829 = vunpack.c.h.b16 %v1786
      %v1830 = vunpack.c.l.b16 %v1787
      %v1831 = vunpack.c.h.b16 %v1787
      %v1832 = vunpack.c.l.b16 %v1788
      %v1833 = vunpack.c.h.b16 %v1788
      %v1834 = vunpack.c.l.b16 %v1789
      %v1835 = vunpack.c.h.b16 %v1789
      %v1836 = vunpack.c.l.b16 %v1790
      %v1837 = vunpack.c.h.b16 %v1790
      %v1838 = vunpack.c.l.b16 %v1791
      %v1839 = vunpack.c.h.b16 %v1791
      %v1840 = vunpack.c.l.b16 %v1792
      %v1841 = vunpack.c.h.b16 %v1792
      %v1842 = vpack.c.b16 %v1828, %v1826
      %v1843 = vpack.c.b16 %v1829, %v1827
      %v1844 = vpack.c.b16 %v1832, %v1830
      %v1845 = vpack.c.b16 %v1833, %v1831
      %v1846 = vpack.c.b16 %v1836, %v1834
      %v1847 = vpack.c.b16 %v1837, %v1835
      %v1848 = vpack.c.b16 %v1840, %v1838
      %v1849 = vpack.c.b16 %v1841, %v1839
      %v1879 = vunpack.c.l.b16 %v1793
      %v1880 = vunpack.c.l.b16 %v1794
      %v1881 = vunpack.c.l.b16 %v1795
      %v1882 = vunpack.c.l.b16 %v1796
      %v1883 = vunpack.c.l.b16 %v1797
      %v1884 = vunpack.c.l.b16 %v1798
      %v1885 = vunpack.c.l.b16 %v1799
      %v1886 = vunpack.c.l.b16 %v1800
      %v1887 = vunpack.c.l.b16 %v1801
      %v1888 = vunpack.c.l.b16 %v1802
      %v1889 = vunpack.c.l.b16 %v1803
      %v1890 = vunpack.c.l.b16 %v1804
      %v1891 = vunpack.c.l.b16 %v1805
      %v1892 = vunpack.c.l.b16 %v1806
      %v1893 = vunpack.c.l.b16 %v1807
      %v1894 = vunpack.c.l.b16 %v1808
      %v1895 = vunpack.c.l.b16 %v1809
      %v1896 = vunpack.c.l.b16 %v1810
      %v1897 = vunpack.c.l.b16 %v1811
      %v1898 = vunpack.c.l.b16 %v1812
      %v1899 = vunpack.c.l.b16 %v1813
      %v1900 = vunpack.c.l.b16 %v1814
      %v1901 = vunpack.c.l.b16 %v1815
      %v1902 = vunpack.c.l.b16 %v1816
      %v1903 = vunpack.c.l.b16 %v1817
      %v1904 = vpack.c.b16 %v1880, %v1879
      %v1905 = vpack.c.b16 %v1882, %v1881
      %v1906 = vpack.c.b16 %v1884, %v1883
      %v1907 = vpack.c.b16 %v1886, %v1885
      %v1908 = vpack.c.b16 %v1888, %v1887
      %v1909 = vpack.c.b16 %v1890, %v1889
      %v1910 = vpack.c.b16 %v1892, %v1891
      %v1911 = vpack.c.b16 %v1894, %v1893
      %v1912 = vpack.c.b16 %v1896, %v1895
      %v1913 = vpack.c.b16 %v1898, %v1897
      %v1914 = vpack.c.b16 %v1900, %v1899
      %v1915 = vpack.c.b16 %v1902, %v1901
      %v1916 = vpack.c.b16 %v1903, %v1903
      %v1930 = vsel %vm1519, %v1843, 0
      %v1933 = vsel %vm1519, %v1845, 0
      %v1936 = vsel %vm1519, %v1847, 0
      %v1939 = vsel %vm1519, %v1849, 0
      %v1942 = vsel %vm1532, %v1916, 0
      %1944 = vmatpush.bf16.msra.mxu0 %v1911
      %1945 = vmatpush.bf16.msra.mxu0 %v1910
      %1946 = vmatpush.bf16.msra.mxu0 %v1909
      %1947 = vmatpush.bf16.msra.mxu0 %v1908
      %1948 = vmatpush.bf16.msra.mxu0 %v1907
      %1949 = vmatpush.bf16.msra.mxu0 %v1906
      %1950 = vmatpush.bf16.msra.mxu0 %v1905
      %1951 = vmatpush.bf16.msra.mxu0 %v1904
      %1952 = vmatmul.bf16.gmra.mxu0 %v1842
      %v1953 = vpop.f32.mrf.mxu0
      %v1954 = vadd.f32 0.0, %v1953
      %v1955 = vpop.f32.mrf.mxu0
      %v1956 = vadd.f32 0.0, %v1955
      %1957 = vmatmul.bf16.gmra.mxu0 %v1844
      %v1958 = vpop.f32.mrf.mxu0
      %v1959 = vadd.f32 0.0, %v1958
      %v1960 = vpop.f32.mrf.mxu0
      %v1961 = vadd.f32 0.0, %v1960
      %1962 = vmatmul.bf16.gmra.mxu0 %v1846
      %v1963 = vpop.f32.mrf.mxu0
      %v1964 = vadd.f32 0.0, %v1963
      %v1965 = vpop.f32.mrf.mxu0
      %v1966 = vadd.f32 0.0, %v1965
      %1967 = vmatmul.bf16.gmra.mxu0 %v1848
      %v1968 = vpop.f32.mrf.mxu0
      %v1969 = vadd.f32 0.0, %v1968
      %v1970 = vpop.f32.mrf.mxu0
      %v1971 = vadd.f32 0.0, %v1970
      %1972 = vdwg.mxu0
      %1973 = vmatpush.bf16.msra.mxu0 0
      %1974 = vmatpush.bf16.msra.mxu0 0
      %1975 = vmatpush.bf16.msra.mxu0 0
      %1976 = vmatpush.bf16.msra.mxu0 %v1942
      %1977 = vmatpush.bf16.msra.mxu0 %v1915
      %1978 = vmatpush.bf16.msra.mxu0 %v1914
      %1979 = vmatpush.bf16.msra.mxu0 %v1913
      %1980 = vmatpush.bf16.msra.mxu0 %v1912
      %1981 = vmatmul.bf16.gmra.mxu0 %v1930
      %v1982 = vpop.f32.mrf.mxu0
      %v1983 = vadd.f32 %v1954, %v1982
      %v1984 = vpop.f32.mrf.mxu0
      %v1985 = vadd.f32 %v1956, %v1984
      %1986 = vmatmul.bf16.gmra.mxu0 %v1933
      %v1987 = vpop.f32.mrf.mxu0
      %v1988 = vadd.f32 %v1959, %v1987
      %v1989 = vpop.f32.mrf.mxu0
      %v1990 = vadd.f32 %v1961, %v1989
      %1991 = vmatmul.bf16.gmra.mxu0 %v1936
      %v1992 = vpop.f32.mrf.mxu0
      %v1993 = vadd.f32 %v1964, %v1992
      %v1994 = vpop.f32.mrf.mxu0
      %v1995 = vadd.f32 %v1966, %v1994
      %1996 = vmatmul.bf16.gmra.mxu0 %v1939
      %v1997 = vpop.f32.mrf.mxu0
      %v1998 = vadd.f32 %v1969, %v1997
      %v1999 = vpop.f32.mrf.mxu0
      %v2000 = vadd.f32 %v1971, %v1999
      %2001 = vdwg.mxu0
      %vm2002 = vcmp.ge.f32.partialorder %v1983, 0.0
      %vm2003 = vcmp.ge.f32.partialorder %v1985, 0.0
      %vm2004 = vcmp.ge.f32.partialorder %v1988, 0.0
      %vm2005 = vcmp.ge.f32.partialorder %v1990, 0.0
      %vm2006 = vcmp.ge.f32.partialorder %v1993, 0.0
      %vm2007 = vcmp.ge.f32.partialorder %v1995, 0.0
      %vm2008 = vcmp.ge.f32.partialorder %v1998, 0.0
      %vm2009 = vcmp.ge.f32.partialorder %v2000, 0.0
      %v2010 = vmul.f32 %v1983, 0.01
      %v2011 = vmul.f32 %v1985, 0.01
      %v2012 = vmul.f32 %v1988, 0.01
      %v2013 = vmul.f32 %v1990, 0.01
      %v2014 = vmul.f32 %v1993, 0.01
      %v2015 = vmul.f32 %v1995, 0.01
      %v2016 = vmul.f32 %v1998, 0.01
      %v2017 = vmul.f32 %v2000, 0.01
      %v2018 = vsel %vm2002, %v1983, %v2010
      %v2019 = vsel %vm2003, %v1985, %v2011
      %v2020 = vsel %vm2004, %v1988, %v2012
      %v2021 = vsel %vm2005, %v1990, %v2013
      %v2022 = vsel %vm2006, %v1993, %v2014
      %v2023 = vsel %vm2007, %v1995, %v2015
      %v2024 = vsel %vm2008, %v1998, %v2016
      %v2025 = vsel %vm2009, %v2000, %v2017
      %v2026 = vmul.f32 %v1093, %v2018
      %v2027 = vmul.f32 %v1098, %v2019
      %v2028 = vmul.f32 %v1103, %v2020
      %v2029 = vmul.f32 %v1108, %v2021
      %v2030 = vmul.f32 %v1113, %v2022
      %v2031 = vmul.f32 %v1118, %v2023
      %v2032 = vmul.f32 %v1123, %v2024
      %v2033 = vmul.f32 %v1128, %v2025
      %v2034 = vpack.c.bf16 %v2026, %v2026
      %v2035 = vpack.c.bf16 %v2027, %v2027
      %v2036 = vpack.c.bf16 %v2028, %v2028
      %v2037 = vpack.c.bf16 %v2029, %v2029
      %v2038 = vpack.c.bf16 %v2030, %v2030
      %v2039 = vpack.c.bf16 %v2031, %v2031
      %v2040 = vpack.c.bf16 %v2032, %v2032
      %v2041 = vpack.c.bf16 %v2033, %v2033
      %2042 = vst.msk [vmem:[#allocation2] sm:$0xf] %vm1605, %v2034
      %2043 = vst.msk [vmem:[#allocation2 + $0x8] sm:$0xf] %vm1605, %v2035
      %2044 = vst.msk [vmem:[#allocation2 + $0x10] sm:$0xf] %vm1605, %v2036
      %2045 = vst.msk [vmem:[#allocation2 + $0x18] sm:$0xf] %vm1605, %v2037
      %2046 = vst.msk [vmem:[#allocation2 + $0x20] sm:$0xf] %vm1605, %v2038
      %2047 = vst.msk [vmem:[#allocation2 + $0x28] sm:$0xf] %vm1605, %v2039
      %2048 = vst.msk [vmem:[#allocation2 + $0x30] sm:$0xf] %vm1605, %v2040
      %2049 = vst.msk [vmem:[#allocation2 + $0x38] sm:$0xf] %vm1605, %v2041
      %v2050 = vmul.f32 %v1157, %v2018
      %v2051 = vmul.f32 %v1161, %v2019
      %v2052 = vmul.f32 %v1165, %v2020
      %v2053 = vmul.f32 %v1169, %v2021
      %v2054 = vmul.f32 %v1173, %v2022
      %v2055 = vmul.f32 %v1177, %v2023
      %v2056 = vmul.f32 %v1181, %v2024
      %v2057 = vmul.f32 %v1185, %v2025
      %v2058 = vpack.c.bf16 %v2050, %v2050
      %v2059 = vpack.c.bf16 %v2051, %v2051
      %v2060 = vpack.c.bf16 %v2052, %v2052
      %v2061 = vpack.c.bf16 %v2053, %v2053
      %v2062 = vpack.c.bf16 %v2054, %v2054
      %v2063 = vpack.c.bf16 %v2055, %v2055
      %v2064 = vpack.c.bf16 %v2056, %v2056
      %v2065 = vpack.c.bf16 %v2057, %v2057
      %2074 = vrot.lane.b32.xlu0 %v2058, 32
      %v2075 = vpop.permute.xlu0 %2074
      %2076 = vrot.lane.b32.xlu0 %v2059, 32
      %v2077 = vpop.permute.xlu0 %2076
      %2078 = vrot.lane.b32.xlu0 %v2060, 32
      %v2079 = vpop.permute.xlu0 %2078
      %2080 = vrot.lane.b32.xlu0 %v2061, 32
      %v2081 = vpop.permute.xlu0 %2080
      %2082 = vrot.lane.b32.xlu0 %v2062, 32
      %v2083 = vpop.permute.xlu0 %2082
      %2084 = vrot.lane.b32.xlu0 %v2063, 32
      %v2085 = vpop.permute.xlu0 %2084
      %2086 = vrot.lane.b32.xlu0 %v2064, 32
      %v2087 = vpop.permute.xlu0 %2086
      %2088 = vrot.lane.b32.xlu0 %v2065, 32
      %v2089 = vpop.permute.xlu0 %2088
      %2098 = vst.msk [vmem:[#allocation2] sm:$0xf] %vm1662, %v2075
      %2099 = vst.msk [vmem:[#allocation2 + $0x8] sm:$0xf] %vm1662, %v2077
      %2100 = vst.msk [vmem:[#allocation2 + $0x10] sm:$0xf] %vm1662, %v2079
      %2101 = vst.msk [vmem:[#allocation2 + $0x18] sm:$0xf] %vm1662, %v2081
      %2102 = vst.msk [vmem:[#allocation2 + $0x20] sm:$0xf] %vm1662, %v2083
      %2103 = vst.msk [vmem:[#allocation2 + $0x28] sm:$0xf] %vm1662, %v2085
      %2104 = vst.msk [vmem:[#allocation2 + $0x30] sm:$0xf] %vm1662, %v2087
      %2105 = vst.msk [vmem:[#allocation2 + $0x38] sm:$0xf] %vm1662, %v2089
      %v2106 = vmul.f32 %v1246, %v2018
      %v2107 = vmul.f32 %v1250, %v2019
      %v2108 = vmul.f32 %v1254, %v2020
      %v2109 = vmul.f32 %v1258, %v2021
      %v2110 = vmul.f32 %v1262, %v2022
      %v2111 = vmul.f32 %v1266, %v2023
      %v2112 = vmul.f32 %v1270, %v2024
      %v2113 = vmul.f32 %v1274, %v2025
      %v2114 = vpack.c.bf16 %v2106, %v2106
      %v2115 = vpack.c.bf16 %v2107, %v2107
      %v2116 = vpack.c.bf16 %v2108, %v2108
      %v2117 = vpack.c.bf16 %v2109, %v2109
      %v2118 = vpack.c.bf16 %v2110, %v2110
      %v2119 = vpack.c.bf16 %v2111, %v2111
      %v2120 = vpack.c.bf16 %v2112, %v2112
      %v2121 = vpack.c.bf16 %v2113, %v2113
      %2130 = vrot.lane.b32.xlu0 %v2114, 64
      %v2131 = vpop.permute.xlu0 %2130
      %2132 = vrot.lane.b32.xlu0 %v2115, 64
      %v2133 = vpop.permute.xlu0 %2132
      %2134 = vrot.lane.b32.xlu0 %v2116, 64
      %v2135 = vpop.permute.xlu0 %2134
      %2136 = vrot.lane.b32.xlu0 %v2117, 64
      %v2137 = vpop.permute.xlu0 %2136
      %2138 = vrot.lane.b32.xlu0 %v2118, 64
      %v2139 = vpop.permute.xlu0 %2138
      %2140 = vrot.lane.b32.xlu0 %v2119, 64
      %v2141 = vpop.permute.xlu0 %2140
      %2142 = vrot.lane.b32.xlu0 %v2120, 64
      %v2143 = vpop.permute.xlu0 %2142
      %2144 = vrot.lane.b32.xlu0 %v2121, 64
      %v2145 = vpop.permute.xlu0 %2144
      %2154 = vst.msk [vmem:[#allocation2] sm:$0xf] %vm1719, %v2131
      %2155 = vst.msk [vmem:[#allocation2 + $0x8] sm:$0xf] %vm1719, %v2133
      %2156 = vst.msk [vmem:[#allocation2 + $0x10] sm:$0xf] %vm1719, %v2135
      %2157 = vst.msk [vmem:[#allocation2 + $0x18] sm:$0xf] %vm1719, %v2137
      %2158 = vst.msk [vmem:[#allocation2 + $0x20] sm:$0xf] %vm1719, %v2139
      %2159 = vst.msk [vmem:[#allocation2 + $0x28] sm:$0xf] %vm1719, %v2141
      %2160 = vst.msk [vmem:[#allocation2 + $0x30] sm:$0xf] %vm1719, %v2143
      %2161 = vst.msk [vmem:[#allocation2 + $0x38] sm:$0xf] %vm1719, %v2145
      %v2162 = vmul.f32 %v1335, %v2018
      %v2163 = vmul.f32 %v1339, %v2019
      %v2164 = vmul.f32 %v1343, %v2020
      %v2165 = vmul.f32 %v1347, %v2021
      %v2166 = vmul.f32 %v1351, %v2022
      %v2167 = vmul.f32 %v1355, %v2023
      %v2168 = vmul.f32 %v1359, %v2024
      %v2169 = vmul.f32 %v1363, %v2025
      %v2170 = vpack.c.bf16 %v2162, %v2162
      %v2171 = vpack.c.bf16 %v2163, %v2163
      %v2172 = vpack.c.bf16 %v2164, %v2164
      %v2173 = vpack.c.bf16 %v2165, %v2165
      %v2174 = vpack.c.bf16 %v2166, %v2166
      %v2175 = vpack.c.bf16 %v2167, %v2167
      %v2176 = vpack.c.bf16 %v2168, %v2168
      %v2177 = vpack.c.bf16 %v2169, %v2169
      %2186 = vrot.lane.b32.xlu0 %v2170, 96
      %v2187 = vpop.permute.xlu0 %2186
      %2188 = vrot.lane.b32.xlu0 %v2171, 96
      %v2189 = vpop.permute.xlu0 %2188
      %2190 = vrot.lane.b32.xlu0 %v2172, 96
      %v2191 = vpop.permute.xlu0 %2190
      %2192 = vrot.lane.b32.xlu0 %v2173, 96
      %v2193 = vpop.permute.xlu0 %2192
      %2194 = vrot.lane.b32.xlu0 %v2174, 96
      %v2195 = vpop.permute.xlu0 %2194
      %2196 = vrot.lane.b32.xlu0 %v2175, 96
      %v2197 = vpop.permute.xlu0 %2196
      %2198 = vrot.lane.b32.xlu0 %v2176, 96
      %v2199 = vpop.permute.xlu0 %2198
      %2200 = vrot.lane.b32.xlu0 %v2177, 96
      %v2201 = vpop.permute.xlu0 %2200
      %2210 = vst.msk [vmem:[#allocation2] sm:$0xf] %vm1776, %v2187
      %2211 = vst.msk [vmem:[#allocation2 + $0x8] sm:$0xf] %vm1776, %v2189
      %2212 = vst.msk [vmem:[#allocation2 + $0x10] sm:$0xf] %vm1776, %v2191
      %2213 = vst.msk [vmem:[#allocation2 + $0x18] sm:$0xf] %vm1776, %v2193
      %2214 = vst.msk [vmem:[#allocation2 + $0x20] sm:$0xf] %vm1776, %v2195
      %2215 = vst.msk [vmem:[#allocation2 + $0x28] sm:$0xf] %vm1776, %v2197
      %2216 = vst.msk [vmem:[#allocation2 + $0x30] sm:$0xf] %vm1776, %v2199
      %2217 = vst.msk [vmem:[#allocation2 + $0x38] sm:$0xf] %vm1776, %v2201
      %v2218 = vld [vmem:[#allocation2] sm:$0xff]
      %v2219 = vld [vmem:[#allocation2 + $0x8] sm:$0xff]
      %v2220 = vld [vmem:[#allocation2 + $0x10] sm:$0xff]
      %v2221 = vld [vmem:[#allocation2 + $0x18] sm:$0xff]
      %v2222 = vld [vmem:[#allocation2 + $0x20] sm:$0xff]
      %v2223 = vld [vmem:[#allocation2 + $0x28] sm:$0xff]
      %v2224 = vld [vmem:[#allocation2 + $0x30] sm:$0xff]
      %v2225 = vld [vmem:[#allocation2 + $0x38] sm:$0xff]
      %v2226 = vld [vmem:[%s11] sm:$0xf]
      %v2227 = vld [vmem:[%s11 + $0x4] sm:$0xf]
      %v2228 = vld [vmem:[%s11 + $0x8] sm:$0xf]
      %v2229 = vld [vmem:[%s11 + $0xc] sm:$0xf]
      %v2230 = vld [vmem:[%s11 + $0x10] sm:$0xf]
      %v2231 = vld [vmem:[%s11 + $0x14] sm:$0xf]
      %v2232 = vld [vmem:[%s11 + $0x18] sm:$0xf]
      %v2233 = vld [vmem:[%s11 + $0x1c] sm:$0xf]
      %v2234 = vld [vmem:[%s11 + $0x20] sm:$0xf]
      %v2235 = vld [vmem:[%s11 + $0x24] sm:$0xf]
      %v2236 = vld [vmem:[%s11 + $0x28] sm:$0xf]
      %v2237 = vld [vmem:[%s11 + $0x2c] sm:$0xf]
      %v2238 = vld [vmem:[%s11 + $0x30] sm:$0xf]
      %v2239 = vld [vmem:[%s11 + $0x34] sm:$0xf]
      %v2240 = vld [vmem:[%s11 + $0x38] sm:$0xf]
      %v2241 = vld [vmem:[%s11 + $0x3c] sm:$0xf]
      %v2242 = vld [vmem:[%s11 + $0x40] sm:$0xf]
      %v2243 = vld [vmem:[%s11 + $0x44] sm:$0xf]
      %v2244 = vld [vmem:[%s11 + $0x48] sm:$0xf]
      %v2245 = vld [vmem:[%s11 + $0x4c] sm:$0xf]
      %v2246 = vld [vmem:[%s11 + $0x50] sm:$0xf]
      %v2247 = vld [vmem:[%s11 + $0x54] sm:$0xf]
      %v2248 = vld [vmem:[%s11 + $0x58] sm:$0xf]
      %v2249 = vld [vmem:[%s11 + $0x5c] sm:$0xf]
      %v2250 = vld [vmem:[%s11 + $0x60] sm:$0x3]
      %v2259 = vunpack.c.l.b16 %v2218
      %v2260 = vunpack.c.h.b16 %v2218
      %v2261 = vunpack.c.l.b16 %v2219
      %v2262 = vunpack.c.h.b16 %v2219
      %v2263 = vunpack.c.l.b16 %v2220
      %v2264 = vunpack.c.h.b16 %v2220
      %v2265 = vunpack.c.l.b16 %v2221
      %v2266 = vunpack.c.h.b16 %v2221
      %v2267 = vunpack.c.l.b16 %v2222
      %v2268 = vunpack.c.h.b16 %v2222
      %v2269 = vunpack.c.l.b16 %v2223
      %v2270 = vunpack.c.h.b16 %v2223
      %v2271 = vunpack.c.l.b16 %v2224
      %v2272 = vunpack.c.h.b16 %v2224
      %v2273 = vunpack.c.l.b16 %v2225
      %v2274 = vunpack.c.h.b16 %v2225
      %v2275 = vpack.c.b16 %v2261, %v2259
      %v2276 = vpack.c.b16 %v2262, %v2260
      %v2277 = vpack.c.b16 %v2265, %v2263
      %v2278 = vpack.c.b16 %v2266, %v2264
      %v2279 = vpack.c.b16 %v2269, %v2267
      %v2280 = vpack.c.b16 %v2270, %v2268
      %v2281 = vpack.c.b16 %v2273, %v2271
      %v2282 = vpack.c.b16 %v2274, %v2272
      %v2312 = vunpack.c.l.b16 %v2226
      %v2313 = vunpack.c.l.b16 %v2227
      %v2314 = vunpack.c.l.b16 %v2228
      %v2315 = vunpack.c.l.b16 %v2229
      %v2316 = vunpack.c.l.b16 %v2230
      %v2317 = vunpack.c.l.b16 %v2231
      %v2318 = vunpack.c.l.b16 %v2232
      %v2319 = vunpack.c.l.b16 %v2233
      %v2320 = vunpack.c.l.b16 %v2234
      %v2321 = vunpack.c.l.b16 %v2235
      %v2322 = vunpack.c.l.b16 %v2236
      %v2323 = vunpack.c.l.b16 %v2237
      %v2324 = vunpack.c.l.b16 %v2238
      %v2325 = vunpack.c.l.b16 %v2239
      %v2326 = vunpack.c.l.b16 %v2240
      %v2327 = vunpack.c.l.b16 %v2241
      %v2328 = vunpack.c.l.b16 %v2242
      %v2329 = vunpack.c.l.b16 %v2243
      %v2330 = vunpack.c.l.b16 %v2244
      %v2331 = vunpack.c.l.b16 %v2245
      %v2332 = vunpack.c.l.b16 %v2246
      %v2333 = vunpack.c.l.b16 %v2247
      %v2334 = vunpack.c.l.b16 %v2248
      %v2335 = vunpack.c.l.b16 %v2249
      %v2336 = vunpack.c.l.b16 %v2250
      %v2337 = vpack.c.b16 %v2313, %v2312
      %v2338 = vpack.c.b16 %v2315, %v2314
      %v2339 = vpack.c.b16 %v2317, %v2316
      %v2340 = vpack.c.b16 %v2319, %v2318
      %v2341 = vpack.c.b16 %v2321, %v2320
      %v2342 = vpack.c.b16 %v2323, %v2322
      %v2343 = vpack.c.b16 %v2325, %v2324
      %v2344 = vpack.c.b16 %v2327, %v2326
      %v2345 = vpack.c.b16 %v2329, %v2328
      %v2346 = vpack.c.b16 %v2331, %v2330
      %v2347 = vpack.c.b16 %v2333, %v2332
      %v2348 = vpack.c.b16 %v2335, %v2334
      %v2349 = vpack.c.b16 %v2336, %v2336
      %v2363 = vsel %vm1519, %v2276, 0
      %v2366 = vsel %vm1519, %v2278, 0
      %v2369 = vsel %vm1519, %v2280, 0
      %v2372 = vsel %vm1519, %v2282, 0
      %v2375 = vsel %vm1532, %v2349, 0
      %2377 = vmatpush.bf16.msra.mxu0 %v2344
      %2378 = vmatpush.bf16.msra.mxu0 %v2343
      %2379 = vmatpush.bf16.msra.mxu0 %v2342
      %2380 = vmatpush.bf16.msra.mxu0 %v2341
      %2381 = vmatpush.bf16.msra.mxu0 %v2340
      %2382 = vmatpush.bf16.msra.mxu0 %v2339
      %2383 = vmatpush.bf16.msra.mxu0 %v2338
      %2384 = vmatpush.bf16.msra.mxu0 %v2337
      %2385 = vmatmul.bf16.gmra.mxu0 %v2275
      %v2386 = vpop.f32.mrf.mxu0
      %v2387 = vadd.f32 0.0, %v2386
      %v2388 = vpop.f32.mrf.mxu0
      %v2389 = vadd.f32 0.0, %v2388
      %2390 = vmatmul.bf16.gmra.mxu0 %v2277
      %v2391 = vpop.f32.mrf.mxu0
      %v2392 = vadd.f32 0.0, %v2391
      %v2393 = vpop.f32.mrf.mxu0
      %v2394 = vadd.f32 0.0, %v2393
      %2395 = vmatmul.bf16.gmra.mxu0 %v2279
      %v2396 = vpop.f32.mrf.mxu0
      %v2397 = vadd.f32 0.0, %v2396
      %v2398 = vpop.f32.mrf.mxu0
      %v2399 = vadd.f32 0.0, %v2398
      %2400 = vmatmul.bf16.gmra.mxu0 %v2281
      %v2401 = vpop.f32.mrf.mxu0
      %v2402 = vadd.f32 0.0, %v2401
      %v2403 = vpop.f32.mrf.mxu0
      %v2404 = vadd.f32 0.0, %v2403
      %2405 = vdwg.mxu0
      %2406 = vmatpush.bf16.msra.mxu0 0
      %2407 = vmatpush.bf16.msra.mxu0 0
      %2408 = vmatpush.bf16.msra.mxu0 0
      %2409 = vmatpush.bf16.msra.mxu0 %v2375
      %2410 = vmatpush.bf16.msra.mxu0 %v2348
      %2411 = vmatpush.bf16.msra.mxu0 %v2347
      %2412 = vmatpush.bf16.msra.mxu0 %v2346
      %2413 = vmatpush.bf16.msra.mxu0 %v2345
      %2414 = vmatmul.bf16.gmra.mxu0 %v2363
      %v2415 = vpop.f32.mrf.mxu0
      %v2416 = vadd.f32 %v2387, %v2415
      %v2417 = vpop.f32.mrf.mxu0
      %v2418 = vadd.f32 %v2389, %v2417
      %2419 = vmatmul.bf16.gmra.mxu0 %v2366
      %v2420 = vpop.f32.mrf.mxu0
      %v2421 = vadd.f32 %v2392, %v2420
      %v2422 = vpop.f32.mrf.mxu0
      %v2423 = vadd.f32 %v2394, %v2422
      %2424 = vmatmul.bf16.gmra.mxu0 %v2369
      %v2425 = vpop.f32.mrf.mxu0
      %v2426 = vadd.f32 %v2397, %v2425
      %v2427 = vpop.f32.mrf.mxu0
      %v2428 = vadd.f32 %v2399, %v2427
      %2429 = vmatmul.bf16.gmra.mxu0 %v2372
      %v2430 = vpop.f32.mrf.mxu0
      %v2431 = vadd.f32 %v2402, %v2430
      %v2432 = vpop.f32.mrf.mxu0
      %v2433 = vadd.f32 %v2404, %v2432
      %2434 = vdwg.mxu0
      %vm2435 = vcmp.ge.f32.partialorder %v2416, 0.0
      %vm2436 = vcmp.ge.f32.partialorder %v2418, 0.0
      %vm2437 = vcmp.ge.f32.partialorder %v2421, 0.0
      %vm2438 = vcmp.ge.f32.partialorder %v2423, 0.0
      %vm2439 = vcmp.ge.f32.partialorder %v2426, 0.0
      %vm2440 = vcmp.ge.f32.partialorder %v2428, 0.0
      %vm2441 = vcmp.ge.f32.partialorder %v2431, 0.0
      %vm2442 = vcmp.ge.f32.partialorder %v2433, 0.0
      %v2443 = vmul.f32 %v2416, 0.01
      %v2444 = vmul.f32 %v2418, 0.01
      %v2445 = vmul.f32 %v2421, 0.01
      %v2446 = vmul.f32 %v2423, 0.01
      %v2447 = vmul.f32 %v2426, 0.01
      %v2448 = vmul.f32 %v2428, 0.01
      %v2449 = vmul.f32 %v2431, 0.01
      %v2450 = vmul.f32 %v2433, 0.01
      %v2451 = vsel %vm2435, %v2416, %v2443
      %v2452 = vsel %vm2436, %v2418, %v2444
      %v2453 = vsel %vm2437, %v2421, %v2445
      %v2454 = vsel %vm2438, %v2423, %v2446
      %v2455 = vsel %vm2439, %v2426, %v2447
      %v2456 = vsel %vm2440, %v2428, %v2448
      %v2457 = vsel %vm2441, %v2431, %v2449
      %v2458 = vsel %vm2442, %v2433, %v2450
      %v2459 = vmul.f32 %v1093, %v2451
      %v2460 = vmul.f32 %v1098, %v2452
      %v2461 = vmul.f32 %v1103, %v2453
      %v2462 = vmul.f32 %v1108, %v2454
      %v2463 = vmul.f32 %v1113, %v2455
      %v2464 = vmul.f32 %v1118, %v2456
      %v2465 = vmul.f32 %v1123, %v2457
      %v2466 = vmul.f32 %v1128, %v2458
      %v2467 = vpack.c.bf16 %v2459, %v2459
      %v2468 = vpack.c.bf16 %v2460, %v2460
      %v2469 = vpack.c.bf16 %v2461, %v2461
      %v2470 = vpack.c.bf16 %v2462, %v2462
      %v2471 = vpack.c.bf16 %v2463, %v2463
      %v2472 = vpack.c.bf16 %v2464, %v2464
      %v2473 = vpack.c.bf16 %v2465, %v2465
      %v2474 = vpack.c.bf16 %v2466, %v2466
      %2475 = vst.msk [vmem:[#allocation2] sm:$0xf] %vm1605, %v2467
      %2476 = vst.msk [vmem:[#allocation2 + $0x8] sm:$0xf] %vm1605, %v2468
      %2477 = vst.msk [vmem:[#allocation2 + $0x10] sm:$0xf] %vm1605, %v2469
      %2478 = vst.msk [vmem:[#allocation2 + $0x18] sm:$0xf] %vm1605, %v2470
      %2479 = vst.msk [vmem:[#allocation2 + $0x20] sm:$0xf] %vm1605, %v2471
      %2480 = vst.msk [vmem:[#allocation2 + $0x28] sm:$0xf] %vm1605, %v2472
      %2481 = vst.msk [vmem:[#allocation2 + $0x30] sm:$0xf] %vm1605, %v2473
      %2482 = vst.msk [vmem:[#allocation2 + $0x38] sm:$0xf] %vm1605, %v2474
      %v2483 = vmul.f32 %v1157, %v2451
      %v2484 = vmul.f32 %v1161, %v2452
      %v2485 = vmul.f32 %v1165, %v2453
      %v2486 = vmul.f32 %v1169, %v2454
      %v2487 = vmul.f32 %v1173, %v2455
      %v2488 = vmul.f32 %v1177, %v2456
      %v2489 = vmul.f32 %v1181, %v2457
      %v2490 = vmul.f32 %v1185, %v2458
      %v2491 = vpack.c.bf16 %v2483, %v2483
      %v2492 = vpack.c.bf16 %v2484, %v2484
      %v2493 = vpack.c.bf16 %v2485, %v2485
      %v2494 = vpack.c.bf16 %v2486, %v2486
      %v2495 = vpack.c.bf16 %v2487, %v2487
      %v2496 = vpack.c.bf16 %v2488, %v2488
      %v2497 = vpack.c.bf16 %v2489, %v2489
      %v2498 = vpack.c.bf16 %v2490, %v2490
      %2507 = vrot.lane.b32.xlu0 %v2491, 32
      %v2508 = vpop.permute.xlu0 %2507
      %2509 = vrot.lane.b32.xlu0 %v2492, 32
      %v2510 = vpop.permute.xlu0 %2509
      %2511 = vrot.lane.b32.xlu0 %v2493, 32
      %v2512 = vpop.permute.xlu0 %2511
      %2513 = vrot.lane.b32.xlu0 %v2494, 32
      %v2514 = vpop.permute.xlu0 %2513
      %2515 = vrot.lane.b32.xlu0 %v2495, 32
      %v2516 = vpop.permute.xlu0 %2515
      %2517 = vrot.lane.b32.xlu0 %v2496, 32
      %v2518 = vpop.permute.xlu0 %2517
      %2519 = vrot.lane.b32.xlu0 %v2497, 32
      %v2520 = vpop.permute.xlu0 %2519
      %2521 = vrot.lane.b32.xlu0 %v2498, 32
      %v2522 = vpop.permute.xlu0 %2521
      %2531 = vst.msk [vmem:[#allocation2] sm:$0xf] %vm1662, %v2508
      %2532 = vst.msk [vmem:[#allocation2 + $0x8] sm:$0xf] %vm1662, %v2510
      %2533 = vst.msk [vmem:[#allocation2 + $0x10] sm:$0xf] %vm1662, %v2512
      %2534 = vst.msk [vmem:[#allocation2 + $0x18] sm:$0xf] %vm1662, %v2514
      %2535 = vst.msk [vmem:[#allocation2 + $0x20] sm:$0xf] %vm1662, %v2516
      %2536 = vst.msk [vmem:[#allocation2 + $0x28] sm:$0xf] %vm1662, %v2518
      %2537 = vst.msk [vmem:[#allocation2 + $0x30] sm:$0xf] %vm1662, %v2520
      %2538 = vst.msk [vmem:[#allocation2 + $0x38] sm:$0xf] %vm1662, %v2522
      %v2539 = vmul.f32 %v1246, %v2451
      %v2540 = vmul.f32 %v1250, %v2452
      %v2541 = vmul.f32 %v1254, %v2453
      %v2542 = vmul.f32 %v1258, %v2454
      %v2543 = vmul.f32 %v1262, %v2455
      %v2544 = vmul.f32 %v1266, %v2456
      %v2545 = vmul.f32 %v1270, %v2457
      %v2546 = vmul.f32 %v1274, %v2458
      %v2547 = vpack.c.bf16 %v2539, %v2539
      %v2548 = vpack.c.bf16 %v2540, %v2540
      %v2549 = vpack.c.bf16 %v2541, %v2541
      %v2550 = vpack.c.bf16 %v2542, %v2542
      %v2551 = vpack.c.bf16 %v2543, %v2543
      %v2552 = vpack.c.bf16 %v2544, %v2544
      %v2553 = vpack.c.bf16 %v2545, %v2545
      %v2554 = vpack.c.bf16 %v2546, %v2546
      %2563 = vrot.lane.b32.xlu0 %v2547, 64
      %v2564 = vpop.permute.xlu0 %2563
      %2565 = vrot.lane.b32.xlu0 %v2548, 64
      %v2566 = vpop.permute.xlu0 %2565
      %2567 = vrot.lane.b32.xlu0 %v2549, 64
      %v2568 = vpop.permute.xlu0 %2567
      %2569 = vrot.lane.b32.xlu0 %v2550, 64
      %v2570 = vpop.permute.xlu0 %2569
      %2571 = vrot.lane.b32.xlu0 %v2551, 64
      %v2572 = vpop.permute.xlu0 %2571
      %2573 = vrot.lane.b32.xlu0 %v2552, 64
      %v2574 = vpop.permute.xlu0 %2573
      %2575 = vrot.lane.b32.xlu0 %v2553, 64
      %v2576 = vpop.permute.xlu0 %2575
      %2577 = vrot.lane.b32.xlu0 %v2554, 64
      %v2578 = vpop.permute.xlu0 %2577
      %2587 = vst.msk [vmem:[#allocation2] sm:$0xf] %vm1719, %v2564
      %2588 = vst.msk [vmem:[#allocation2 + $0x8] sm:$0xf] %vm1719, %v2566
      %2589 = vst.msk [vmem:[#allocation2 + $0x10] sm:$0xf] %vm1719, %v2568
      %2590 = vst.msk [vmem:[#allocation2 + $0x18] sm:$0xf] %vm1719, %v2570
      %2591 = vst.msk [vmem:[#allocation2 + $0x20] sm:$0xf] %vm1719, %v2572
      %2592 = vst.msk [vmem:[#allocation2 + $0x28] sm:$0xf] %vm1719, %v2574
      %2593 = vst.msk [vmem:[#allocation2 + $0x30] sm:$0xf] %vm1719, %v2576
      %2594 = vst.msk [vmem:[#allocation2 + $0x38] sm:$0xf] %vm1719, %v2578
      %v2595 = vmul.f32 %v1335, %v2451
      %v2596 = vmul.f32 %v1339, %v2452
      %v2597 = vmul.f32 %v1343, %v2453
      %v2598 = vmul.f32 %v1347, %v2454
      %v2599 = vmul.f32 %v1351, %v2455
      %v2600 = vmul.f32 %v1355, %v2456
      %v2601 = vmul.f32 %v1359, %v2457
      %v2602 = vmul.f32 %v1363, %v2458
      %v2603 = vpack.c.bf16 %v2595, %v2595
      %v2604 = vpack.c.bf16 %v2596, %v2596
      %v2605 = vpack.c.bf16 %v2597, %v2597
      %v2606 = vpack.c.bf16 %v2598, %v2598
      %v2607 = vpack.c.bf16 %v2599, %v2599
      %v2608 = vpack.c.bf16 %v2600, %v2600
      %v2609 = vpack.c.bf16 %v2601, %v2601
      %v2610 = vpack.c.bf16 %v2602, %v2602
      %2619 = vrot.lane.b32.xlu0 %v2603, 96
      %v2620 = vpop.permute.xlu0 %2619
      %2621 = vrot.lane.b32.xlu0 %v2604, 96
      %v2622 = vpop.permute.xlu0 %2621
      %2623 = vrot.lane.b32.xlu0 %v2605, 96
      %v2624 = vpop.permute.xlu0 %2623
      %2625 = vrot.lane.b32.xlu0 %v2606, 96
      %v2626 = vpop.permute.xlu0 %2625
      %2627 = vrot.lane.b32.xlu0 %v2607, 96
      %v2628 = vpop.permute.xlu0 %2627
      %2629 = vrot.lane.b32.xlu0 %v2608, 96
      %v2630 = vpop.permute.xlu0 %2629
      %2631 = vrot.lane.b32.xlu0 %v2609, 96
      %v2632 = vpop.permute.xlu0 %2631
      %2633 = vrot.lane.b32.xlu0 %v2610, 96
      %v2634 = vpop.permute.xlu0 %2633
      %2643 = vst.msk [vmem:[#allocation2] sm:$0xf] %vm1776, %v2620
      %2644 = vst.msk [vmem:[#allocation2 + $0x8] sm:$0xf] %vm1776, %v2622
      %2645 = vst.msk [vmem:[#allocation2 + $0x10] sm:$0xf] %vm1776, %v2624
      %2646 = vst.msk [vmem:[#allocation2 + $0x18] sm:$0xf] %vm1776, %v2626
      %2647 = vst.msk [vmem:[#allocation2 + $0x20] sm:$0xf] %vm1776, %v2628
      %2648 = vst.msk [vmem:[#allocation2 + $0x28] sm:$0xf] %vm1776, %v2630
      %2649 = vst.msk [vmem:[#allocation2 + $0x30] sm:$0xf] %vm1776, %v2632
      %2650 = vst.msk [vmem:[#allocation2 + $0x38] sm:$0xf] %vm1776, %v2634
      %v2651 = vld [vmem:[#allocation2] sm:$0xff]
      %v2652 = vld [vmem:[#allocation2 + $0x8] sm:$0xff]
      %v2653 = vld [vmem:[#allocation2 + $0x10] sm:$0xff]
      %v2654 = vld [vmem:[#allocation2 + $0x18] sm:$0xff]
      %v2655 = vld [vmem:[#allocation2 + $0x20] sm:$0xff]
      %v2656 = vld [vmem:[#allocation2 + $0x28] sm:$0xff]
      %v2657 = vld [vmem:[#allocation2 + $0x30] sm:$0xff]
      %v2658 = vld [vmem:[#allocation2 + $0x38] sm:$0xff]
      %v2659 = vld [vmem:[%s12] sm:$0xf]
      %v2660 = vld [vmem:[%s12 + $0x4] sm:$0xf]
      %v2661 = vld [vmem:[%s12 + $0x8] sm:$0xf]
      %v2662 = vld [vmem:[%s12 + $0xc] sm:$0xf]
      %v2663 = vld [vmem:[%s12 + $0x10] sm:$0xf]
      %v2664 = vld [vmem:[%s12 + $0x14] sm:$0xf]
      %v2665 = vld [vmem:[%s12 + $0x18] sm:$0xf]
      %v2666 = vld [vmem:[%s12 + $0x1c] sm:$0xf]
      %v2667 = vld [vmem:[%s12 + $0x20] sm:$0xf]
      %v2668 = vld [vmem:[%s12 + $0x24] sm:$0xf]
      %v2669 = vld [vmem:[%s12 + $0x28] sm:$0xf]
      %v2670 = vld [vmem:[%s12 + $0x2c] sm:$0xf]
      %v2671 = vld [vmem:[%s12 + $0x30] sm:$0xf]
      %v2672 = vld [vmem:[%s12 + $0x34] sm:$0xf]
      %v2673 = vld [vmem:[%s12 + $0x38] sm:$0xf]
      %v2674 = vld [vmem:[%s12 + $0x3c] sm:$0xf]
      %v2675 = vld [vmem:[%s12 + $0x40] sm:$0xf]
      %v2676 = vld [vmem:[%s12 + $0x44] sm:$0xf]
      %v2677 = vld [vmem:[%s12 + $0x48] sm:$0xf]
      %v2678 = vld [vmem:[%s12 + $0x4c] sm:$0xf]
      %v2679 = vld [vmem:[%s12 + $0x50] sm:$0xf]
      %v2680 = vld [vmem:[%s12 + $0x54] sm:$0xf]
      %v2681 = vld [vmem:[%s12 + $0x58] sm:$0xf]
      %v2682 = vld [vmem:[%s12 + $0x5c] sm:$0xf]
      %v2683 = vld [vmem:[%s12 + $0x60] sm:$0x3]
      %v2692 = vunpack.c.l.b16 %v2651
      %v2693 = vunpack.c.h.b16 %v2651
      %v2694 = vunpack.c.l.b16 %v2652
      %v2695 = vunpack.c.h.b16 %v2652
      %v2696 = vunpack.c.l.b16 %v2653
      %v2697 = vunpack.c.h.b16 %v2653
      %v2698 = vunpack.c.l.b16 %v2654
      %v2699 = vunpack.c.h.b16 %v2654
      %v2700 = vunpack.c.l.b16 %v2655
      %v2701 = vunpack.c.h.b16 %v2655
      %v2702 = vunpack.c.l.b16 %v2656
      %v2703 = vunpack.c.h.b16 %v2656
      %v2704 = vunpack.c.l.b16 %v2657
      %v2705 = vunpack.c.h.b16 %v2657
      %v2706 = vunpack.c.l.b16 %v2658
      %v2707 = vunpack.c.h.b16 %v2658
      %v2708 = vpack.c.b16 %v2694, %v2692
      %v2709 = vpack.c.b16 %v2695, %v2693
      %v2710 = vpack.c.b16 %v2698, %v2696
      %v2711 = vpack.c.b16 %v2699, %v2697
      %v2712 = vpack.c.b16 %v2702, %v2700
      %v2713 = vpack.c.b16 %v2703, %v2701
      %v2714 = vpack.c.b16 %v2706, %v2704
      %v2715 = vpack.c.b16 %v2707, %v2705
      %v2745 = vunpack.c.l.b16 %v2659
      %v2746 = vunpack.c.l.b16 %v2660
      %v2747 = vunpack.c.l.b16 %v2661
      %v2748 = vunpack.c.l.b16 %v2662
      %v2749 = vunpack.c.l.b16 %v2663
      %v2750 = vunpack.c.l.b16 %v2664
      %v2751 = vunpack.c.l.b16 %v2665
      %v2752 = vunpack.c.l.b16 %v2666
      %v2753 = vunpack.c.l.b16 %v2667
      %v2754 = vunpack.c.l.b16 %v2668
      %v2755 = vunpack.c.l.b16 %v2669
      %v2756 = vunpack.c.l.b16 %v2670
      %v2757 = vunpack.c.l.b16 %v2671
      %v2758 = vunpack.c.l.b16 %v2672
      %v2759 = vunpack.c.l.b16 %v2673
      %v2760 = vunpack.c.l.b16 %v2674
      %v2761 = vunpack.c.l.b16 %v2675
      %v2762 = vunpack.c.l.b16 %v2676
      %v2763 = vunpack.c.l.b16 %v2677
      %v2764 = vunpack.c.l.b16 %v2678
      %v2765 = vunpack.c.l.b16 %v2679
      %v2766 = vunpack.c.l.b16 %v2680
      %v2767 = vunpack.c.l.b16 %v2681
      %v2768 = vunpack.c.l.b16 %v2682
      %v2769 = vunpack.c.l.b16 %v2683
      %v2770 = vpack.c.b16 %v2746, %v2745
      %v2771 = vpack.c.b16 %v2748, %v2747
      %v2772 = vpack.c.b16 %v2750, %v2749
      %v2773 = vpack.c.b16 %v2752, %v2751
      %v2774 = vpack.c.b16 %v2754, %v2753
      %v2775 = vpack.c.b16 %v2756, %v2755
      %v2776 = vpack.c.b16 %v2758, %v2757
      %v2777 = vpack.c.b16 %v2760, %v2759
      %v2778 = vpack.c.b16 %v2762, %v2761
      %v2779 = vpack.c.b16 %v2764, %v2763
      %v2780 = vpack.c.b16 %v2766, %v2765
      %v2781 = vpack.c.b16 %v2768, %v2767
      %v2782 = vpack.c.b16 %v2769, %v2769
      %v2796 = vsel %vm1519, %v2709, 0
      %v2799 = vsel %vm1519, %v2711, 0
      %v2802 = vsel %vm1519, %v2713, 0
      %v2805 = vsel %vm1519, %v2715, 0
      %v2808 = vsel %vm1532, %v2782, 0
      %2810 = vmatpush.bf16.msra.mxu0 %v2777
      %2811 = vmatpush.bf16.msra.mxu0 %v2776
      %2812 = vmatpush.bf16.msra.mxu0 %v2775
      %2813 = vmatpush.bf16.msra.mxu0 %v2774
      %2814 = vmatpush.bf16.msra.mxu0 %v2773
      %2815 = vmatpush.bf16.msra.mxu0 %v2772
      %2816 = vmatpush.bf16.msra.mxu0 %v2771
      %2817 = vmatpush.bf16.msra.mxu0 %v2770
      %2818 = vmatmul.bf16.gmra.mxu0 %v2708
      %v2819 = vpop.f32.mrf.mxu0
      %v2820 = vadd.f32 0.0, %v2819
      %v2821 = vpop.f32.mrf.mxu0
      %v2822 = vadd.f32 0.0, %v2821
      %2823 = vmatmul.bf16.gmra.mxu0 %v2710
      %v2824 = vpop.f32.mrf.mxu0
      %v2825 = vadd.f32 0.0, %v2824
      %v2826 = vpop.f32.mrf.mxu0
      %v2827 = vadd.f32 0.0, %v2826
      %2828 = vmatmul.bf16.gmra.mxu0 %v2712
      %v2829 = vpop.f32.mrf.mxu0
      %v2830 = vadd.f32 0.0, %v2829
      %v2831 = vpop.f32.mrf.mxu0
      %v2832 = vadd.f32 0.0, %v2831
      %2833 = vmatmul.bf16.gmra.mxu0 %v2714
      %v2834 = vpop.f32.mrf.mxu0
      %v2835 = vadd.f32 0.0, %v2834
      %v2836 = vpop.f32.mrf.mxu0
      %v2837 = vadd.f32 0.0, %v2836
      %2838 = vdwg.mxu0
      %2839 = vmatpush.bf16.msra.mxu0 0
      %2840 = vmatpush.bf16.msra.mxu0 0
      %2841 = vmatpush.bf16.msra.mxu0 0
      %2842 = vmatpush.bf16.msra.mxu0 %v2808
      %2843 = vmatpush.bf16.msra.mxu0 %v2781
      %2844 = vmatpush.bf16.msra.mxu0 %v2780
      %2845 = vmatpush.bf16.msra.mxu0 %v2779
      %2846 = vmatpush.bf16.msra.mxu0 %v2778
      %2847 = vmatmul.bf16.gmra.mxu0 %v2796
      %v2848 = vpop.f32.mrf.mxu0
      %v2849 = vadd.f32 %v2820, %v2848
      %v2850 = vpop.f32.mrf.mxu0
      %v2851 = vadd.f32 %v2822, %v2850
      %2852 = vmatmul.bf16.gmra.mxu0 %v2799
      %v2853 = vpop.f32.mrf.mxu0
      %v2854 = vadd.f32 %v2825, %v2853
      %v2855 = vpop.f32.mrf.mxu0
      %v2856 = vadd.f32 %v2827, %v2855
      %2857 = vmatmul.bf16.gmra.mxu0 %v2802
      %v2858 = vpop.f32.mrf.mxu0
      %v2859 = vadd.f32 %v2830, %v2858
      %v2860 = vpop.f32.mrf.mxu0
      %v2861 = vadd.f32 %v2832, %v2860
      %2862 = vmatmul.bf16.gmra.mxu0 %v2805
      %v2863 = vpop.f32.mrf.mxu0
      %v2864 = vadd.f32 %v2835, %v2863
      %v2865 = vpop.f32.mrf.mxu0
      %v2866 = vadd.f32 %v2837, %v2865
      %2867 = vdwg.mxu0
      %vm2868 = vcmp.ge.f32.partialorder %v2849, 0.0
      %vm2869 = vcmp.ge.f32.partialorder %v2851, 0.0
      %vm2870 = vcmp.ge.f32.partialorder %v2854, 0.0
      %vm2871 = vcmp.ge.f32.partialorder %v2856, 0.0
      %vm2872 = vcmp.ge.f32.partialorder %v2859, 0.0
      %vm2873 = vcmp.ge.f32.partialorder %v2861, 0.0
      %vm2874 = vcmp.ge.f32.partialorder %v2864, 0.0
      %vm2875 = vcmp.ge.f32.partialorder %v2866, 0.0
      %v2876 = vmul.f32 %v2849, 0.01
      %v2877 = vmul.f32 %v2851, 0.01
      %v2878 = vmul.f32 %v2854, 0.01
      %v2879 = vmul.f32 %v2856, 0.01
      %v2880 = vmul.f32 %v2859, 0.01
      %v2881 = vmul.f32 %v2861, 0.01
      %v2882 = vmul.f32 %v2864, 0.01
      %v2883 = vmul.f32 %v2866, 0.01
      %v2884 = vsel %vm2868, %v2849, %v2876
      %v2885 = vsel %vm2869, %v2851, %v2877
      %v2886 = vsel %vm2870, %v2854, %v2878
      %v2887 = vsel %vm2871, %v2856, %v2879
      %v2888 = vsel %vm2872, %v2859, %v2880
      %v2889 = vsel %vm2873, %v2861, %v2881
      %v2890 = vsel %vm2874, %v2864, %v2882
      %v2891 = vsel %vm2875, %v2866, %v2883
      %v2892 = vmul.f32 %v1093, %v2884
      %v2893 = vmul.f32 %v1098, %v2885
      %v2894 = vmul.f32 %v1103, %v2886
      %v2895 = vmul.f32 %v1108, %v2887
      %v2896 = vmul.f32 %v1113, %v2888
      %v2897 = vmul.f32 %v1118, %v2889
      %v2898 = vmul.f32 %v1123, %v2890
      %v2899 = vmul.f32 %v1128, %v2891
      %v2900 = vpack.c.bf16 %v2892, %v2892
      %v2901 = vpack.c.bf16 %v2893, %v2893
      %v2902 = vpack.c.bf16 %v2894, %v2894
      %v2903 = vpack.c.bf16 %v2895, %v2895
      %v2904 = vpack.c.bf16 %v2896, %v2896
      %v2905 = vpack.c.bf16 %v2897, %v2897
      %v2906 = vpack.c.bf16 %v2898, %v2898
      %v2907 = vpack.c.bf16 %v2899, %v2899
      %2908 = vst.msk [vmem:[#allocation2] sm:$0xf] %vm1605, %v2900
      %2909 = vst.msk [vmem:[#allocation2 + $0x8] sm:$0xf] %vm1605, %v2901
      %2910 = vst.msk [vmem:[#allocation2 + $0x10] sm:$0xf] %vm1605, %v2902
      %2911 = vst.msk [vmem:[#allocation2 + $0x18] sm:$0xf] %vm1605, %v2903
      %2912 = vst.msk [vmem:[#allocation2 + $0x20] sm:$0xf] %vm1605, %v2904
      %2913 = vst.msk [vmem:[#allocation2 + $0x28] sm:$0xf] %vm1605, %v2905
      %2914 = vst.msk [vmem:[#allocation2 + $0x30] sm:$0xf] %vm1605, %v2906
      %2915 = vst.msk [vmem:[#allocation2 + $0x38] sm:$0xf] %vm1605, %v2907
      %v2916 = vmul.f32 %v1157, %v2884
      %v2917 = vmul.f32 %v1161, %v2885
      %v2918 = vmul.f32 %v1165, %v2886
      %v2919 = vmul.f32 %v1169, %v2887
      %v2920 = vmul.f32 %v1173, %v2888
      %v2921 = vmul.f32 %v1177, %v2889
      %v2922 = vmul.f32 %v1181, %v2890
      %v2923 = vmul.f32 %v1185, %v2891
      %v2924 = vpack.c.bf16 %v2916, %v2916
      %v2925 = vpack.c.bf16 %v2917, %v2917
      %v2926 = vpack.c.bf16 %v2918, %v2918
      %v2927 = vpack.c.bf16 %v2919, %v2919
      %v2928 = vpack.c.bf16 %v2920, %v2920
      %v2929 = vpack.c.bf16 %v2921, %v2921
      %v2930 = vpack.c.bf16 %v2922, %v2922
      %v2931 = vpack.c.bf16 %v2923, %v2923
      %2940 = vrot.lane.b32.xlu0 %v2924, 32
      %v2941 = vpop.permute.xlu0 %2940
      %2942 = vrot.lane.b32.xlu0 %v2925, 32
      %v2943 = vpop.permute.xlu0 %2942
      %2944 = vrot.lane.b32.xlu0 %v2926, 32
      %v2945 = vpop.permute.xlu0 %2944
      %2946 = vrot.lane.b32.xlu0 %v2927, 32
      %v2947 = vpop.permute.xlu0 %2946
      %2948 = vrot.lane.b32.xlu0 %v2928, 32
      %v2949 = vpop.permute.xlu0 %2948
      %2950 = vrot.lane.b32.xlu0 %v2929, 32
      %v2951 = vpop.permute.xlu0 %2950
      %2952 = vrot.lane.b32.xlu0 %v2930, 32
      %v2953 = vpop.permute.xlu0 %2952
      %2954 = vrot.lane.b32.xlu0 %v2931, 32
      %v2955 = vpop.permute.xlu0 %2954
      %2964 = vst.msk [vmem:[#allocation2] sm:$0xf] %vm1662, %v2941
      %2965 = vst.msk [vmem:[#allocation2 + $0x8] sm:$0xf] %vm1662, %v2943
      %2966 = vst.msk [vmem:[#allocation2 + $0x10] sm:$0xf] %vm1662, %v2945
      %2967 = vst.msk [vmem:[#allocation2 + $0x18] sm:$0xf] %vm1662, %v2947
      %2968 = vst.msk [vmem:[#allocation2 + $0x20] sm:$0xf] %vm1662, %v2949
      %2969 = vst.msk [vmem:[#allocation2 + $0x28] sm:$0xf] %vm1662, %v2951
      %2970 = vst.msk [vmem:[#allocation2 + $0x30] sm:$0xf] %vm1662, %v2953
      %2971 = vst.msk [vmem:[#allocation2 + $0x38] sm:$0xf] %vm1662, %v2955
      %v2972 = vmul.f32 %v1246, %v2884
      %v2973 = vmul.f32 %v1250, %v2885
      %v2974 = vmul.f32 %v1254, %v2886
      %v2975 = vmul.f32 %v1258, %v2887
      %v2976 = vmul.f32 %v1262, %v2888
      %v2977 = vmul.f32 %v1266, %v2889
      %v2978 = vmul.f32 %v1270, %v2890
      %v2979 = vmul.f32 %v1274, %v2891
      %v2980 = vpack.c.bf16 %v2972, %v2972
      %v2981 = vpack.c.bf16 %v2973, %v2973
      %v2982 = vpack.c.bf16 %v2974, %v2974
      %v2983 = vpack.c.bf16 %v2975, %v2975
      %v2984 = vpack.c.bf16 %v2976, %v2976
      %v2985 = vpack.c.bf16 %v2977, %v2977
      %v2986 = vpack.c.bf16 %v2978, %v2978
      %v2987 = vpack.c.bf16 %v2979, %v2979
      %2996 = vrot.lane.b32.xlu0 %v2980, 64
      %v2997 = vpop.permute.xlu0 %2996
      %2998 = vrot.lane.b32.xlu0 %v2981, 64
      %v2999 = vpop.permute.xlu0 %2998
      %3000 = vrot.lane.b32.xlu0 %v2982, 64
      %v3001 = vpop.permute.xlu0 %3000
      %3002 = vrot.lane.b32.xlu0 %v2983, 64
      %v3003 = vpop.permute.xlu0 %3002
      %3004 = vrot.lane.b32.xlu0 %v2984, 64
      %v3005 = vpop.permute.xlu0 %3004
      %3006 = vrot.lane.b32.xlu0 %v2985, 64
      %v3007 = vpop.permute.xlu0 %3006
      %3008 = vrot.lane.b32.xlu0 %v2986, 64
      %v3009 = vpop.permute.xlu0 %3008
      %3010 = vrot.lane.b32.xlu0 %v2987, 64
      %v3011 = vpop.permute.xlu0 %3010
      %3020 = vst.msk [vmem:[#allocation2] sm:$0xf] %vm1719, %v2997
      %3021 = vst.msk [vmem:[#allocation2 + $0x8] sm:$0xf] %vm1719, %v2999
      %3022 = vst.msk [vmem:[#allocation2 + $0x10] sm:$0xf] %vm1719, %v3001
      %3023 = vst.msk [vmem:[#allocation2 + $0x18] sm:$0xf] %vm1719, %v3003
      %3024 = vst.msk [vmem:[#allocation2 + $0x20] sm:$0xf] %vm1719, %v3005
      %3025 = vst.msk [vmem:[#allocation2 + $0x28] sm:$0xf] %vm1719, %v3007
      %3026 = vst.msk [vmem:[#allocation2 + $0x30] sm:$0xf] %vm1719, %v3009
      %3027 = vst.msk [vmem:[#allocation2 + $0x38] sm:$0xf] %vm1719, %v3011
      %v3028 = vmul.f32 %v1335, %v2884
      %v3029 = vmul.f32 %v1339, %v2885
      %v3030 = vmul.f32 %v1343, %v2886
      %v3031 = vmul.f32 %v1347, %v2887
      %v3032 = vmul.f32 %v1351, %v2888
      %v3033 = vmul.f32 %v1355, %v2889
      %v3034 = vmul.f32 %v1359, %v2890
      %v3035 = vmul.f32 %v1363, %v2891
      %v3036 = vpack.c.bf16 %v3028, %v3028
      %v3037 = vpack.c.bf16 %v3029, %v3029
      %v3038 = vpack.c.bf16 %v3030, %v3030
      %v3039 = vpack.c.bf16 %v3031, %v3031
      %v3040 = vpack.c.bf16 %v3032, %v3032
      %v3041 = vpack.c.bf16 %v3033, %v3033
      %v3042 = vpack.c.bf16 %v3034, %v3034
      %v3043 = vpack.c.bf16 %v3035, %v3035
      %3052 = vrot.lane.b32.xlu0 %v3036, 96
      %v3053 = vpop.permute.xlu0 %3052
      %3054 = vrot.lane.b32.xlu0 %v3037, 96
      %v3055 = vpop.permute.xlu0 %3054
      %3056 = vrot.lane.b32.xlu0 %v3038, 96
      %v3057 = vpop.permute.xlu0 %3056
      %3058 = vrot.lane.b32.xlu0 %v3039, 96
      %v3059 = vpop.permute.xlu0 %3058
      %3060 = vrot.lane.b32.xlu0 %v3040, 96
      %v3061 = vpop.permute.xlu0 %3060
      %3062 = vrot.lane.b32.xlu0 %v3041, 96
      %v3063 = vpop.permute.xlu0 %3062
      %3064 = vrot.lane.b32.xlu0 %v3042, 96
      %v3065 = vpop.permute.xlu0 %3064
      %3066 = vrot.lane.b32.xlu0 %v3043, 96
      %v3067 = vpop.permute.xlu0 %3066
      %3076 = vst.msk [vmem:[#allocation2] sm:$0xf] %vm1776, %v3053
      %3077 = vst.msk [vmem:[#allocation2 + $0x8] sm:$0xf] %vm1776, %v3055
      %3078 = vst.msk [vmem:[#allocation2 + $0x10] sm:$0xf] %vm1776, %v3057
      %3079 = vst.msk [vmem:[#allocation2 + $0x18] sm:$0xf] %vm1776, %v3059
      %3080 = vst.msk [vmem:[#allocation2 + $0x20] sm:$0xf] %vm1776, %v3061
      %3081 = vst.msk [vmem:[#allocation2 + $0x28] sm:$0xf] %vm1776, %v3063
      %3082 = vst.msk [vmem:[#allocation2 + $0x30] sm:$0xf] %vm1776, %v3065
      %3083 = vst.msk [vmem:[#allocation2 + $0x38] sm:$0xf] %vm1776, %v3067
      %v3084 = vld [vmem:[#allocation2] sm:$0xff]
      %v3085 = vld [vmem:[#allocation2 + $0x8] sm:$0xff]
      %v3086 = vld [vmem:[#allocation2 + $0x10] sm:$0xff]
      %v3087 = vld [vmem:[#allocation2 + $0x18] sm:$0xff]
      %v3088 = vld [vmem:[#allocation2 + $0x20] sm:$0xff]
      %v3089 = vld [vmem:[#allocation2 + $0x28] sm:$0xff]
      %v3090 = vld [vmem:[#allocation2 + $0x30] sm:$0xff]
      %v3091 = vld [vmem:[#allocation2 + $0x38] sm:$0xff]
      %v3092 = vld [vmem:[%s13] sm:$0xf]
      %v3093 = vld [vmem:[%s13 + $0x4] sm:$0xf]
      %v3094 = vld [vmem:[%s13 + $0x8] sm:$0xf]
      %v3095 = vld [vmem:[%s13 + $0xc] sm:$0xf]
      %v3096 = vld [vmem:[%s13 + $0x10] sm:$0xf]
      %v3097 = vld [vmem:[%s13 + $0x14] sm:$0xf]
      %v3098 = vld [vmem:[%s13 + $0x18] sm:$0xf]
      %v3099 = vld [vmem:[%s13 + $0x1c] sm:$0xf]
      %v3100 = vld [vmem:[%s13 + $0x20] sm:$0xf]
      %v3101 = vld [vmem:[%s13 + $0x24] sm:$0xf]
      %v3102 = vld [vmem:[%s13 + $0x28] sm:$0xf]
      %v3103 = vld [vmem:[%s13 + $0x2c] sm:$0xf]
      %v3104 = vld [vmem:[%s13 + $0x30] sm:$0xf]
      %v3105 = vld [vmem:[%s13 + $0x34] sm:$0xf]
      %v3106 = vld [vmem:[%s13 + $0x38] sm:$0xf]
      %v3107 = vld [vmem:[%s13 + $0x3c] sm:$0xf]
      %v3108 = vld [vmem:[%s13 + $0x40] sm:$0xf]
      %v3109 = vld [vmem:[%s13 + $0x44] sm:$0xf]
      %v3110 = vld [vmem:[%s13 + $0x48] sm:$0xf]
      %v3111 = vld [vmem:[%s13 + $0x4c] sm:$0xf]
      %v3112 = vld [vmem:[%s13 + $0x50] sm:$0xf]
      %v3113 = vld [vmem:[%s13 + $0x54] sm:$0xf]
      %v3114 = vld [vmem:[%s13 + $0x58] sm:$0xf]
      %v3115 = vld [vmem:[%s13 + $0x5c] sm:$0xf]
      %v3116 = vld [vmem:[%s13 + $0x60] sm:$0x3]
      %v3125 = vunpack.c.l.b16 %v3084
      %v3126 = vunpack.c.h.b16 %v3084
      %v3127 = vunpack.c.l.b16 %v3085
      %v3128 = vunpack.c.h.b16 %v3085
      %v3129 = vunpack.c.l.b16 %v3086
      %v3130 = vunpack.c.h.b16 %v3086
      %v3131 = vunpack.c.l.b16 %v3087
      %v3132 = vunpack.c.h.b16 %v3087
      %v3133 = vunpack.c.l.b16 %v3088
      %v3134 = vunpack.c.h.b16 %v3088
      %v3135 = vunpack.c.l.b16 %v3089
      %v3136 = vunpack.c.h.b16 %v3089
      %v3137 = vunpack.c.l.b16 %v3090
      %v3138 = vunpack.c.h.b16 %v3090
      %v3139 = vunpack.c.l.b16 %v3091
      %v3140 = vunpack.c.h.b16 %v3091
      %v3141 = vpack.c.b16 %v3127, %v3125
      %v3142 = vpack.c.b16 %v3128, %v3126
      %v3143 = vpack.c.b16 %v3131, %v3129
      %v3144 = vpack.c.b16 %v3132, %v3130
      %v3145 = vpack.c.b16 %v3135, %v3133
      %v3146 = vpack.c.b16 %v3136, %v3134
      %v3147 = vpack.c.b16 %v3139, %v3137
      %v3148 = vpack.c.b16 %v3140, %v3138
      %v3178 = vunpack.c.l.b16 %v3092
      %v3179 = vunpack.c.l.b16 %v3093
      %v3180 = vunpack.c.l.b16 %v3094
      %v3181 = vunpack.c.l.b16 %v3095
      %v3182 = vunpack.c.l.b16 %v3096
      %v3183 = vunpack.c.l.b16 %v3097
      %v3184 = vunpack.c.l.b16 %v3098
      %v3185 = vunpack.c.l.b16 %v3099
      %v3186 = vunpack.c.l.b16 %v3100
      %v3187 = vunpack.c.l.b16 %v3101
      %v3188 = vunpack.c.l.b16 %v3102
      %v3189 = vunpack.c.l.b16 %v3103
      %v3190 = vunpack.c.l.b16 %v3104
      %v3191 = vunpack.c.l.b16 %v3105
      %v3192 = vunpack.c.l.b16 %v3106
      %v3193 = vunpack.c.l.b16 %v3107
      %v3194 = vunpack.c.l.b16 %v3108
      %v3195 = vunpack.c.l.b16 %v3109
      %v3196 = vunpack.c.l.b16 %v3110
      %v3197 = vunpack.c.l.b16 %v3111
      %v3198 = vunpack.c.l.b16 %v3112
      %v3199 = vunpack.c.l.b16 %v3113
      %v3200 = vunpack.c.l.b16 %v3114
      %v3201 = vunpack.c.l.b16 %v3115
      %v3202 = vunpack.c.l.b16 %v3116
      %v3203 = vpack.c.b16 %v3179, %v3178
      %v3204 = vpack.c.b16 %v3181, %v3180
      %v3205 = vpack.c.b16 %v3183, %v3182
      %v3206 = vpack.c.b16 %v3185, %v3184
      %v3207 = vpack.c.b16 %v3187, %v3186
      %v3208 = vpack.c.b16 %v3189, %v3188
      %v3209 = vpack.c.b16 %v3191, %v3190
      %v3210 = vpack.c.b16 %v3193, %v3192
      %v3211 = vpack.c.b16 %v3195, %v3194
      %v3212 = vpack.c.b16 %v3197, %v3196
      %v3213 = vpack.c.b16 %v3199, %v3198
      %v3214 = vpack.c.b16 %v3201, %v3200
      %v3215 = vpack.c.b16 %v3202, %v3202
      %v3229 = vsel %vm1519, %v3142, 0
      %v3232 = vsel %vm1519, %v3144, 0
      %v3235 = vsel %vm1519, %v3146, 0
      %v3238 = vsel %vm1519, %v3148, 0
      %v3241 = vsel %vm1532, %v3215, 0
      %3243 = vmatpush.bf16.msra.mxu0 %v3210
      %3244 = vmatpush.bf16.msra.mxu0 %v3209
      %3245 = vmatpush.bf16.msra.mxu0 %v3208
      %3246 = vmatpush.bf16.msra.mxu0 %v3207
      %3247 = vmatpush.bf16.msra.mxu0 %v3206
      %3248 = vmatpush.bf16.msra.mxu0 %v3205
      %3249 = vmatpush.bf16.msra.mxu0 %v3204
      %3250 = vmatpush.bf16.msra.mxu0 %v3203
      %3251 = vmatmul.bf16.gmra.mxu0 %v3141
      %v3252 = vpop.f32.mrf.mxu0
      %v3253 = vadd.f32 0.0, %v3252
      %v3254 = vpop.f32.mrf.mxu0
      %v3255 = vadd.f32 0.0, %v3254
      %3256 = vmatmul.bf16.gmra.mxu0 %v3143
      %v3257 = vpop.f32.mrf.mxu0
      %v3258 = vadd.f32 0.0, %v3257
      %v3259 = vpop.f32.mrf.mxu0
      %v3260 = vadd.f32 0.0, %v3259
      %3261 = vmatmul.bf16.gmra.mxu0 %v3145
      %v3262 = vpop.f32.mrf.mxu0
      %v3263 = vadd.f32 0.0, %v3262
      %v3264 = vpop.f32.mrf.mxu0
      %v3265 = vadd.f32 0.0, %v3264
      %3266 = vmatmul.bf16.gmra.mxu0 %v3147
      %v3267 = vpop.f32.mrf.mxu0
      %v3268 = vadd.f32 0.0, %v3267
      %v3269 = vpop.f32.mrf.mxu0
      %v3270 = vadd.f32 0.0, %v3269
      %3271 = vdwg.mxu0
      %3272 = vmatpush.bf16.msra.mxu0 0
      %3273 = vmatpush.bf16.msra.mxu0 0
      %3274 = vmatpush.bf16.msra.mxu0 0
      %3275 = vmatpush.bf16.msra.mxu0 %v3241
      %3276 = vmatpush.bf16.msra.mxu0 %v3214
      %3277 = vmatpush.bf16.msra.mxu0 %v3213
      %3278 = vmatpush.bf16.msra.mxu0 %v3212
      %3279 = vmatpush.bf16.msra.mxu0 %v3211
      %3280 = vmatmul.bf16.gmra.mxu0 %v3229
      %v3281 = vpop.f32.mrf.mxu0
      %v3282 = vadd.f32 %v3253, %v3281
      %v3283 = vpop.f32.mrf.mxu0
      %v3284 = vadd.f32 %v3255, %v3283
      %3285 = vmatmul.bf16.gmra.mxu0 %v3232
      %v3286 = vpop.f32.mrf.mxu0
      %v3287 = vadd.f32 %v3258, %v3286
      %v3288 = vpop.f32.mrf.mxu0
      %v3289 = vadd.f32 %v3260, %v3288
      %3290 = vmatmul.bf16.gmra.mxu0 %v3235
      %v3291 = vpop.f32.mrf.mxu0
      %v3292 = vadd.f32 %v3263, %v3291
      %v3293 = vpop.f32.mrf.mxu0
      %v3294 = vadd.f32 %v3265, %v3293
      %3295 = vmatmul.bf16.gmra.mxu0 %v3238
      %v3296 = vpop.f32.mrf.mxu0
      %v3297 = vadd.f32 %v3268, %v3296
      %v3298 = vpop.f32.mrf.mxu0
      %v3299 = vadd.f32 %v3270, %v3298
      %3300 = vdwg.mxu0
      %3301 = vst.msk [vmem:[%s469] sm:$0xff] %vm512, %v3282
      %3302 = vst.msk [vmem:[%s469 + $0x8] sm:$0xff] %vm512, %v3284
      %3303 = vst.msk [vmem:[%s469 + $0x10] sm:$0xff] %vm512, %v3287
      %3304 = vst.msk [vmem:[%s469 + $0x18] sm:$0xff] %vm512, %v3289
      %3305 = vst.msk [vmem:[%s469 + $0x20] sm:$0xff] %vm512, %v3292
      %3306 = vst.msk [vmem:[%s469 + $0x28] sm:$0xff] %vm512, %v3294
      %3307 = vst.msk [vmem:[%s469 + $0x30] sm:$0xff] %vm512, %v3297
      %3308 = vst.msk [vmem:[%s469 + $0x38] sm:$0xff] %vm512, %v3299
      %s3309 = smul.u32 8, %s25
      %p3310 = scmp.lt.s32.totalorder %s3309, 15
      %s3311 = scalar_select %p3310, %s3309, 15
      %s3312 = smul.addr %s3311, 8
      %s3313 = scalar_lea.vmem %s14, %s3312
      // Predicated region
      $region77: #{tpu_custom_call.1} parent=75 // pred_check
        %p3314 = pneg %p342
      $region78: #{tpu_custom_call.1} parent=75 // pred_check_branch
        %3316 = sbr.rel (%p3314) target = $region80
      $region79: #{tpu_custom_call.1} parent=75 // pred_region
        %s3317 = smul.u32 8, %s25
      $region80: #{tpu_custom_call.1} parent=75 // pred_fallthru
        _
    $region76: #{tpu_custom_call.1} parent=5 // pred_fallthru
      _
    %p3318 = scmp.le.s32.totalorder 2, %s20
    // Predicated region
    $region81: #{tpu_custom_call.1} parent=5 // pred_check
      %p3319 = pneg %p3318
    $region82: #{tpu_custom_call.1} parent=5 // pred_check_branch
      %3321 = sbr.rel (%p3319) target = $region84
    $region83: #{tpu_custom_call.1} parent=5 // pred_region
      %s3322 = ssub.s32 %s20, 2
      // Predicated region
      $region85: #{tpu_custom_call.1} parent=83 // pred_check
        %p3323 = pneg %p348
      $region86: #{tpu_custom_call.1} parent=83 // pred_check_branch
        %3325 = sbr.rel (%p3323) target = $region88
      $region87: #{tpu_custom_call.1} parent=83 // pred_region
        %s3326 = smul.u32 8, %s26
        %p3327 = scmp.lt.s32.totalorder %s3326, 15
        %s3328 = scalar_select %p3327, %s3326, 15
        %s3329 = smul.addr %s3328, 8
        %s3330 = scalar_lea.vmem %s14, %s3329
      $region88: #{tpu_custom_call.1} parent=83 // pred_fallthru
        _
    $region84: #{tpu_custom_call.1} parent=5 // pred_fallthru
      _
  $region6: #{tpu_custom_call.1} parent=0 // loop_footer
    %s24 = sadd.s32 1, %s20
  $region7: #{tpu_custom_call.1} parent=0 // loop_footer_branch
    %19 = sbr.rel target = $region3
  $region8: #{tpu_custom_call.1} parent=0 // loop_exit
    _

</llo_original>
